<compile_context>
chip_gen: v7x
topology: tpu7x:2x2x1
jax: 0.10.0
libtpu: 0.0.40
codegen_flags: <defaults>
</compile_context>

<pallas_src>
import math

import numpy as np
import jax
import jax.numpy as jnp
from jax.experimental import pallas as pl
from jax.experimental.pallas import tpu as pltpu

# ----------------------------- config (consistent with the module) -----------
GRU_INPUT_SIZE = 64          # config.gru_input_size == scene_dim (divisible by 8 heads)
GRU_HIDDEN_SIZE = 32         # config.gru_hidden_size
PRED_LEN = 8
WP_DILATION = 1
WAYPOINTS = PRED_LEN // WP_DILATION   # 8 == target_points
PHYSICS_DIM = 18
GEAR_LENGTH = 27
LATENT_DIM = 128
GEAR_DIM = 4
NUM_HEADS = 8
HEAD_DIM = GRU_INPUT_SIZE // NUM_HEADS
FF_DIM = 512
LANES = 128


# ----------------------------- packed-parameter layout ------------------------
def _build_layout():
    layout = {}
    off = 0

    def add(name, k, n):
        nonlocal off
        layout[name] = (off, k, n)
        off += ((k + 7) // 8) * 8          # sublane-aligned row slot

    D, H = GRU_INPUT_SIZE, GRU_HIDDEN_SIZE
    add("gear_w1", GEAR_LENGTH, LATENT_DIM); add("gear_b1", 1, LATENT_DIM)
    add("gear_w2", LATENT_DIM, GEAR_DIM);    add("gear_b2", 1, GEAR_DIM)
    add("pe_w1p", PHYSICS_DIM, 64); add("pe_w1g", GEAR_DIM, 64); add("pe_b1", 1, 64)
    add("pe_w2", 64, LATENT_DIM);   add("pe_b2", 1, LATENT_DIM)
    add("sq_w", D, D); add("sq_b", 1, D)
    add("pk_w", LATENT_DIM, D); add("pk_b", 1, D)
    add("wq", D, D); add("bq", 1, D)
    add("wk", D, D); add("bk", 1, D)
    add("wv", D, D); add("bv", 1, D)
    add("wo", D, D); add("bo", 1, D)
    for j in range(FF_DIM // LANES):                       # ff_w1 split in 128-col blocks
        add(f"ff_w1_{j}", D, LANES); add(f"ff_b1_{j}", 1, LANES)
    add("ff_w2", FF_DIM, D); add("ff_b2", 1, D)
    add("enc_w", 2, H); add("enc_b", 1, H)
    add("ih_all", D, 3 * H); add("bx_all", 1, 3 * H)       # gates r|z|n; r/z biases folded
    add("hh_all", H, 3 * H); add("bhh_n", 1, H)
    add("dec_w", H, 2); add("dec_b", 1, 2)
    return layout, off


_LAYOUT, _PARAM_ROWS = _build_layout()                     # 1760 rows x 128 lanes (f32)


# ----------------------------- fused Pallas kernel ----------------------------
def _mvadapt_kernel(scene_ref, tp_ref, phys_ref, gear_ref,
                    selrep_ref, esel_ref, prm, out_ref):
    D, H, WP, NH = GRU_INPUT_SIZE, GRU_HIDDEN_SIZE, WAYPOINTS, NUM_HEADS
    bs = tp_ref.shape[0]

    def w(name):                           # static row/lane view into the packed buffer
        off, k, n = _LAYOUT[name]
        return prm[off:off + k, :n]

    def dot(a, b):
        return jnp.dot(a, b, preferred_element_type=jnp.float32)

    # ---------------- PhysicsEncoder (Dropout = identity in eval mode) --------
    g1 = jnp.maximum(dot(gear_ref[...], w("gear_w1")) + w("gear_b1"), 0.0)      # (bs, 128)
    gear_latent = dot(g1, w("gear_w2")) + w("gear_b2")                          # (bs, 4)
    # Linear(22, 64) on concat(physics, gear_latent) == split-weight sum.
    pe1 = jnp.maximum(dot(phys_ref[...], w("pe_w1p"))
                      + dot(gear_latent, w("pe_w1g")) + w("pe_b1"), 0.0)        # (bs, 64)
    phys_emb = dot(pe1, w("pe_w2")) + w("pe_b2")                                # (bs, 128)

    # ---------------- CrossAttentionTransformer --------------------------------
    scene_q = dot(scene_ref[...], w("sq_w")) + w("sq_b")                        # (bs*WP, D)
    pk = dot(phys_emb, w("pk_w")) + w("pk_b")                                   # (bs, D)

    # nn.MultiheadAttention, batch_first=False: L = bs, N = WP, S = bs, value = physics_k.
    # Keys/values are waypoint-invariant, so every query row attends to the same bs keys.
    q = dot(scene_q, w("wq")) + w("bq")                                         # (bs*WP, D)
    k = dot(pk, w("wk")) + w("bk")                                              # (bs, D)
    v = dot(pk, w("wv")) + w("bv")                                              # (bs, D)

    sel_rep = selrep_ref[...]            # (bs*NH, D): head mask for row c = s*NH + h
    e_sel = esel_ref[...]                # (bs*NH, bs): 0/1 key-replication matrix
    kx = dot(e_sel, k) * sel_rep                                                # (bs*NH, D)
    vx = dot(e_sel, v) * sel_rep                                                # (bs*NH, D)

    scale = 1.0 / math.sqrt(HEAD_DIM)
    s_all = jax.lax.dot_general(q, kx, (((1,), (1,)), ((), ())),
                                preferred_element_type=jnp.float32) * scale     # (bs*WP, bs*NH)

    # softmax over keys (s) per head h: columns are s-major blocks of width NH
    m = s_all[:, 0:NH]
    for s in range(1, bs):
        m = jnp.maximum(m, s_all[:, s * NH:(s + 1) * NH])
    p = jnp.exp(s_all - jnp.concatenate([m] * bs, axis=1))
    den = p[:, 0:NH]
    for s in range(1, bs):
        den = den + p[:, s * NH:(s + 1) * NH]
    inv = pl.reciprocal(den, approx=True)
    pn = p * jnp.concatenate([inv] * bs, axis=1)
    ctx = dot(pn, vx)                                                           # (bs*WP, D)

    attn = dot(ctx, w("wo")) + w("bo")
    adapted = attn + scene_q
    ff_parts = [jnp.maximum(dot(adapted, w(f"ff_w1_{j}")) + w(f"ff_b1_{j}"), 0.0)
                for j in range(FF_DIM // LANES)]
    ff = jnp.concatenate(ff_parts, axis=1)                                      # (bs*WP, 512)
    combined = dot(ff, w("ff_w2")) + w("ff_b2") + adapted                       # (bs*WP, D)

    # ---------------- encoder + GRU (unrolled, fused gates) + decoder/cumsum ---
    h = dot(tp_ref[...], w("enc_w")) + w("enc_b")                               # (bs, H)
    gx = dot(combined, w("ih_all")) + w("bx_all")                               # (bs*WP, 3H)
    gx3 = gx.reshape(bs, WP, 3 * H)
    hh_all, bhh_n = w("hh_all"), w("bhh_n")
    dec_w, dec_b = w("dec_w"), w("dec_b")

    cums = []
    cum = jnp.zeros((bs, 2), jnp.float32)
    for t in range(WP):                                   # static trip count -> unrolled
        gxt = gx3[:, t, :]                                # (bs, 3H)
        gh = dot(h, hh_all)                               # ONE fused (H, 3H) matmul
        rz = jax.nn.sigmoid(gxt[:, :2 * H] + gh[:, :2 * H])
        r = rz[:, :H]
        z = rz[:, H:]
        n = jnp.tanh(gxt[:, 2 * H:] + r * (gh[:, 2 * H:] + bhh_n))
        h = (1.0 - z) * n + z * h
        cum = cum + dot(h, dec_w) + dec_b                 # decoder + running cumsum
        cums.append(cum)

    out_ref[...] = jnp.concatenate(cums, axis=1).astype(out_ref.dtype)          # (bs, 2*WP)


# ----------------------------- parameter packing (kernel-ready layout) --------
def _linear(key, out_dim, in_dim):
    kw, kb = jax.random.split(key)
    bound = 1.0 / math.sqrt(in_dim)
    w = jax.random.uniform(kw, (out_dim, in_dim), jnp.float32, -bound, bound)
    b = jax.random.uniform(kb, (out_dim,), jnp.float32, -bound, bound)
    return np.asarray(w), np.asarray(b)


def init_params(key):
    D, H = GRU_INPUT_SIZE, GRU_HIDDEN_SIZE
    buf = np.zeros((_PARAM_ROWS, LANES), np.float32)

    def put(name, mat):
        off, k, n = _LAYOUT[name]
        buf[off:off + k, :n] = np.asarray(mat, np.float32).reshape(k, n)

    ks = jax.random.split(key, 15)
    w, b = _linear(ks[0], LATENT_DIM, GEAR_LENGTH); put("gear_w1", w.T); put("gear_b1", b)
    w, b = _linear(ks[1], GEAR_DIM, LATENT_DIM);    put("gear_w2", w.T); put("gear_b2", b)
    w, b = _linear(ks[2], 64, PHYSICS_DIM + GEAR_DIM)
    wt = w.T                                                    # (22, 64) -> 18 / 4 row split
    put("pe_w1p", wt[:PHYSICS_DIM]); put("pe_w1g", wt[PHYSICS_DIM:]); put("pe_b1", b)
    w, b = _linear(ks[3], LATENT_DIM, 64);          put("pe_w2", w.T); put("pe_b2", b)
    w, b = _linear(ks[4], D, D);                    put("sq_w", w.T); put("sq_b", b)
    w, b = _linear(ks[5], D, LATENT_DIM);           put("pk_w", w.T); put("pk_b", b)
    _ = _linear(ks[6], D, LATENT_DIM)               # physics_v: output never used (dead)
    w, b = _linear(ks[7], 3 * D, D)                 # MHA in_proj, split into q/k/v
    wt = w.T                                                    # (D, 3D)
    put("wq", wt[:, :D]); put("wk", wt[:, D:2 * D]); put("wv", wt[:, 2 * D:])
    put("bq", b[:D]); put("bk", b[D:2 * D]); put("bv", b[2 * D:])
    w, b = _linear(ks[8], D, D);                    put("wo", w.T); put("bo", b)
    w, b = _linear(ks[9], FF_DIM, D)
    wt = w.T                                                    # (64, 512) -> 128-col blocks
    for j in range(FF_DIM // LANES):
        put(f"ff_w1_{j}", wt[:, j * LANES:(j + 1) * LANES])
        put(f"ff_b1_{j}", b[j * LANES:(j + 1) * LANES])
    w, b = _linear(ks[10], D, FF_DIM);              put("ff_w2", w.T); put("ff_b2", b)
    w, b = _linear(ks[11], H, 2);                   put("enc_w", w.T); put("enc_b", b)
    wih, bih = _linear(ks[12], 3 * H, D)            # GRU W_ih, gate order r, z, n
    whh, bhh = _linear(ks[13], 3 * H, H)            # GRU W_hh
    put("ih_all", wih.T)                                        # (64, 96)
    put("hh_all", whh.T)                                        # (32, 96)
    put("bx_all", np.concatenate([bih[:H] + bhh[:H],            # fold r/z biases
                                  bih[H:2 * H] + bhh[H:2 * H],
                                  bih[2 * H:]]))
    put("bhh_n", bhh[2 * H:])                                   # n-gate hh bias stays separate
    w, b = _linear(ks[14], 2, H);                   put("dec_w", w.T); put("dec_b", b)
    return jnp.asarray(buf)


def _attn_consts(bs):
    """Host-built 0/1 constants: head mask (sel_rep) and key-replication (e_sel)."""
    nh, dh, d = NUM_HEADS, HEAD_DIM, GRU_INPUT_SIZE
    sel_rep = np.zeros((bs * nh, d), np.float32)
    e_sel = np.zeros((bs * nh, bs), np.float32)
    for s in range(bs):
        for h in range(nh):
            row = s * nh + h
            sel_rep[row, h * dh:(h + 1) * dh] = 1.0
            e_sel[row, s] = 1.0
    return jnp.asarray(sel_rep), jnp.asarray(e_sel)


def _spec2d(shape):
    return pl.BlockSpec(shape, lambda i: (0, 0))


# ----------------------------- MVAdapt forward (single pallas_call) -----------
def mvadapt_forward(params, rgb, scene_feature, target_point, physics_params, gear_params):
    del rgb  # unused by the reference forward
    D, WP = GRU_INPUT_SIZE, WAYPOINTS
    bs = scene_feature.shape[0]
    scene2d = scene_feature.reshape(bs * WP, D)       # contiguous reshape, no relayout cost
    sel_rep, e_sel = _attn_consts(bs)

    inputs = [scene2d, target_point, physics_params, gear_params, sel_rep, e_sel, params]
    return pl.pallas_call(
        _mvadapt_kernel,
        out_shape=jax.ShapeDtypeStruct((bs, WP * 2), jnp.float32),
        grid=(1,),
        in_specs=[_spec2d(x.shape) for x in inputs],
        out_specs=pl.BlockSpec((bs, WP * 2), lambda i: (0, 0)),
        compiler_params=pltpu.CompilerParams(dimension_semantics=("arbitrary",)),
    )(*inputs)


# ----------------------------- main -------------------------------------------
if __name__ == "__main__":
    key = jax.random.PRNGKey(0)
    kp, k1, k2, k3, k4, k5 = jax.random.split(key, 6)
    params = init_params(kp)

    bs = 2
    rgb = jax.random.normal(k1, (bs, 3, 16, 16), jnp.float32)                     # NCHW, unused
    scene_feature = jax.random.normal(k2, (bs, WAYPOINTS * GRU_INPUT_SIZE), jnp.float32)
    target_point = jax.random.normal(k3, (bs, 2), jnp.float32)
    physics_params = jax.random.normal(k4, (bs, PHYSICS_DIM), jnp.float32)
    gear_params = jax.random.normal(k5, (bs, GEAR_LENGTH), jnp.float32)

    fwd = jax.jit(mvadapt_forward)
    out = fwd(params, rgb, scene_feature, target_point, physics_params, gear_params)
    out = jax.block_until_ready(out)
    assert out.shape == (bs, WAYPOINTS * 2)
    assert bool(jnp.all(jnp.isfinite(out)))
    print("KERNEL_OK")
</pallas_src>

<mosaic_0001>
module attributes {stable_mosaic.version = 11 : i64} {
  func.func @_mvadapt_kernel(%arg0: i32, %arg1: memref<16x64xf32, #tpu.memory_space<vmem>>, %arg2: memref<2x2xf32, #tpu.memory_space<vmem>>, %arg3: memref<2x18xf32, #tpu.memory_space<vmem>>, %arg4: memref<2x27xf32, #tpu.memory_space<vmem>>, %arg5: memref<16x64xf32, #tpu.memory_space<vmem>>, %arg6: memref<16x2xf32, #tpu.memory_space<vmem>>, %arg7: memref<1760x128xf32, #tpu.memory_space<vmem>>, %arg8: memref<2x16xf32, #tpu.memory_space<vmem>>) attributes {dimension_semantics = [#tpu.dimension_semantics<arbitrary>], iteration_bounds = array<i64: 1>, scalar_prefetch = 0 : i64, scratch_operands = 0 : i64, tpu.core_type = #tpu.core_type<tc>, window_params = [{pipeline_mode = #tpu.pipeline_mode<synchronous>, transform_indices = @transform_0, window_bounds = array<i64: 16, 64>}, {pipeline_mode = #tpu.pipeline_mode<synchronous>, transform_indices = @transform_1, window_bounds = array<i64: 2, 2>}, {pipeline_mode = #tpu.pipeline_mode<synchronous>, transform_indices = @transform_2, window_bounds = array<i64: 2, 18>}, {pipeline_mode = #tpu.pipeline_mode<synchronous>, transform_indices = @transform_3, window_bounds = array<i64: 2, 27>}, {pipeline_mode = #tpu.pipeline_mode<synchronous>, transform_indices = @transform_4, window_bounds = array<i64: 16, 64>}, {pipeline_mode = #tpu.pipeline_mode<synchronous>, transform_indices = @transform_5, window_bounds = array<i64: 16, 2>}, {pipeline_mode = #tpu.pipeline_mode<synchronous>, transform_indices = @transform_6, window_bounds = array<i64: 1760, 128>}, {pipeline_mode = #tpu.pipeline_mode<synchronous>, transform_indices = @transform_7, window_bounds = array<i64: 2, 16>}]} {
    %c0 = arith.constant 0 : index
    %c0_0 = arith.constant 0 : index
    %0 = vector.load %arg4[%c0, %c0_0] : memref<2x27xf32, #tpu.memory_space<vmem>>, vector<2x27xf32>
    %c0_1 = arith.constant 0 : index
    %c0_2 = arith.constant 0 : index
    %1 = vector.load %arg7[%c0_1, %c0_2] : memref<1760x128xf32, #tpu.memory_space<vmem>>, vector<27x128xf32>
    %cst = arith.constant dense<0.000000e+00> : vector<2x128xf32>
    %2 = tpu.matmul %0, %1, %cst {dimension_numbers = #tpu.dot_dimension_numbers<[1], [0], [0], [1], [0, 0, 1, 1], [], []>} : vector<2x27xf32>, vector<27x128xf32>, vector<2x128xf32> -> vector<2x128xf32>
    %c32 = arith.constant 32 : index
    %c0_3 = arith.constant 0 : index
    %3 = vector.load %arg7[%c32, %c0_3] : memref<1760x128xf32, #tpu.memory_space<vmem>>, vector<1x128xf32>
    %4 = vector.broadcast %3 : vector<1x128xf32> to vector<2x128xf32>
    %5 = arith.addf %2, %4 : vector<2x128xf32>
    %cst_4 = arith.constant 0.000000e+00 : f32
    %6 = vector.broadcast %cst_4 : f32 to vector<2x128xf32>
    %7 = arith.maximumf %5, %6 : vector<2x128xf32>
    %c40 = arith.constant 40 : index
    %c0_5 = arith.constant 0 : index
    %8 = vector.load %arg7[%c40, %c0_5] : memref<1760x128xf32, #tpu.memory_space<vmem>>, vector<128x4xf32>
    %cst_6 = arith.constant dense<0.000000e+00> : vector<2x4xf32>
    %9 = tpu.matmul %7, %8, %cst_6 {dimension_numbers = #tpu.dot_dimension_numbers<[1], [0], [0], [1], [0, 0, 1, 1], [], []>} : vector<2x128xf32>, vector<128x4xf32>, vector<2x4xf32> -> vector<2x4xf32>
    %c168 = arith.constant 168 : index
    %c0_7 = arith.constant 0 : index
    %10 = vector.load %arg7[%c168, %c0_7] : memref<1760x128xf32, #tpu.memory_space<vmem>>, vector<1x4xf32>
    %11 = vector.broadcast %10 : vector<1x4xf32> to vector<2x4xf32>
    %12 = arith.addf %9, %11 : vector<2x4xf32>
    %c0_8 = arith.constant 0 : index
    %c0_9 = arith.constant 0 : index
    %13 = vector.load %arg3[%c0_8, %c0_9] : memref<2x18xf32, #tpu.memory_space<vmem>>, vector<2x18xf32>
    %c176 = arith.constant 176 : index
    %c0_10 = arith.constant 0 : index
    %14 = vector.load %arg7[%c176, %c0_10] : memref<1760x128xf32, #tpu.memory_space<vmem>>, vector<18x64xf32>
    %cst_11 = arith.constant dense<0.000000e+00> : vector<2x64xf32>
    %15 = tpu.matmul %13, %14, %cst_11 {dimension_numbers = #tpu.dot_dimension_numbers<[1], [0], [0], [1], [0, 0, 1, 1], [], []>} : vector<2x18xf32>, vector<18x64xf32>, vector<2x64xf32> -> vector<2x64xf32>
    %c200 = arith.constant 200 : index
    %c0_12 = arith.constant 0 : index
    %16 = vector.load %arg7[%c200, %c0_12] : memref<1760x128xf32, #tpu.memory_space<vmem>>, vector<4x64xf32>
    %cst_13 = arith.constant dense<0.000000e+00> : vector<2x64xf32>
    %17 = tpu.matmul %12, %16, %cst_13 {dimension_numbers = #tpu.dot_dimension_numbers<[1], [0], [0], [1], [0, 0, 1, 1], [], []>} : vector<2x4xf32>, vector<4x64xf32>, vector<2x64xf32> -> vector<2x64xf32>
    %18 = arith.addf %15, %17 : vector<2x64xf32>
    %c208 = arith.constant 208 : index
    %c0_14 = arith.constant 0 : index
    %19 = vector.load %arg7[%c208, %c0_14] : memref<1760x128xf32, #tpu.memory_space<vmem>>, vector<1x64xf32>
    %20 = vector.broadcast %19 : vector<1x64xf32> to vector<2x64xf32>
    %21 = arith.addf %18, %20 : vector<2x64xf32>
    %cst_15 = arith.constant 0.000000e+00 : f32
    %22 = vector.broadcast %cst_15 : f32 to vector<2x64xf32>
    %23 = arith.maximumf %21, %22 : vector<2x64xf32>
    %c216 = arith.constant 216 : index
    %c0_16 = arith.constant 0 : index
    %24 = vector.load %arg7[%c216, %c0_16] : memref<1760x128xf32, #tpu.memory_space<vmem>>, vector<64x128xf32>
    %cst_17 = arith.constant dense<0.000000e+00> : vector<2x128xf32>
    %25 = tpu.matmul %23, %24, %cst_17 {dimension_numbers = #tpu.dot_dimension_numbers<[1], [0], [0], [1], [0, 0, 1, 1], [], []>} : vector<2x64xf32>, vector<64x128xf32>, vector<2x128xf32> -> vector<2x128xf32>
    %c280 = arith.constant 280 : index
    %c0_18 = arith.constant 0 : index
    %26 = vector.load %arg7[%c280, %c0_18] : memref<1760x128xf32, #tpu.memory_space<vmem>>, vector<1x128xf32>
    %27 = vector.broadcast %26 : vector<1x128xf32> to vector<2x128xf32>
    %28 = arith.addf %25, %27 : vector<2x128xf32>
    %c0_19 = arith.constant 0 : index
    %c0_20 = arith.constant 0 : index
    %29 = vector.load %arg1[%c0_19, %c0_20] : memref<16x64xf32, #tpu.memory_space<vmem>>, vector<16x64xf32>
    %c288 = arith.constant 288 : index
    %c0_21 = arith.constant 0 : index
    %30 = vector.load %arg7[%c288, %c0_21] : memref<1760x128xf32, #tpu.memory_space<vmem>>, vector<64x64xf32>
    %cst_22 = arith.constant dense<0.000000e+00> : vector<16x64xf32>
    %31 = tpu.matmul %29, %30, %cst_22 {dimension_numbers = #tpu.dot_dimension_numbers<[1], [0], [0], [1], [0, 0, 1, 1], [], []>} : vector<16x64xf32>, vector<64x64xf32>, vector<16x64xf32> -> vector<16x64xf32>
    %c352 = arith.constant 352 : index
    %c0_23 = arith.constant 0 : index
    %32 = vector.load %arg7[%c352, %c0_23] : memref<1760x128xf32, #tpu.memory_space<vmem>>, vector<1x64xf32>
    %33 = vector.broadcast %32 : vector<1x64xf32> to vector<16x64xf32>
    %34 = arith.addf %31, %33 : vector<16x64xf32>
    %c360 = arith.constant 360 : index
    %c0_24 = arith.constant 0 : index
    %35 = vector.load %arg7[%c360, %c0_24] : memref<1760x128xf32, #tpu.memory_space<vmem>>, vector<128x64xf32>
    %cst_25 = arith.constant dense<0.000000e+00> : vector<2x64xf32>
    %36 = tpu.matmul %28, %35, %cst_25 {dimension_numbers = #tpu.dot_dimension_numbers<[1], [0], [0], [1], [0, 0, 1, 1], [], []>} : vector<2x128xf32>, vector<128x64xf32>, vector<2x64xf32> -> vector<2x64xf32>
    %c488 = arith.constant 488 : index
    %c0_26 = arith.constant 0 : index
    %37 = vector.load %arg7[%c488, %c0_26] : memref<1760x128xf32, #tpu.memory_space<vmem>>, vector<1x64xf32>
    %38 = vector.broadcast %37 : vector<1x64xf32> to vector<2x64xf32>
    %39 = arith.addf %36, %38 : vector<2x64xf32>
    %c496 = arith.constant 496 : index
    %c0_27 = arith.constant 0 : index
    %40 = vector.load %arg7[%c496, %c0_27] : memref<1760x128xf32, #tpu.memory_space<vmem>>, vector<64x64xf32>
    %cst_28 = arith.constant dense<0.000000e+00> : vector<16x64xf32>
    %41 = tpu.matmul %34, %40, %cst_28 {dimension_numbers = #tpu.dot_dimension_numbers<[1], [0], [0], [1], [0, 0, 1, 1], [], []>} : vector<16x64xf32>, vector<64x64xf32>, vector<16x64xf32> -> vector<16x64xf32>
    %c560 = arith.constant 560 : index
    %c0_29 = arith.constant 0 : index
    %42 = vector.load %arg7[%c560, %c0_29] : memref<1760x128xf32, #tpu.memory_space<vmem>>, vector<1x64xf32>
    %43 = vector.broadcast %42 : vector<1x64xf32> to vector<16x64xf32>
    %44 = arith.addf %41, %43 : vector<16x64xf32>
    %c568 = arith.constant 568 : index
    %c0_30 = arith.constant 0 : index
    %45 = vector.load %arg7[%c568, %c0_30] : memref<1760x128xf32, #tpu.memory_space<vmem>>, vector<64x64xf32>
    %cst_31 = arith.constant dense<0.000000e+00> : vector<2x64xf32>
    %46 = tpu.matmul %39, %45, %cst_31 {dimension_numbers = #tpu.dot_dimension_numbers<[1], [0], [0], [1], [0, 0, 1, 1], [], []>} : vector<2x64xf32>, vector<64x64xf32>, vector<2x64xf32> -> vector<2x64xf32>
    %c632 = arith.constant 632 : index
    %c0_32 = arith.constant 0 : index
    %47 = vector.load %arg7[%c632, %c0_32] : memref<1760x128xf32, #tpu.memory_space<vmem>>, vector<1x64xf32>
    %48 = vector.broadcast %47 : vector<1x64xf32> to vector<2x64xf32>
    %49 = arith.addf %46, %48 : vector<2x64xf32>
    %c640 = arith.constant 640 : index
    %c0_33 = arith.constant 0 : index
    %50 = vector.load %arg7[%c640, %c0_33] : memref<1760x128xf32, #tpu.memory_space<vmem>>, vector<64x64xf32>
    %cst_34 = arith.constant dense<0.000000e+00> : vector<2x64xf32>
    %51 = tpu.matmul %39, %50, %cst_34 {dimension_numbers = #tpu.dot_dimension_numbers<[1], [0], [0], [1], [0, 0, 1, 1], [], []>} : vector<2x64xf32>, vector<64x64xf32>, vector<2x64xf32> -> vector<2x64xf32>
    %c704 = arith.constant 704 : index
    %c0_35 = arith.constant 0 : index
    %52 = vector.load %arg7[%c704, %c0_35] : memref<1760x128xf32, #tpu.memory_space<vmem>>, vector<1x64xf32>
    %53 = vector.broadcast %52 : vector<1x64xf32> to vector<2x64xf32>
    %54 = arith.addf %51, %53 : vector<2x64xf32>
    %c0_36 = arith.constant 0 : index
    %c0_37 = arith.constant 0 : index
    %55 = vector.load %arg5[%c0_36, %c0_37] : memref<16x64xf32, #tpu.memory_space<vmem>>, vector<16x64xf32>
    %c0_38 = arith.constant 0 : index
    %c0_39 = arith.constant 0 : index
    %56 = vector.load %arg6[%c0_38, %c0_39] : memref<16x2xf32, #tpu.memory_space<vmem>>, vector<16x2xf32>
    %cst_40 = arith.constant dense<0.000000e+00> : vector<16x64xf32>
    %57 = tpu.matmul %56, %49, %cst_40 {dimension_numbers = #tpu.dot_dimension_numbers<[1], [0], [0], [1], [0, 0, 1, 1], [], []>} : vector<16x2xf32>, vector<2x64xf32>, vector<16x64xf32> -> vector<16x64xf32>
    %58 = arith.mulf %57, %55 : vector<16x64xf32>
    %cst_41 = arith.constant dense<0.000000e+00> : vector<16x64xf32>
    %59 = tpu.matmul %56, %54, %cst_41 {dimension_numbers = #tpu.dot_dimension_numbers<[1], [0], [0], [1], [0, 0, 1, 1], [], []>} : vector<16x2xf32>, vector<2x64xf32>, vector<16x64xf32> -> vector<16x64xf32>
    %60 = arith.mulf %59, %55 : vector<16x64xf32>
    %cst_42 = arith.constant dense<0.000000e+00> : vector<16x16xf32>
    %61 = tpu.matmul %44, %58, %cst_42 {dimension_numbers = #tpu.dot_dimension_numbers<[1], [1], [0], [0], [0, 0, 1, 0], [], []>} : vector<16x64xf32>, vector<16x64xf32>, vector<16x16xf32> -> vector<16x16xf32>
    %cst_43 = arith.constant 0.353553385 : f32
    %62 = vector.broadcast %cst_43 : f32 to vector<16x16xf32>
    %63 = arith.mulf %61, %62 : vector<16x16xf32>
    %64 = vector.extract_strided_slice %63 {offsets = [0, 0], sizes = [16, 8], strides = [1, 1]} : vector<16x16xf32> to vector<16x8xf32>
    %65 = vector.extract_strided_slice %63 {offsets = [0, 8], sizes = [16, 8], strides = [1, 1]} : vector<16x16xf32> to vector<16x8xf32>
    %66 = arith.maximumf %64, %65 : vector<16x8xf32>
    %67 = tpu.concatenate %66, %66 in 1 : vector<16x8xf32>, vector<16x8xf32> -> vector<16x16xf32>
    %68 = arith.subf %63, %67 : vector<16x16xf32>
    %69 = math.exp %68 : vector<16x16xf32>
    %70 = vector.extract_strided_slice %69 {offsets = [0, 0], sizes = [16, 8], strides = [1, 1]} : vector<16x16xf32> to vector<16x8xf32>
    %71 = vector.extract_strided_slice %69 {offsets = [0, 8], sizes = [16, 8], strides = [1, 1]} : vector<16x16xf32> to vector<16x8xf32>
    %72 = arith.addf %70, %71 : vector<16x8xf32>
    %73 = tpu.reciprocal %72 {approx = true} : vector<16x8xf32> -> vector<16x8xf32>
    %74 = tpu.concatenate %73, %73 in 1 : vector<16x8xf32>, vector<16x8xf32> -> vector<16x16xf32>
    %75 = arith.mulf %69, %74 : vector<16x16xf32>
    %cst_44 = arith.constant dense<0.000000e+00> : vector<16x64xf32>
    %76 = tpu.matmul %75, %60, %cst_44 {dimension_numbers = #tpu.dot_dimension_numbers<[1], [0], [0], [1], [0, 0, 1, 1], [], []>} : vector<16x16xf32>, vector<16x64xf32>, vector<16x64xf32> -> vector<16x64xf32>
    %c712 = arith.constant 712 : index
    %c0_45 = arith.constant 0 : index
    %77 = vector.load %arg7[%c712, %c0_45] : memref<1760x128xf32, #tpu.memory_space<vmem>>, vector<64x64xf32>
    %cst_46 = arith.constant dense<0.000000e+00> : vector<16x64xf32>
    %78 = tpu.matmul %76, %77, %cst_46 {dimension_numbers = #tpu.dot_dimension_numbers<[1], [0], [0], [1], [0, 0, 1, 1], [], []>} : vector<16x64xf32>, vector<64x64xf32>, vector<16x64xf32> -> vector<16x64xf32>
    %c776 = arith.constant 776 : index
    %c0_47 = arith.constant 0 : index
    %79 = vector.load %arg7[%c776, %c0_47] : memref<1760x128xf32, #tpu.memory_space<vmem>>, vector<1x64xf32>
    %80 = vector.broadcast %79 : vector<1x64xf32> to vector<16x64xf32>
    %81 = arith.addf %78, %80 : vector<16x64xf32>
    %82 = arith.addf %81, %34 : vector<16x64xf32>
    %c784 = arith.constant 784 : index
    %c0_48 = arith.constant 0 : index
    %83 = vector.load %arg7[%c784, %c0_48] : memref<1760x128xf32, #tpu.memory_space<vmem>>, vector<64x128xf32>
    %cst_49 = arith.constant dense<0.000000e+00> : vector<16x128xf32>
    %84 = tpu.matmul %82, %83, %cst_49 {dimension_numbers = #tpu.dot_dimension_numbers<[1], [0], [0], [1], [0, 0, 1, 1], [], []>} : vector<16x64xf32>, vector<64x128xf32>, vector<16x128xf32> -> vector<16x128xf32>
    %c848 = arith.constant 848 : index
    %c0_50 = arith.constant 0 : index
    %85 = vector.load %arg7[%c848, %c0_50] : memref<1760x128xf32, #tpu.memory_space<vmem>>, vector<1x128xf32>
    %86 = vector.broadcast %85 : vector<1x128xf32> to vector<16x128xf32>
    %87 = arith.addf %84, %86 : vector<16x128xf32>
    %cst_51 = arith.constant 0.000000e+00 : f32
    %88 = vector.broadcast %cst_51 : f32 to vector<16x128xf32>
    %89 = arith.maximumf %87, %88 : vector<16x128xf32>
    %c856 = arith.constant 856 : index
    %c0_52 = arith.constant 0 : index
    %90 = vector.load %arg7[%c856, %c0_52] : memref<1760x128xf32, #tpu.memory_space<vmem>>, vector<64x128xf32>
    %cst_53 = arith.constant dense<0.000000e+00> : vector<16x128xf32>
    %91 = tpu.matmul %82, %90, %cst_53 {dimension_numbers = #tpu.dot_dimension_numbers<[1], [0], [0], [1], [0, 0, 1, 1], [], []>} : vector<16x64xf32>, vector<64x128xf32>, vector<16x128xf32> -> vector<16x128xf32>
    %c920 = arith.constant 920 : index
    %c0_54 = arith.constant 0 : index
    %92 = vector.load %arg7[%c920, %c0_54] : memref<1760x128xf32, #tpu.memory_space<vmem>>, vector<1x128xf32>
    %93 = vector.broadcast %92 : vector<1x128xf32> to vector<16x128xf32>
    %94 = arith.addf %91, %93 : vector<16x128xf32>
    %cst_55 = arith.constant 0.000000e+00 : f32
    %95 = vector.broadcast %cst_55 : f32 to vector<16x128xf32>
    %96 = arith.maximumf %94, %95 : vector<16x128xf32>
    %c928 = arith.constant 928 : index
    %c0_56 = arith.constant 0 : index
    %97 = vector.load %arg7[%c928, %c0_56] : memref<1760x128xf32, #tpu.memory_space<vmem>>, vector<64x128xf32>
    %cst_57 = arith.constant dense<0.000000e+00> : vector<16x128xf32>
    %98 = tpu.matmul %82, %97, %cst_57 {dimension_numbers = #tpu.dot_dimension_numbers<[1], [0], [0], [1], [0, 0, 1, 1], [], []>} : vector<16x64xf32>, vector<64x128xf32>, vector<16x128xf32> -> vector<16x128xf32>
    %c992 = arith.constant 992 : index
    %c0_58 = arith.constant 0 : index
    %99 = vector.load %arg7[%c992, %c0_58] : memref<1760x128xf32, #tpu.memory_space<vmem>>, vector<1x128xf32>
    %100 = vector.broadcast %99 : vector<1x128xf32> to vector<16x128xf32>
    %101 = arith.addf %98, %100 : vector<16x128xf32>
    %cst_59 = arith.constant 0.000000e+00 : f32
    %102 = vector.broadcast %cst_59 : f32 to vector<16x128xf32>
    %103 = arith.maximumf %101, %102 : vector<16x128xf32>
    %c1000 = arith.constant 1000 : index
    %c0_60 = arith.constant 0 : index
    %104 = vector.load %arg7[%c1000, %c0_60] : memref<1760x128xf32, #tpu.memory_space<vmem>>, vector<64x128xf32>
    %cst_61 = arith.constant dense<0.000000e+00> : vector<16x128xf32>
    %105 = tpu.matmul %82, %104, %cst_61 {dimension_numbers = #tpu.dot_dimension_numbers<[1], [0], [0], [1], [0, 0, 1, 1], [], []>} : vector<16x64xf32>, vector<64x128xf32>, vector<16x128xf32> -> vector<16x128xf32>
    %c1064 = arith.constant 1064 : index
    %c0_62 = arith.constant 0 : index
    %106 = vector.load %arg7[%c1064, %c0_62] : memref<1760x128xf32, #tpu.memory_space<vmem>>, vector<1x128xf32>
    %107 = vector.broadcast %106 : vector<1x128xf32> to vector<16x128xf32>
    %108 = arith.addf %105, %107 : vector<16x128xf32>
    %cst_63 = arith.constant 0.000000e+00 : f32
    %109 = vector.broadcast %cst_63 : f32 to vector<16x128xf32>
    %110 = arith.maximumf %108, %109 : vector<16x128xf32>
    %111 = tpu.concatenate %89, %96, %103, %110 in 1 : vector<16x128xf32>, vector<16x128xf32>, vector<16x128xf32>, vector<16x128xf32> -> vector<16x512xf32>
    %c1072 = arith.constant 1072 : index
    %c0_64 = arith.constant 0 : index
    %112 = vector.load %arg7[%c1072, %c0_64] : memref<1760x128xf32, #tpu.memory_space<vmem>>, vector<512x64xf32>
    %cst_65 = arith.constant dense<0.000000e+00> : vector<16x64xf32>
    %113 = tpu.matmul %111, %112, %cst_65 {dimension_numbers = #tpu.dot_dimension_numbers<[1], [0], [0], [1], [0, 0, 1, 1], [], []>} : vector<16x512xf32>, vector<512x64xf32>, vector<16x64xf32> -> vector<16x64xf32>
    %c1584 = arith.constant 1584 : index
    %c0_66 = arith.constant 0 : index
    %114 = vector.load %arg7[%c1584, %c0_66] : memref<1760x128xf32, #tpu.memory_space<vmem>>, vector<1x64xf32>
    %115 = vector.broadcast %114 : vector<1x64xf32> to vector<16x64xf32>
    %116 = arith.addf %113, %115 : vector<16x64xf32>
    %117 = arith.addf %116, %82 : vector<16x64xf32>
    %c0_67 = arith.constant 0 : index
    %c0_68 = arith.constant 0 : index
    %118 = vector.load %arg2[%c0_67, %c0_68] : memref<2x2xf32, #tpu.memory_space<vmem>>, vector<2x2xf32>
    %c1592 = arith.constant 1592 : index
    %c0_69 = arith.constant 0 : index
    %119 = vector.load %arg7[%c1592, %c0_69] : memref<1760x128xf32, #tpu.memory_space<vmem>>, vector<2x32xf32>
    %cst_70 = arith.constant dense<0.000000e+00> : vector<2x32xf32>
    %120 = tpu.matmul %118, %119, %cst_70 {dimension_numbers = #tpu.dot_dimension_numbers<[1], [0], [0], [1], [0, 0, 1, 1], [], []>} : vector<2x2xf32>, vector<2x32xf32>, vector<2x32xf32> -> vector<2x32xf32>
    %c1600 = arith.constant 1600 : index
    %c0_71 = arith.constant 0 : index
    %121 = vector.load %arg7[%c1600, %c0_71] : memref<1760x128xf32, #tpu.memory_space<vmem>>, vector<1x32xf32>
    %122 = vector.broadcast %121 : vector<1x32xf32> to vector<2x32xf32>
    %123 = arith.addf %120, %122 : vector<2x32xf32>
    %c1608 = arith.constant 1608 : index
    %c0_72 = arith.constant 0 : index
    %124 = vector.load %arg7[%c1608, %c0_72] : memref<1760x128xf32, #tpu.memory_space<vmem>>, vector<64x96xf32>
    %cst_73 = arith.constant dense<0.000000e+00> : vector<16x96xf32>
    %125 = tpu.matmul %117, %124, %cst_73 {dimension_numbers = #tpu.dot_dimension_numbers<[1], [0], [0], [1], [0, 0, 1, 1], [], []>} : vector<16x64xf32>, vector<64x96xf32>, vector<16x96xf32> -> vector<16x96xf32>
    %c1672 = arith.constant 1672 : index
    %c0_74 = arith.constant 0 : index
    %126 = vector.load %arg7[%c1672, %c0_74] : memref<1760x128xf32, #tpu.memory_space<vmem>>, vector<1x96xf32>
    %127 = vector.broadcast %126 : vector<1x96xf32> to vector<16x96xf32>
    %128 = arith.addf %125, %127 : vector<16x96xf32>
    %129 = vector.shape_cast %128 : vector<16x96xf32> to vector<2x8x96xf32>
    %c1680 = arith.constant 1680 : index
    %c0_75 = arith.constant 0 : index
    %130 = vector.load %arg7[%c1680, %c0_75] : memref<1760x128xf32, #tpu.memory_space<vmem>>, vector<32x96xf32>
    %c1712 = arith.constant 1712 : index
    %c0_76 = arith.constant 0 : index
    %131 = vector.load %arg7[%c1712, %c0_76] : memref<1760x128xf32, #tpu.memory_space<vmem>>, vector<1x32xf32>
    %c1720 = arith.constant 1720 : index
    %c0_77 = arith.constant 0 : index
    %132 = vector.load %arg7[%c1720, %c0_77] : memref<1760x128xf32, #tpu.memory_space<vmem>>, vector<32x2xf32>
    %c1752 = arith.constant 1752 : index
    %c0_78 = arith.constant 0 : index
    %133 = vector.load %arg7[%c1752, %c0_78] : memref<1760x128xf32, #tpu.memory_space<vmem>>, vector<1x2xf32>
    %cst_79 = arith.constant 0.000000e+00 : f32
    %134 = vector.broadcast %cst_79 : f32 to vector<2x2xf32>
    %135 = vector.extract_strided_slice %129 {offsets = [0, 0, 0], sizes = [2, 1, 96], strides = [1, 1, 1]} : vector<2x8x96xf32> to vector<2x1x96xf32>
    %136 = vector.shape_cast %135 : vector<2x1x96xf32> to vector<2x96xf32>
    %cst_80 = arith.constant dense<0.000000e+00> : vector<2x96xf32>
    %137 = tpu.matmul %123, %130, %cst_80 {dimension_numbers = #tpu.dot_dimension_numbers<[1], [0], [0], [1], [0, 0, 1, 1], [], []>} : vector<2x32xf32>, vector<32x96xf32>, vector<2x96xf32> -> vector<2x96xf32>
    %138 = vector.extract_strided_slice %136 {offsets = [0, 0], sizes = [2, 64], strides = [1, 1]} : vector<2x96xf32> to vector<2x64xf32>
    %139 = vector.extract_strided_slice %137 {offsets = [0, 0], sizes = [2, 64], strides = [1, 1]} : vector<2x96xf32> to vector<2x64xf32>
    %140 = arith.addf %138, %139 : vector<2x64xf32>
    %141 = arith.negf %140 : vector<2x64xf32>
    %142 = math.exp %141 : vector<2x64xf32>
    %cst_81 = arith.constant 1.000000e+00 : f32
    %143 = vector.broadcast %cst_81 : f32 to vector<2x64xf32>
    %144 = arith.addf %143, %142 : vector<2x64xf32>
    %145 = arith.divf %143, %144 : vector<2x64xf32>
    %146 = vector.extract_strided_slice %145 {offsets = [0, 0], sizes = [2, 32], strides = [1, 1]} : vector<2x64xf32> to vector<2x32xf32>
    %147 = vector.extract_strided_slice %145 {offsets = [0, 32], sizes = [2, 32], strides = [1, 1]} : vector<2x64xf32> to vector<2x32xf32>
    %148 = vector.extract_strided_slice %136 {offsets = [0, 64], sizes = [2, 32], strides = [1, 1]} : vector<2x96xf32> to vector<2x32xf32>
    %149 = vector.extract_strided_slice %137 {offsets = [0, 64], sizes = [2, 32], strides = [1, 1]} : vector<2x96xf32> to vector<2x32xf32>
    %150 = vector.broadcast %131 : vector<1x32xf32> to vector<2x32xf32>
    %151 = arith.addf %149, %150 : vector<2x32xf32>
    %152 = arith.mulf %146, %151 : vector<2x32xf32>
    %153 = arith.addf %148, %152 : vector<2x32xf32>
    %154 = math.tanh %153 : vector<2x32xf32>
    %cst_82 = arith.constant 1.000000e+00 : f32
    %155 = vector.broadcast %cst_82 : f32 to vector<2x32xf32>
    %156 = arith.subf %155, %147 : vector<2x32xf32>
    %157 = arith.mulf %156, %154 : vector<2x32xf32>
    %158 = arith.mulf %147, %123 : vector<2x32xf32>
    %159 = arith.addf %157, %158 : vector<2x32xf32>
    %cst_83 = arith.constant dense<0.000000e+00> : vector<2x2xf32>
    %160 = tpu.matmul %159, %132, %cst_83 {dimension_numbers = #tpu.dot_dimension_numbers<[1], [0], [0], [1], [0, 0, 1, 1], [], []>} : vector<2x32xf32>, vector<32x2xf32>, vector<2x2xf32> -> vector<2x2xf32>
    %161 = arith.addf %134, %160 : vector<2x2xf32>
    %162 = vector.broadcast %133 : vector<1x2xf32> to vector<2x2xf32>
    %163 = arith.addf %161, %162 : vector<2x2xf32>
    %164 = vector.extract_strided_slice %129 {offsets = [0, 1, 0], sizes = [2, 1, 96], strides = [1, 1, 1]} : vector<2x8x96xf32> to vector<2x1x96xf32>
    %165 = vector.shape_cast %164 : vector<2x1x96xf32> to vector<2x96xf32>
    %cst_84 = arith.constant dense<0.000000e+00> : vector<2x96xf32>
    %166 = tpu.matmul %159, %130, %cst_84 {dimension_numbers = #tpu.dot_dimension_numbers<[1], [0], [0], [1], [0, 0, 1, 1], [], []>} : vector<2x32xf32>, vector<32x96xf32>, vector<2x96xf32> -> vector<2x96xf32>
    %167 = vector.extract_strided_slice %165 {offsets = [0, 0], sizes = [2, 64], strides = [1, 1]} : vector<2x96xf32> to vector<2x64xf32>
    %168 = vector.extract_strided_slice %166 {offsets = [0, 0], sizes = [2, 64], strides = [1, 1]} : vector<2x96xf32> to vector<2x64xf32>
    %169 = arith.addf %167, %168 : vector<2x64xf32>
    %170 = arith.negf %169 : vector<2x64xf32>
    %171 = math.exp %170 : vector<2x64xf32>
    %cst_85 = arith.constant 1.000000e+00 : f32
    %172 = vector.broadcast %cst_85 : f32 to vector<2x64xf32>
    %173 = arith.addf %172, %171 : vector<2x64xf32>
    %174 = arith.divf %172, %173 : vector<2x64xf32>
    %175 = vector.extract_strided_slice %174 {offsets = [0, 0], sizes = [2, 32], strides = [1, 1]} : vector<2x64xf32> to vector<2x32xf32>
    %176 = vector.extract_strided_slice %174 {offsets = [0, 32], sizes = [2, 32], strides = [1, 1]} : vector<2x64xf32> to vector<2x32xf32>
    %177 = vector.extract_strided_slice %165 {offsets = [0, 64], sizes = [2, 32], strides = [1, 1]} : vector<2x96xf32> to vector<2x32xf32>
    %178 = vector.extract_strided_slice %166 {offsets = [0, 64], sizes = [2, 32], strides = [1, 1]} : vector<2x96xf32> to vector<2x32xf32>
    %179 = vector.broadcast %131 : vector<1x32xf32> to vector<2x32xf32>
    %180 = arith.addf %178, %179 : vector<2x32xf32>
    %181 = arith.mulf %175, %180 : vector<2x32xf32>
    %182 = arith.addf %177, %181 : vector<2x32xf32>
    %183 = math.tanh %182 : vector<2x32xf32>
    %cst_86 = arith.constant 1.000000e+00 : f32
    %184 = vector.broadcast %cst_86 : f32 to vector<2x32xf32>
    %185 = arith.subf %184, %176 : vector<2x32xf32>
    %186 = arith.mulf %185, %183 : vector<2x32xf32>
    %187 = arith.mulf %176, %159 : vector<2x32xf32>
    %188 = arith.addf %186, %187 : vector<2x32xf32>
    %cst_87 = arith.constant dense<0.000000e+00> : vector<2x2xf32>
    %189 = tpu.matmul %188, %132, %cst_87 {dimension_numbers = #tpu.dot_dimension_numbers<[1], [0], [0], [1], [0, 0, 1, 1], [], []>} : vector<2x32xf32>, vector<32x2xf32>, vector<2x2xf32> -> vector<2x2xf32>
    %190 = arith.addf %163, %189 : vector<2x2xf32>
    %191 = vector.broadcast %133 : vector<1x2xf32> to vector<2x2xf32>
    %192 = arith.addf %190, %191 : vector<2x2xf32>
    %193 = vector.extract_strided_slice %129 {offsets = [0, 2, 0], sizes = [2, 1, 96], strides = [1, 1, 1]} : vector<2x8x96xf32> to vector<2x1x96xf32>
    %194 = vector.shape_cast %193 : vector<2x1x96xf32> to vector<2x96xf32>
    %cst_88 = arith.constant dense<0.000000e+00> : vector<2x96xf32>
    %195 = tpu.matmul %188, %130, %cst_88 {dimension_numbers = #tpu.dot_dimension_numbers<[1], [0], [0], [1], [0, 0, 1, 1], [], []>} : vector<2x32xf32>, vector<32x96xf32>, vector<2x96xf32> -> vector<2x96xf32>
    %196 = vector.extract_strided_slice %194 {offsets = [0, 0], sizes = [2, 64], strides = [1, 1]} : vector<2x96xf32> to vector<2x64xf32>
    %197 = vector.extract_strided_slice %195 {offsets = [0, 0], sizes = [2, 64], strides = [1, 1]} : vector<2x96xf32> to vector<2x64xf32>
    %198 = arith.addf %196, %197 : vector<2x64xf32>
    %199 = arith.negf %198 : vector<2x64xf32>
    %200 = math.exp %199 : vector<2x64xf32>
    %cst_89 = arith.constant 1.000000e+00 : f32
    %201 = vector.broadcast %cst_89 : f32 to vector<2x64xf32>
    %202 = arith.addf %201, %200 : vector<2x64xf32>
    %203 = arith.divf %201, %202 : vector<2x64xf32>
    %204 = vector.extract_strided_slice %203 {offsets = [0, 0], sizes = [2, 32], strides = [1, 1]} : vector<2x64xf32> to vector<2x32xf32>
    %205 = vector.extract_strided_slice %203 {offsets = [0, 32], sizes = [2, 32], strides = [1, 1]} : vector<2x64xf32> to vector<2x32xf32>
    %206 = vector.extract_strided_slice %194 {offsets = [0, 64], sizes = [2, 32], strides = [1, 1]} : vector<2x96xf32> to vector<2x32xf32>
    %207 = vector.extract_strided_slice %195 {offsets = [0, 64], sizes = [2, 32], strides = [1, 1]} : vector<2x96xf32> to vector<2x32xf32>
    %208 = vector.broadcast %131 : vector<1x32xf32> to vector<2x32xf32>
    %209 = arith.addf %207, %208 : vector<2x32xf32>
    %210 = arith.mulf %204, %209 : vector<2x32xf32>
    %211 = arith.addf %206, %210 : vector<2x32xf32>
    %212 = math.tanh %211 : vector<2x32xf32>
    %cst_90 = arith.constant 1.000000e+00 : f32
    %213 = vector.broadcast %cst_90 : f32 to vector<2x32xf32>
    %214 = arith.subf %213, %205 : vector<2x32xf32>
    %215 = arith.mulf %214, %212 : vector<2x32xf32>
    %216 = arith.mulf %205, %188 : vector<2x32xf32>
    %217 = arith.addf %215, %216 : vector<2x32xf32>
    %cst_91 = arith.constant dense<0.000000e+00> : vector<2x2xf32>
    %218 = tpu.matmul %217, %132, %cst_91 {dimension_numbers = #tpu.dot_dimension_numbers<[1], [0], [0], [1], [0, 0, 1, 1], [], []>} : vector<2x32xf32>, vector<32x2xf32>, vector<2x2xf32> -> vector<2x2xf32>
    %219 = arith.addf %192, %218 : vector<2x2xf32>
    %220 = vector.broadcast %133 : vector<1x2xf32> to vector<2x2xf32>
    %221 = arith.addf %219, %220 : vector<2x2xf32>
    %222 = vector.extract_strided_slice %129 {offsets = [0, 3, 0], sizes = [2, 1, 96], strides = [1, 1, 1]} : vector<2x8x96xf32> to vector<2x1x96xf32>
    %223 = vector.shape_cast %222 : vector<2x1x96xf32> to vector<2x96xf32>
    %cst_92 = arith.constant dense<0.000000e+00> : vector<2x96xf32>
    %224 = tpu.matmul %217, %130, %cst_92 {dimension_numbers = #tpu.dot_dimension_numbers<[1], [0], [0], [1], [0, 0, 1, 1], [], []>} : vector<2x32xf32>, vector<32x96xf32>, vector<2x96xf32> -> vector<2x96xf32>
    %225 = vector.extract_strided_slice %223 {offsets = [0, 0], sizes = [2, 64], strides = [1, 1]} : vector<2x96xf32> to vector<2x64xf32>
    %226 = vector.extract_strided_slice %224 {offsets = [0, 0], sizes = [2, 64], strides = [1, 1]} : vector<2x96xf32> to vector<2x64xf32>
    %227 = arith.addf %225, %226 : vector<2x64xf32>
    %228 = arith.negf %227 : vector<2x64xf32>
    %229 = math.exp %228 : vector<2x64xf32>
    %cst_93 = arith.constant 1.000000e+00 : f32
    %230 = vector.broadcast %cst_93 : f32 to vector<2x64xf32>
    %231 = arith.addf %230, %229 : vector<2x64xf32>
    %232 = arith.divf %230, %231 : vector<2x64xf32>
    %233 = vector.extract_strided_slice %232 {offsets = [0, 0], sizes = [2, 32], strides = [1, 1]} : vector<2x64xf32> to vector<2x32xf32>
    %234 = vector.extract_strided_slice %232 {offsets = [0, 32], sizes = [2, 32], strides = [1, 1]} : vector<2x64xf32> to vector<2x32xf32>
    %235 = vector.extract_strided_slice %223 {offsets = [0, 64], sizes = [2, 32], strides = [1, 1]} : vector<2x96xf32> to vector<2x32xf32>
    %236 = vector.extract_strided_slice %224 {offsets = [0, 64], sizes = [2, 32], strides = [1, 1]} : vector<2x96xf32> to vector<2x32xf32>
    %237 = vector.broadcast %131 : vector<1x32xf32> to vector<2x32xf32>
    %238 = arith.addf %236, %237 : vector<2x32xf32>
    %239 = arith.mulf %233, %238 : vector<2x32xf32>
    %240 = arith.addf %235, %239 : vector<2x32xf32>
    %241 = math.tanh %240 : vector<2x32xf32>
    %cst_94 = arith.constant 1.000000e+00 : f32
    %242 = vector.broadcast %cst_94 : f32 to vector<2x32xf32>
    %243 = arith.subf %242, %234 : vector<2x32xf32>
    %244 = arith.mulf %243, %241 : vector<2x32xf32>
    %245 = arith.mulf %234, %217 : vector<2x32xf32>
    %246 = arith.addf %244, %245 : vector<2x32xf32>
    %cst_95 = arith.constant dense<0.000000e+00> : vector<2x2xf32>
    %247 = tpu.matmul %246, %132, %cst_95 {dimension_numbers = #tpu.dot_dimension_numbers<[1], [0], [0], [1], [0, 0, 1, 1], [], []>} : vector<2x32xf32>, vector<32x2xf32>, vector<2x2xf32> -> vector<2x2xf32>
    %248 = arith.addf %221, %247 : vector<2x2xf32>
    %249 = vector.broadcast %133 : vector<1x2xf32> to vector<2x2xf32>
    %250 = arith.addf %248, %249 : vector<2x2xf32>
    %251 = vector.extract_strided_slice %129 {offsets = [0, 4, 0], sizes = [2, 1, 96], strides = [1, 1, 1]} : vector<2x8x96xf32> to vector<2x1x96xf32>
    %252 = vector.shape_cast %251 : vector<2x1x96xf32> to vector<2x96xf32>
    %cst_96 = arith.constant dense<0.000000e+00> : vector<2x96xf32>
    %253 = tpu.matmul %246, %130, %cst_96 {dimension_numbers = #tpu.dot_dimension_numbers<[1], [0], [0], [1], [0, 0, 1, 1], [], []>} : vector<2x32xf32>, vector<32x96xf32>, vector<2x96xf32> -> vector<2x96xf32>
    %254 = vector.extract_strided_slice %252 {offsets = [0, 0], sizes = [2, 64], strides = [1, 1]} : vector<2x96xf32> to vector<2x64xf32>
    %255 = vector.extract_strided_slice %253 {offsets = [0, 0], sizes = [2, 64], strides = [1, 1]} : vector<2x96xf32> to vector<2x64xf32>
    %256 = arith.addf %254, %255 : vector<2x64xf32>
    %257 = arith.negf %256 : vector<2x64xf32>
    %258 = math.exp %257 : vector<2x64xf32>
    %cst_97 = arith.constant 1.000000e+00 : f32
    %259 = vector.broadcast %cst_97 : f32 to vector<2x64xf32>
    %260 = arith.addf %259, %258 : vector<2x64xf32>
    %261 = arith.divf %259, %260 : vector<2x64xf32>
    %262 = vector.extract_strided_slice %261 {offsets = [0, 0], sizes = [2, 32], strides = [1, 1]} : vector<2x64xf32> to vector<2x32xf32>
    %263 = vector.extract_strided_slice %261 {offsets = [0, 32], sizes = [2, 32], strides = [1, 1]} : vector<2x64xf32> to vector<2x32xf32>
    %264 = vector.extract_strided_slice %252 {offsets = [0, 64], sizes = [2, 32], strides = [1, 1]} : vector<2x96xf32> to vector<2x32xf32>
    %265 = vector.extract_strided_slice %253 {offsets = [0, 64], sizes = [2, 32], strides = [1, 1]} : vector<2x96xf32> to vector<2x32xf32>
    %266 = vector.broadcast %131 : vector<1x32xf32> to vector<2x32xf32>
    %267 = arith.addf %265, %266 : vector<2x32xf32>
    %268 = arith.mulf %262, %267 : vector<2x32xf32>
    %269 = arith.addf %264, %268 : vector<2x32xf32>
    %270 = math.tanh %269 : vector<2x32xf32>
    %cst_98 = arith.constant 1.000000e+00 : f32
    %271 = vector.broadcast %cst_98 : f32 to vector<2x32xf32>
    %272 = arith.subf %271, %263 : vector<2x32xf32>
    %273 = arith.mulf %272, %270 : vector<2x32xf32>
    %274 = arith.mulf %263, %246 : vector<2x32xf32>
    %275 = arith.addf %273, %274 : vector<2x32xf32>
    %cst_99 = arith.constant dense<0.000000e+00> : vector<2x2xf32>
    %276 = tpu.matmul %275, %132, %cst_99 {dimension_numbers = #tpu.dot_dimension_numbers<[1], [0], [0], [1], [0, 0, 1, 1], [], []>} : vector<2x32xf32>, vector<32x2xf32>, vector<2x2xf32> -> vector<2x2xf32>
    %277 = arith.addf %250, %276 : vector<2x2xf32>
    %278 = vector.broadcast %133 : vector<1x2xf32> to vector<2x2xf32>
    %279 = arith.addf %277, %278 : vector<2x2xf32>
    %280 = vector.extract_strided_slice %129 {offsets = [0, 5, 0], sizes = [2, 1, 96], strides = [1, 1, 1]} : vector<2x8x96xf32> to vector<2x1x96xf32>
    %281 = vector.shape_cast %280 : vector<2x1x96xf32> to vector<2x96xf32>
    %cst_100 = arith.constant dense<0.000000e+00> : vector<2x96xf32>
    %282 = tpu.matmul %275, %130, %cst_100 {dimension_numbers = #tpu.dot_dimension_numbers<[1], [0], [0], [1], [0, 0, 1, 1], [], []>} : vector<2x32xf32>, vector<32x96xf32>, vector<2x96xf32> -> vector<2x96xf32>
    %283 = vector.extract_strided_slice %281 {offsets = [0, 0], sizes = [2, 64], strides = [1, 1]} : vector<2x96xf32> to vector<2x64xf32>
    %284 = vector.extract_strided_slice %282 {offsets = [0, 0], sizes = [2, 64], strides = [1, 1]} : vector<2x96xf32> to vector<2x64xf32>
    %285 = arith.addf %283, %284 : vector<2x64xf32>
    %286 = arith.negf %285 : vector<2x64xf32>
    %287 = math.exp %286 : vector<2x64xf32>
    %cst_101 = arith.constant 1.000000e+00 : f32
    %288 = vector.broadcast %cst_101 : f32 to vector<2x64xf32>
    %289 = arith.addf %288, %287 : vector<2x64xf32>
    %290 = arith.divf %288, %289 : vector<2x64xf32>
    %291 = vector.extract_strided_slice %290 {offsets = [0, 0], sizes = [2, 32], strides = [1, 1]} : vector<2x64xf32> to vector<2x32xf32>
    %292 = vector.extract_strided_slice %290 {offsets = [0, 32], sizes = [2, 32], strides = [1, 1]} : vector<2x64xf32> to vector<2x32xf32>
    %293 = vector.extract_strided_slice %281 {offsets = [0, 64], sizes = [2, 32], strides = [1, 1]} : vector<2x96xf32> to vector<2x32xf32>
    %294 = vector.extract_strided_slice %282 {offsets = [0, 64], sizes = [2, 32], strides = [1, 1]} : vector<2x96xf32> to vector<2x32xf32>
    %295 = vector.broadcast %131 : vector<1x32xf32> to vector<2x32xf32>
    %296 = arith.addf %294, %295 : vector<2x32xf32>
    %297 = arith.mulf %291, %296 : vector<2x32xf32>
    %298 = arith.addf %293, %297 : vector<2x32xf32>
    %299 = math.tanh %298 : vector<2x32xf32>
    %cst_102 = arith.constant 1.000000e+00 : f32
    %300 = vector.broadcast %cst_102 : f32 to vector<2x32xf32>
    %301 = arith.subf %300, %292 : vector<2x32xf32>
    %302 = arith.mulf %301, %299 : vector<2x32xf32>
    %303 = arith.mulf %292, %275 : vector<2x32xf32>
    %304 = arith.addf %302, %303 : vector<2x32xf32>
    %cst_103 = arith.constant dense<0.000000e+00> : vector<2x2xf32>
    %305 = tpu.matmul %304, %132, %cst_103 {dimension_numbers = #tpu.dot_dimension_numbers<[1], [0], [0], [1], [0, 0, 1, 1], [], []>} : vector<2x32xf32>, vector<32x2xf32>, vector<2x2xf32> -> vector<2x2xf32>
    %306 = arith.addf %279, %305 : vector<2x2xf32>
    %307 = vector.broadcast %133 : vector<1x2xf32> to vector<2x2xf32>
    %308 = arith.addf %306, %307 : vector<2x2xf32>
    %309 = vector.extract_strided_slice %129 {offsets = [0, 6, 0], sizes = [2, 1, 96], strides = [1, 1, 1]} : vector<2x8x96xf32> to vector<2x1x96xf32>
    %310 = vector.shape_cast %309 : vector<2x1x96xf32> to vector<2x96xf32>
    %cst_104 = arith.constant dense<0.000000e+00> : vector<2x96xf32>
    %311 = tpu.matmul %304, %130, %cst_104 {dimension_numbers = #tpu.dot_dimension_numbers<[1], [0], [0], [1], [0, 0, 1, 1], [], []>} : vector<2x32xf32>, vector<32x96xf32>, vector<2x96xf32> -> vector<2x96xf32>
    %312 = vector.extract_strided_slice %310 {offsets = [0, 0], sizes = [2, 64], strides = [1, 1]} : vector<2x96xf32> to vector<2x64xf32>
    %313 = vector.extract_strided_slice %311 {offsets = [0, 0], sizes = [2, 64], strides = [1, 1]} : vector<2x96xf32> to vector<2x64xf32>
    %314 = arith.addf %312, %313 : vector<2x64xf32>
    %315 = arith.negf %314 : vector<2x64xf32>
    %316 = math.exp %315 : vector<2x64xf32>
    %cst_105 = arith.constant 1.000000e+00 : f32
    %317 = vector.broadcast %cst_105 : f32 to vector<2x64xf32>
    %318 = arith.addf %317, %316 : vector<2x64xf32>
    %319 = arith.divf %317, %318 : vector<2x64xf32>
    %320 = vector.extract_strided_slice %319 {offsets = [0, 0], sizes = [2, 32], strides = [1, 1]} : vector<2x64xf32> to vector<2x32xf32>
    %321 = vector.extract_strided_slice %319 {offsets = [0, 32], sizes = [2, 32], strides = [1, 1]} : vector<2x64xf32> to vector<2x32xf32>
    %322 = vector.extract_strided_slice %310 {offsets = [0, 64], sizes = [2, 32], strides = [1, 1]} : vector<2x96xf32> to vector<2x32xf32>
    %323 = vector.extract_strided_slice %311 {offsets = [0, 64], sizes = [2, 32], strides = [1, 1]} : vector<2x96xf32> to vector<2x32xf32>
    %324 = vector.broadcast %131 : vector<1x32xf32> to vector<2x32xf32>
    %325 = arith.addf %323, %324 : vector<2x32xf32>
    %326 = arith.mulf %320, %325 : vector<2x32xf32>
    %327 = arith.addf %322, %326 : vector<2x32xf32>
    %328 = math.tanh %327 : vector<2x32xf32>
    %cst_106 = arith.constant 1.000000e+00 : f32
    %329 = vector.broadcast %cst_106 : f32 to vector<2x32xf32>
    %330 = arith.subf %329, %321 : vector<2x32xf32>
    %331 = arith.mulf %330, %328 : vector<2x32xf32>
    %332 = arith.mulf %321, %304 : vector<2x32xf32>
    %333 = arith.addf %331, %332 : vector<2x32xf32>
    %cst_107 = arith.constant dense<0.000000e+00> : vector<2x2xf32>
    %334 = tpu.matmul %333, %132, %cst_107 {dimension_numbers = #tpu.dot_dimension_numbers<[1], [0], [0], [1], [0, 0, 1, 1], [], []>} : vector<2x32xf32>, vector<32x2xf32>, vector<2x2xf32> -> vector<2x2xf32>
    %335 = arith.addf %308, %334 : vector<2x2xf32>
    %336 = vector.broadcast %133 : vector<1x2xf32> to vector<2x2xf32>
    %337 = arith.addf %335, %336 : vector<2x2xf32>
    %338 = vector.extract_strided_slice %129 {offsets = [0, 7, 0], sizes = [2, 1, 96], strides = [1, 1, 1]} : vector<2x8x96xf32> to vector<2x1x96xf32>
    %339 = vector.shape_cast %338 : vector<2x1x96xf32> to vector<2x96xf32>
    %cst_108 = arith.constant dense<0.000000e+00> : vector<2x96xf32>
    %340 = tpu.matmul %333, %130, %cst_108 {dimension_numbers = #tpu.dot_dimension_numbers<[1], [0], [0], [1], [0, 0, 1, 1], [], []>} : vector<2x32xf32>, vector<32x96xf32>, vector<2x96xf32> -> vector<2x96xf32>
    %341 = vector.extract_strided_slice %339 {offsets = [0, 0], sizes = [2, 64], strides = [1, 1]} : vector<2x96xf32> to vector<2x64xf32>
    %342 = vector.extract_strided_slice %340 {offsets = [0, 0], sizes = [2, 64], strides = [1, 1]} : vector<2x96xf32> to vector<2x64xf32>
    %343 = arith.addf %341, %342 : vector<2x64xf32>
    %344 = arith.negf %343 : vector<2x64xf32>
    %345 = math.exp %344 : vector<2x64xf32>
    %cst_109 = arith.constant 1.000000e+00 : f32
    %346 = vector.broadcast %cst_109 : f32 to vector<2x64xf32>
    %347 = arith.addf %346, %345 : vector<2x64xf32>
    %348 = arith.divf %346, %347 : vector<2x64xf32>
    %349 = vector.extract_strided_slice %348 {offsets = [0, 0], sizes = [2, 32], strides = [1, 1]} : vector<2x64xf32> to vector<2x32xf32>
    %350 = vector.extract_strided_slice %348 {offsets = [0, 32], sizes = [2, 32], strides = [1, 1]} : vector<2x64xf32> to vector<2x32xf32>
    %351 = vector.extract_strided_slice %339 {offsets = [0, 64], sizes = [2, 32], strides = [1, 1]} : vector<2x96xf32> to vector<2x32xf32>
    %352 = vector.extract_strided_slice %340 {offsets = [0, 64], sizes = [2, 32], strides = [1, 1]} : vector<2x96xf32> to vector<2x32xf32>
    %353 = vector.broadcast %131 : vector<1x32xf32> to vector<2x32xf32>
    %354 = arith.addf %352, %353 : vector<2x32xf32>
    %355 = arith.mulf %349, %354 : vector<2x32xf32>
    %356 = arith.addf %351, %355 : vector<2x32xf32>
    %357 = math.tanh %356 : vector<2x32xf32>
    %cst_110 = arith.constant 1.000000e+00 : f32
    %358 = vector.broadcast %cst_110 : f32 to vector<2x32xf32>
    %359 = arith.subf %358, %350 : vector<2x32xf32>
    %360 = arith.mulf %359, %357 : vector<2x32xf32>
    %361 = arith.mulf %350, %333 : vector<2x32xf32>
    %362 = arith.addf %360, %361 : vector<2x32xf32>
    %cst_111 = arith.constant dense<0.000000e+00> : vector<2x2xf32>
    %363 = tpu.matmul %362, %132, %cst_111 {dimension_numbers = #tpu.dot_dimension_numbers<[1], [0], [0], [1], [0, 0, 1, 1], [], []>} : vector<2x32xf32>, vector<32x2xf32>, vector<2x2xf32> -> vector<2x2xf32>
    %364 = arith.addf %337, %363 : vector<2x2xf32>
    %365 = vector.broadcast %133 : vector<1x2xf32> to vector<2x2xf32>
    %366 = arith.addf %364, %365 : vector<2x2xf32>
    %367 = tpu.concatenate %163, %192, %221, %250, %279, %308, %337, %366 in 1 : vector<2x2xf32>, vector<2x2xf32>, vector<2x2xf32>, vector<2x2xf32>, vector<2x2xf32>, vector<2x2xf32>, vector<2x2xf32>, vector<2x2xf32> -> vector<2x16xf32>
    %c0_112 = arith.constant 0 : index
    %c0_113 = arith.constant 0 : index
    %368 = vector.load %arg8[%c0_112, %c0_113] : memref<2x16xf32, #tpu.memory_space<vmem>>, vector<2x16xf32>
    tpu.vector_store %arg8[%c0_112, %c0_113], %367 {strides = array<i32>} : memref<2x16xf32, #tpu.memory_space<vmem>>, vector<2x16xf32>,
    return
  }
  func.func @transform_0(%arg0: i32) -> (i32, i32) {
    %c0_i32 = arith.constant 0 : i32
    %c0_i32_0 = arith.constant 0 : i32
    %c0_i32_1 = arith.constant 0 : i32
    return %c0_i32, %c0_i32_0 : i32, i32
  }
  func.func @transform_1(%arg0: i32) -> (i32, i32) {
    %c0_i32 = arith.constant 0 : i32
    %c0_i32_0 = arith.constant 0 : i32
    %c0_i32_1 = arith.constant 0 : i32
    return %c0_i32, %c0_i32_0 : i32, i32
  }
  func.func @transform_2(%arg0: i32) -> (i32, i32) {
    %c0_i32 = arith.constant 0 : i32
    %c0_i32_0 = arith.constant 0 : i32
    %c0_i32_1 = arith.constant 0 : i32
    return %c0_i32, %c0_i32_0 : i32, i32
  }
  func.func @transform_3(%arg0: i32) -> (i32, i32) {
    %c0_i32 = arith.constant 0 : i32
    %c0_i32_0 = arith.constant 0 : i32
    %c0_i32_1 = arith.constant 0 : i32
    return %c0_i32, %c0_i32_0 : i32, i32
  }
  func.func @transform_4(%arg0: i32) -> (i32, i32) {
    %c0_i32 = arith.constant 0 : i32
    %c0_i32_0 = arith.constant 0 : i32
    %c0_i32_1 = arith.constant 0 : i32
    return %c0_i32, %c0_i32_0 : i32, i32
  }
  func.func @transform_5(%arg0: i32) -> (i32, i32) {
    %c0_i32 = arith.constant 0 : i32
    %c0_i32_0 = arith.constant 0 : i32
    %c0_i32_1 = arith.constant 0 : i32
    return %c0_i32, %c0_i32_0 : i32, i32
  }
  func.func @transform_6(%arg0: i32) -> (i32, i32) {
    %c0_i32 = arith.constant 0 : i32
    %c0_i32_0 = arith.constant 0 : i32
    %c0_i32_1 = arith.constant 0 : i32
    return %c0_i32, %c0_i32_0 : i32, i32
  }
  func.func @transform_7(%arg0: i32) -> (i32, i32) {
    %c0_i32 = arith.constant 0 : i32
    %c0_i32_0 = arith.constant 0 : i32
    %c0_i32_1 = arith.constant 0 : i32
    return %c0_i32, %c0_i32_0 : i32, i32
  }
}

</mosaic_0001>

<llo_original>
// kernel: mvadapt_forward.1
$region0: #{mvadapt_forward.1}
  #allocation0 [shape = 'u32[]', space=smem, size = 0x4, offset = 0x4, fixed_abs, tag = 'smem constant byte address 0x4 - core index']
  #allocation1 [shape = 'u32[144,128]{1,0:T(1,128)}', space=vmem, size = 0x12000, scoped, tag = 'internal scratch']
  %s0 = inlined_call_operand.vmem [shape: f32[16,64], index: 0, kind: input, shape index: {}]
  %s1 = inlined_call_operand.vmem [shape: f32[2,2], index: 1, kind: input, shape index: {}]
  %s2 = inlined_call_operand.hbm [shape: f32[2,18], index: 2, kind: input, shape index: {}]
  %s3 = inlined_call_operand.vmem [shape: f32[2,27], index: 3, kind: input, shape index: {}]
  %s4 = inlined_call_operand.vmem [shape: f32[16,64], index: 4, kind: input, shape index: {}]
  %s5 = inlined_call_operand.vmem [shape: f32[16,2], index: 5, kind: input, shape index: {}]
  %s6 = inlined_call_operand.hbm [shape: f32[1760,128], index: 6, kind: input, shape index: {}]
  %s7 = inlined_call_operand.hbm [shape: f32[2,16], index: 7, kind: output, shape index: {}]
  %s8 = sld [smem:[#allocation0]]
  $region46: #{mvadapt_forward.1} parent=0
    _
  %s10 = ssub.s32 1, %s8
  %s11 = scalar_select 0, %s10, %s8
  $region1: #{mvadapt_forward.1} parent=0
    #allocation2 [shape = 'u8[1024]{0}', space=vmem, size = 0x400, scoped, tag = 'input window, operand 2, single buffered']
    #allocation3 [shape = 's32[1]{0}', space=sflag, size = 0x4, scoped, tag = 'scoped memory for mvadapt_forward.1']
    #allocation4 [shape = 's32[1]{0}', space=sflag, size = 0x4, scoped, tag = 'scoped memory for mvadapt_forward.1']
    #allocation5 [shape = 'u8[901120]{0}', space=vmem, size = 0xdc000, scoped, tag = 'input window, operand 6, single buffered']
    #allocation6 [shape = 's32[1]{0}', space=sflag, size = 0x4, scoped, tag = 'scoped memory for mvadapt_forward.1']
    #allocation7 [shape = 'u8[1024]{0}', space=vmem, size = 0x400, scoped, tag = 'output window, operand 0, single buffered']
    %12 = vsyncpa [#allocation3], 0
    %13 = vsyncpa [#allocation6], 0
    %14 = vsyncpa [#allocation4], 0
    // Predicated region
    $region2: #{mvadapt_forward.1} parent=1 // pred_check
      _
    $region3: #{mvadapt_forward.1} parent=1 // pred_check_branch
      %16 = sbr.rel (0) target = $region5
    $region4: #{mvadapt_forward.1} parent=1 // pred_region
      _
    $region5: #{mvadapt_forward.1} parent=1 // pred_fallthru
      _
    // Predicated region
    $region6: #{mvadapt_forward.1} parent=1 // pred_check
      _
    $region7: #{mvadapt_forward.1} parent=1 // pred_check_branch
      %18 = sbr.rel (0) target = $region9
    $region8: #{mvadapt_forward.1} parent=1 // pred_region
      _
    $region9: #{mvadapt_forward.1} parent=1 // pred_fallthru
      _
    // Predicated region
    $region10: #{mvadapt_forward.1} parent=1 // pred_check
      _
    $region11: #{mvadapt_forward.1} parent=1 // pred_check_branch
      %20 = sbr.rel (0) target = $region13
    $region12: #{mvadapt_forward.1} parent=1 // pred_region
      %s22 = ssub.s32 32, 32
      %23 = vsyncadd [#allocation3], %s22
      %s25 = sshll.u32 [#allocation2], 4
      %s26 = int_to_ptr.vmem [resolvable:$true] %s25
      %28 = dma.hbm_to_vmem [thread:$0]  %s2, 32, %s26, [#allocation3]
    $region13: #{mvadapt_forward.1} parent=1 // pred_fallthru
      _
    // Predicated region
    $region14: #{mvadapt_forward.1} parent=1 // pred_check
      _
    $region15: #{mvadapt_forward.1} parent=1 // pred_check_branch
      %30 = sbr.rel (0) target = $region17
    $region16: #{mvadapt_forward.1} parent=1 // pred_region
      _
    $region17: #{mvadapt_forward.1} parent=1 // pred_fallthru
      _
    // Predicated region
    $region18: #{mvadapt_forward.1} parent=1 // pred_check
      _
    $region19: #{mvadapt_forward.1} parent=1 // pred_check_branch
      %32 = sbr.rel (0) target = $region21
    $region20: #{mvadapt_forward.1} parent=1 // pred_region
      _
    $region21: #{mvadapt_forward.1} parent=1 // pred_fallthru
      _
    // Predicated region
    $region22: #{mvadapt_forward.1} parent=1 // pred_check
      _
    $region23: #{mvadapt_forward.1} parent=1 // pred_check_branch
      %34 = sbr.rel (0) target = $region25
    $region24: #{mvadapt_forward.1} parent=1 // pred_region
      _
    $region25: #{mvadapt_forward.1} parent=1 // pred_fallthru
      _
    // Predicated region
    $region26: #{mvadapt_forward.1} parent=1 // pred_check
      _
    $region27: #{mvadapt_forward.1} parent=1 // pred_check_branch
      %36 = sbr.rel (0) target = $region29
    $region28: #{mvadapt_forward.1} parent=1 // pred_region
      %s38 = ssub.s32 28160, 28160
      %39 = vsyncadd [#allocation6], %s38
      %s40 = sshll.u32 [#allocation5], 4
      %s41 = int_to_ptr.vmem [resolvable:$true] %s40
      %46 = dma.hbm_to_vmem [thread:$0]  %s6, 28160, %s41, [#allocation6], 128, 128, 8
    $region29: #{mvadapt_forward.1} parent=1 // pred_fallthru
      _
    // Predicated region
    $region30: #{mvadapt_forward.1} parent=1 // pred_check
      _
    $region31: #{mvadapt_forward.1} parent=1 // pred_check_branch
      %48 = sbr.rel (0) target = $region33
    $region32: #{mvadapt_forward.1} parent=1 // pred_region
      %49 = dma.done [#allocation3], 32
    $region33: #{mvadapt_forward.1} parent=1 // pred_fallthru
      _
    // Predicated region
    $region34: #{mvadapt_forward.1} parent=1 // pred_check
      _
    $region35: #{mvadapt_forward.1} parent=1 // pred_check_branch
      %51 = sbr.rel (0) target = $region37
    $region36: #{mvadapt_forward.1} parent=1 // pred_region
      %52 = dma.done [#allocation6], 28160
    $region37: #{mvadapt_forward.1} parent=1 // pred_fallthru
      _
    %v53 = vld [vmem:[%s3] sm:$0x3]
    %v54 = vld [vmem:[#allocation5] sm:$0xff]
    %v55 = vld [vmem:[#allocation5 + $0x8] sm:$0xff]
    %v56 = vld [vmem:[#allocation5 + $0x10] sm:$0xff]
    %v57 = vld [vmem:[#allocation5 + $0x18] sm:$0x7]
    %v58 = vld [vmem:[#allocation5 + $0x20] sm:$0x1]
    %v59 = vlaneseq
    %v60 = vshrl.u32 %v59, 7
    %v61 = vsub.s32 0, %v60
    %v62 = vrot.slane %v58, %v61
    %vm63 = vcmask 220160
    %v65 = vsel %vm63, %v53, 0
    %vm67 = vcmask 1042432
    %v69 = vsel %vm67, %v57, 0
    %71 = vmatprep.subr.mxu0 0.0
    %72 = vmatpush1.msra.mxu0 %v54
    %73 = vmatprep.subr.mxu0 0.0
    %74 = vmatpush1.msra.mxu0 %v55
    %75 = vmatprep.subr.mxu0 0.0
    %76 = vmatpush1.msra.mxu0 %v56
    %77 = vmatprep.subr.mxu0 0.0
    %78 = vmatpush1.msra.mxu0 %v69
    %79 = vmatprep.subr.mxu0 0.0
    %80 = vmatpush1.msra.mxu0 0.0
    %81 = vmatprep.subr.mxu0 0.0
    %82 = vmatpush1.msra.mxu0 0.0
    %83 = vmatprep.subr.mxu0 0.0
    %84 = vmatpush1.msra.mxu0 0.0
    %85 = vmatprep.subr.mxu0 0.0
    %86 = vmatpush1.msra.mxu0 0.0
    %87 = vmatprep.subr.mxu0 0.0
    %88 = vmatpush1.msra.mxu0 0.0
    %89 = vmatprep.subr.mxu0 0.0
    %90 = vmatpush1.msra.mxu0 0.0
    %91 = vmatprep.subr.mxu0 0.0
    %92 = vmatpush1.msra.mxu0 0.0
    %93 = vmatprep.subr.mxu0 0.0
    %94 = vmatpush1.msra.mxu0 0.0
    %95 = vmatprep.subr.mxu0 0.0
    %96 = vmatpush1.msra.mxu0 0.0
    %97 = vmatprep.subr.mxu0 0.0
    %98 = vmatpush1.msra.mxu0 0.0
    %99 = vmatprep.subr.mxu0 0.0
    %100 = vmatpush1.msra.mxu0 0.0
    %101 = vmatprep.subr.mxu0 0.0
    %102 = vmatpush1.msra.mxu0 0.0
    %103 = vmatprep.subr.mxu0 0.0
    %104 = vmatpush1.msra.mxu0 0.0
    %105 = vmatprep.subr.mxu0 0.0
    %106 = vmatpush1.msra.mxu0 0.0
    %107 = vmatprep.subr.mxu0 0.0
    %108 = vmatpush1.msra.mxu0 0.0
    %109 = vmatprep.subr.mxu0 0.0
    %110 = vmatpush1.msra.mxu0 0.0
    %111 = vmatprep.subr.mxu0 0.0
    %112 = vmatpush1.msra.mxu0 0.0
    %113 = vmatprep.subr.mxu0 0.0
    %114 = vmatpush1.msra.mxu0 0.0
    %115 = vmatprep.subr.mxu0 0.0
    %116 = vmatpush1.msra.mxu0 0.0
    %117 = vmatprep.subr.mxu0 0.0
    %118 = vmatpush1.msra.mxu0 0.0
    %119 = vmatprep.subr.mxu0 0.0
    %120 = vmatpush1.msra.mxu0 0.0
    %121 = vmatprep.subr.mxu0 0.0
    %122 = vmatpush1.msra.mxu0 0.0
    %123 = vmatprep.subr.mxu0 0.0
    %124 = vmatpush1.msra.mxu0 0.0
    %125 = vmatprep.subr.mxu0 0.0
    %126 = vmatpush1.msra.mxu0 0.0
    %127 = vmatprep.subr.mxu0 0.0
    %128 = vmatpush1.msra.mxu0 0.0
    %129 = vmatprep.subr.mxu0 0.0
    %130 = vmatpush1.msra.mxu0 0.0
    %131 = vmatprep.subr.mxu0 0.0
    %132 = vmatpush1.msra.mxu0 0.0
    %133 = vmatprep.subr.mxu0 0.0
    %134 = vmatpush1.msra.mxu0 0.0
    %135 = vmatprep.mubr.f32.mxu0 0.0
    %136 = vmatmul.mubr.f32.gmra.mrb[0].mxu0 %v65
    %v137 = vpop.f32.mrb[0].mxu0
    %v138 = vadd.f32 %v62, %v137
    %v139 = vpop.f32.mrb[0].mxu0
    %140 = vdwg.mxu0
    %v141 = vmax.f32 %v138, 0.0
    %v142 = vld [vmem:[#allocation5 + $0x28] sm:$0xff]
    %v143 = vld [vmem:[#allocation5 + $0x30] sm:$0xff]
    %v144 = vld [vmem:[#allocation5 + $0x38] sm:$0xff]
    %v145 = vld [vmem:[#allocation5 + $0x40] sm:$0xff]
    %v146 = vld [vmem:[#allocation5 + $0x48] sm:$0xff]
    %v147 = vld [vmem:[#allocation5 + $0x50] sm:$0xff]
    %v148 = vld [vmem:[#allocation5 + $0x58] sm:$0xff]
    %v149 = vld [vmem:[#allocation5 + $0x60] sm:$0xff]
    %v150 = vld [vmem:[#allocation5 + $0x68] sm:$0xff]
    %v151 = vld [vmem:[#allocation5 + $0x70] sm:$0xff]
    %v152 = vld [vmem:[#allocation5 + $0x78] sm:$0xff]
    %v153 = vld [vmem:[#allocation5 + $0x80] sm:$0xff]
    %v154 = vld [vmem:[#allocation5 + $0x88] sm:$0xff]
    %v155 = vld [vmem:[#allocation5 + $0x90] sm:$0xff]
    %v156 = vld [vmem:[#allocation5 + $0x98] sm:$0xff]
    %v157 = vld [vmem:[#allocation5 + $0xa0] sm:$0xff]
    %v158 = vld [vmem:[#allocation5 + $0xa8] sm:$0x1]
    %v159 = vlaneseq
    %v160 = vshrl.u32 %v159, 7
    %v161 = vsub.s32 0, %v160
    %v162 = vrot.slane %v158, %v161
    %163 = vmatprep.subr.mxu0 0.0
    %164 = vmatpush1.msra.mxu0 %v142
    %165 = vmatprep.subr.mxu0 0.0
    %166 = vmatpush1.msra.mxu0 %v143
    %167 = vmatprep.subr.mxu0 0.0
    %168 = vmatpush1.msra.mxu0 %v144
    %169 = vmatprep.subr.mxu0 0.0
    %170 = vmatpush1.msra.mxu0 %v145
    %171 = vmatprep.subr.mxu0 0.0
    %172 = vmatpush1.msra.mxu0 %v146
    %173 = vmatprep.subr.mxu0 0.0
    %174 = vmatpush1.msra.mxu0 %v147
    %175 = vmatprep.subr.mxu0 0.0
    %176 = vmatpush1.msra.mxu0 %v148
    %177 = vmatprep.subr.mxu0 0.0
    %178 = vmatpush1.msra.mxu0 %v149
    %179 = vmatprep.subr.mxu0 0.0
    %180 = vmatpush1.msra.mxu0 %v150
    %181 = vmatprep.subr.mxu0 0.0
    %182 = vmatpush1.msra.mxu0 %v151
    %183 = vmatprep.subr.mxu0 0.0
    %184 = vmatpush1.msra.mxu0 %v152
    %185 = vmatprep.subr.mxu0 0.0
    %186 = vmatpush1.msra.mxu0 %v153
    %187 = vmatprep.subr.mxu0 0.0
    %188 = vmatpush1.msra.mxu0 %v154
    %189 = vmatprep.subr.mxu0 0.0
    %190 = vmatpush1.msra.mxu0 %v155
    %191 = vmatprep.subr.mxu0 0.0
    %192 = vmatpush1.msra.mxu0 %v156
    %193 = vmatprep.subr.mxu0 0.0
    %194 = vmatpush1.msra.mxu0 %v157
    %195 = vmatprep.subr.mxu0 0.0
    %196 = vmatpush1.msra.mxu0 0.0
    %197 = vmatprep.subr.mxu0 0.0
    %198 = vmatpush1.msra.mxu0 0.0
    %199 = vmatprep.subr.mxu0 0.0
    %200 = vmatpush1.msra.mxu0 0.0
    %201 = vmatprep.subr.mxu0 0.0
    %202 = vmatpush1.msra.mxu0 0.0
    %203 = vmatprep.subr.mxu0 0.0
    %204 = vmatpush1.msra.mxu0 0.0
    %205 = vmatprep.subr.mxu0 0.0
    %206 = vmatpush1.msra.mxu0 0.0
    %207 = vmatprep.subr.mxu0 0.0
    %208 = vmatpush1.msra.mxu0 0.0
    %209 = vmatprep.subr.mxu0 0.0
    %210 = vmatpush1.msra.mxu0 0.0
    %211 = vmatprep.subr.mxu0 0.0
    %212 = vmatpush1.msra.mxu0 0.0
    %213 = vmatprep.subr.mxu0 0.0
    %214 = vmatpush1.msra.mxu0 0.0
    %215 = vmatprep.subr.mxu0 0.0
    %216 = vmatpush1.msra.mxu0 0.0
    %217 = vmatprep.subr.mxu0 0.0
    %218 = vmatpush1.msra.mxu0 0.0
    %219 = vmatprep.subr.mxu0 0.0
    %220 = vmatpush1.msra.mxu0 0.0
    %221 = vmatprep.subr.mxu0 0.0
    %222 = vmatpush1.msra.mxu0 0.0
    %223 = vmatprep.subr.mxu0 0.0
    %224 = vmatpush1.msra.mxu0 0.0
    %225 = vmatprep.subr.mxu0 0.0
    %226 = vmatpush1.msra.mxu0 0.0
    %227 = vmatprep.mubr.f32.mxu0 0.0
    %228 = vmatmul.mubr.f32.gmra.mrb[0].mxu0 %v141
    %v229 = vpop.f32.mrb[0].mxu0
    %v230 = vadd.f32 %v162, %v229
    %v231 = vpop.f32.mrb[0].mxu0
    %232 = vdwg.mxu0
    %v233 = vld [vmem:[#allocation2] sm:$0x3]
    %v234 = vld [vmem:[#allocation5 + $0xb0] sm:$0xff]
    %v235 = vld [vmem:[#allocation5 + $0xb8] sm:$0xff]
    %v236 = vld [vmem:[#allocation5 + $0xc0] sm:$0x3]
    %v237 = vld [vmem:[#allocation5 + $0xc8] sm:$0xf]
    %vm238 = vcmask 31744
    %v240 = vsel %vm238, %v230, 0
    %vm242 = vcmask 1043456
    %v244 = vsel %vm242, %v237, 0
    %246 = vmatprep.subr.mxu0 0.0
    %247 = vmatpush1.msra.mxu0 %v244
    %248 = vmatprep.subr.mxu0 0.0
    %249 = vmatpush1.msra.mxu0 0.0
    %250 = vmatprep.subr.mxu0 0.0
    %251 = vmatpush1.msra.mxu0 0.0
    %252 = vmatprep.subr.mxu0 0.0
    %253 = vmatpush1.msra.mxu0 0.0
    %254 = vmatprep.subr.mxu0 0.0
    %255 = vmatpush1.msra.mxu0 0.0
    %256 = vmatprep.subr.mxu0 0.0
    %257 = vmatpush1.msra.mxu0 0.0
    %258 = vmatprep.subr.mxu0 0.0
    %259 = vmatpush1.msra.mxu0 0.0
    %260 = vmatprep.subr.mxu0 0.0
    %261 = vmatpush1.msra.mxu0 0.0
    %262 = vmatprep.subr.mxu0 0.0
    %263 = vmatpush1.msra.mxu0 0.0
    %264 = vmatprep.subr.mxu0 0.0
    %265 = vmatpush1.msra.mxu0 0.0
    %266 = vmatprep.subr.mxu0 0.0
    %267 = vmatpush1.msra.mxu0 0.0
    %268 = vmatprep.subr.mxu0 0.0
    %269 = vmatpush1.msra.mxu0 0.0
    %270 = vmatprep.subr.mxu0 0.0
    %271 = vmatpush1.msra.mxu0 0.0
    %272 = vmatprep.subr.mxu0 0.0
    %273 = vmatpush1.msra.mxu0 0.0
    %274 = vmatprep.subr.mxu0 0.0
    %275 = vmatpush1.msra.mxu0 0.0
    %276 = vmatprep.subr.mxu0 0.0
    %277 = vmatpush1.msra.mxu0 0.0
    %278 = vmatprep.subr.mxu0 0.0
    %279 = vmatpush1.msra.mxu0 0.0
    %280 = vmatprep.subr.mxu0 0.0
    %281 = vmatpush1.msra.mxu0 0.0
    %282 = vmatprep.subr.mxu0 0.0
    %283 = vmatpush1.msra.mxu0 0.0
    %284 = vmatprep.subr.mxu0 0.0
    %285 = vmatpush1.msra.mxu0 0.0
    %286 = vmatprep.subr.mxu0 0.0
    %287 = vmatpush1.msra.mxu0 0.0
    %288 = vmatprep.subr.mxu0 0.0
    %289 = vmatpush1.msra.mxu0 0.0
    %290 = vmatprep.subr.mxu0 0.0
    %291 = vmatpush1.msra.mxu0 0.0
    %292 = vmatprep.subr.mxu0 0.0
    %293 = vmatpush1.msra.mxu0 0.0
    %294 = vmatprep.subr.mxu0 0.0
    %295 = vmatpush1.msra.mxu0 0.0
    %296 = vmatprep.subr.mxu0 0.0
    %297 = vmatpush1.msra.mxu0 0.0
    %298 = vmatprep.subr.mxu0 0.0
    %299 = vmatpush1.msra.mxu0 0.0
    %300 = vmatprep.subr.mxu0 0.0
    %301 = vmatpush1.msra.mxu0 0.0
    %302 = vmatprep.subr.mxu0 0.0
    %303 = vmatpush1.msra.mxu0 0.0
    %304 = vmatprep.subr.mxu0 0.0
    %305 = vmatpush1.msra.mxu0 0.0
    %306 = vmatprep.subr.mxu0 0.0
    %307 = vmatpush1.msra.mxu0 0.0
    %308 = vmatprep.subr.mxu0 0.0
    %309 = vmatpush1.msra.mxu0 0.0
    %310 = vmatprep.mubr.f32.mxu0 0.0
    %311 = vmatmul.mubr.f32.gmra.mrb[0].mxu0 %v240
    %v312 = vpop.f32.mrb[0].mxu0
    %v313 = vadd.f32 0.0, %v312
    %v314 = vpop.f32.mrb[0].mxu0
    %315 = vdwg.mxu0
    %vm316 = vcmask 146432
    %v318 = vsel %vm316, %v233, 0
    %vm320 = vcmask 1041408
    %v322 = vsel %vm320, %v236, 0
    %324 = vmatprep.subr.mxu0 0.0
    %325 = vmatpush1.msra.mxu0 %v234
    %326 = vmatprep.subr.mxu0 0.0
    %327 = vmatpush1.msra.mxu0 %v235
    %328 = vmatprep.subr.mxu0 0.0
    %329 = vmatpush1.msra.mxu0 %v322
    %330 = vmatprep.subr.mxu0 0.0
    %331 = vmatpush1.msra.mxu0 0.0
    %332 = vmatprep.subr.mxu0 0.0
    %333 = vmatpush1.msra.mxu0 0.0
    %334 = vmatprep.subr.mxu0 0.0
    %335 = vmatpush1.msra.mxu0 0.0
    %336 = vmatprep.subr.mxu0 0.0
    %337 = vmatpush1.msra.mxu0 0.0
    %338 = vmatprep.subr.mxu0 0.0
    %339 = vmatpush1.msra.mxu0 0.0
    %340 = vmatprep.subr.mxu0 0.0
    %341 = vmatpush1.msra.mxu0 0.0
    %342 = vmatprep.subr.mxu0 0.0
    %343 = vmatpush1.msra.mxu0 0.0
    %344 = vmatprep.subr.mxu0 0.0
    %345 = vmatpush1.msra.mxu0 0.0
    %346 = vmatprep.subr.mxu0 0.0
    %347 = vmatpush1.msra.mxu0 0.0
    %348 = vmatprep.subr.mxu0 0.0
    %349 = vmatpush1.msra.mxu0 0.0
    %350 = vmatprep.subr.mxu0 0.0
    %351 = vmatpush1.msra.mxu0 0.0
    %352 = vmatprep.subr.mxu0 0.0
    %353 = vmatpush1.msra.mxu0 0.0
    %354 = vmatprep.subr.mxu0 0.0
    %355 = vmatpush1.msra.mxu0 0.0
    %356 = vmatprep.subr.mxu0 0.0
    %357 = vmatpush1.msra.mxu0 0.0
    %358 = vmatprep.subr.mxu0 0.0
    %359 = vmatpush1.msra.mxu0 0.0
    %360 = vmatprep.subr.mxu0 0.0
    %361 = vmatpush1.msra.mxu0 0.0
    %362 = vmatprep.subr.mxu0 0.0
    %363 = vmatpush1.msra.mxu0 0.0
    %364 = vmatprep.subr.mxu0 0.0
    %365 = vmatpush1.msra.mxu0 0.0
    %366 = vmatprep.subr.mxu0 0.0
    %367 = vmatpush1.msra.mxu0 0.0
    %368 = vmatprep.subr.mxu0 0.0
    %369 = vmatpush1.msra.mxu0 0.0
    %370 = vmatprep.subr.mxu0 0.0
    %371 = vmatpush1.msra.mxu0 0.0
    %372 = vmatprep.subr.mxu0 0.0
    %373 = vmatpush1.msra.mxu0 0.0
    %374 = vmatprep.subr.mxu0 0.0
    %375 = vmatpush1.msra.mxu0 0.0
    %376 = vmatprep.subr.mxu0 0.0
    %377 = vmatpush1.msra.mxu0 0.0
    %378 = vmatprep.subr.mxu0 0.0
    %379 = vmatpush1.msra.mxu0 0.0
    %380 = vmatprep.subr.mxu0 0.0
    %381 = vmatpush1.msra.mxu0 0.0
    %382 = vmatprep.subr.mxu0 0.0
    %383 = vmatpush1.msra.mxu0 0.0
    %384 = vmatprep.subr.mxu0 0.0
    %385 = vmatpush1.msra.mxu0 0.0
    %386 = vmatprep.subr.mxu0 0.0
    %387 = vmatpush1.msra.mxu0 0.0
    %388 = vmatprep.mubr.f32.mxu0 0.0
    %389 = vmatmul.mubr.f32.gmra.mrb[0].mxu0 %v318
    %v390 = vpop.f32.mrb[0].mxu0
    %v391 = vadd.f32 %v313, %v390
    %v392 = vpop.f32.mrb[0].mxu0
    %393 = vdwg.mxu0
    %v394 = vld [vmem:[#allocation5 + $0xd0] sm:$0x1]
    %v395 = vlaneseq
    %v396 = vshrl.u32 %v395, 7
    %v397 = vsub.s32 0, %v396
    %v398 = vrot.slane %v394, %v397
    %v399 = vadd.f32 %v391, %v398
    %v400 = vmax.f32 %v399, 0.0
    %v401 = vld [vmem:[#allocation5 + $0xd8] sm:$0xff]
    %v402 = vld [vmem:[#allocation5 + $0xe0] sm:$0xff]
    %v403 = vld [vmem:[#allocation5 + $0xe8] sm:$0xff]
    %v404 = vld [vmem:[#allocation5 + $0xf0] sm:$0xff]
    %v405 = vld [vmem:[#allocation5 + $0xf8] sm:$0xff]
    %v406 = vld [vmem:[#allocation5 + $0x100] sm:$0xff]
    %v407 = vld [vmem:[#allocation5 + $0x108] sm:$0xff]
    %v408 = vld [vmem:[#allocation5 + $0x110] sm:$0xff]
    %v409 = vld [vmem:[#allocation5 + $0x118] sm:$0x1]
    %v410 = vlaneseq
    %v411 = vshrl.u32 %v410, 7
    %v412 = vsub.s32 0, %v411
    %v413 = vrot.slane %v409, %v412
    %vm414 = vcmask 523264
    %v416 = vsel %vm414, %v400, 0
    %418 = vmatprep.subr.mxu0 0.0
    %419 = vmatpush1.msra.mxu0 %v401
    %420 = vmatprep.subr.mxu0 0.0
    %421 = vmatpush1.msra.mxu0 %v402
    %422 = vmatprep.subr.mxu0 0.0
    %423 = vmatpush1.msra.mxu0 %v403
    %424 = vmatprep.subr.mxu0 0.0
    %425 = vmatpush1.msra.mxu0 %v404
    %426 = vmatprep.subr.mxu0 0.0
    %427 = vmatpush1.msra.mxu0 %v405
    %428 = vmatprep.subr.mxu0 0.0
    %429 = vmatpush1.msra.mxu0 %v406
    %430 = vmatprep.subr.mxu0 0.0
    %431 = vmatpush1.msra.mxu0 %v407
    %432 = vmatprep.subr.mxu0 0.0
    %433 = vmatpush1.msra.mxu0 %v408
    %434 = vmatprep.subr.mxu0 0.0
    %435 = vmatpush1.msra.mxu0 0.0
    %436 = vmatprep.subr.mxu0 0.0
    %437 = vmatpush1.msra.mxu0 0.0
    %438 = vmatprep.subr.mxu0 0.0
    %439 = vmatpush1.msra.mxu0 0.0
    %440 = vmatprep.subr.mxu0 0.0
    %441 = vmatpush1.msra.mxu0 0.0
    %442 = vmatprep.subr.mxu0 0.0
    %443 = vmatpush1.msra.mxu0 0.0
    %444 = vmatprep.subr.mxu0 0.0
    %445 = vmatpush1.msra.mxu0 0.0
    %446 = vmatprep.subr.mxu0 0.0
    %447 = vmatpush1.msra.mxu0 0.0
    %448 = vmatprep.subr.mxu0 0.0
    %449 = vmatpush1.msra.mxu0 0.0
    %450 = vmatprep.subr.mxu0 0.0
    %451 = vmatpush1.msra.mxu0 0.0
    %452 = vmatprep.subr.mxu0 0.0
    %453 = vmatpush1.msra.mxu0 0.0
    %454 = vmatprep.subr.mxu0 0.0
    %455 = vmatpush1.msra.mxu0 0.0
    %456 = vmatprep.subr.mxu0 0.0
    %457 = vmatpush1.msra.mxu0 0.0
    %458 = vmatprep.subr.mxu0 0.0
    %459 = vmatpush1.msra.mxu0 0.0
    %460 = vmatprep.subr.mxu0 0.0
    %461 = vmatpush1.msra.mxu0 0.0
    %462 = vmatprep.subr.mxu0 0.0
    %463 = vmatpush1.msra.mxu0 0.0
    %464 = vmatprep.subr.mxu0 0.0
    %465 = vmatpush1.msra.mxu0 0.0
    %466 = vmatprep.subr.mxu0 0.0
    %467 = vmatpush1.msra.mxu0 0.0
    %468 = vmatprep.subr.mxu0 0.0
    %469 = vmatpush1.msra.mxu0 0.0
    %470 = vmatprep.subr.mxu0 0.0
    %471 = vmatpush1.msra.mxu0 0.0
    %472 = vmatprep.subr.mxu0 0.0
    %473 = vmatpush1.msra.mxu0 0.0
    %474 = vmatprep.subr.mxu0 0.0
    %475 = vmatpush1.msra.mxu0 0.0
    %476 = vmatprep.subr.mxu0 0.0
    %477 = vmatpush1.msra.mxu0 0.0
    %478 = vmatprep.subr.mxu0 0.0
    %479 = vmatpush1.msra.mxu0 0.0
    %480 = vmatprep.subr.mxu0 0.0
    %481 = vmatpush1.msra.mxu0 0.0
    %482 = vmatprep.mubr.f32.mxu0 0.0
    %483 = vmatmul.mubr.f32.gmra.mrb[0].mxu0 %v416
    %v484 = vpop.f32.mrb[0].mxu0
    %v485 = vadd.f32 %v413, %v484
    %v486 = vpop.f32.mrb[0].mxu0
    %487 = vdwg.mxu0
    %v488 = vld [vmem:[%s0] sm:$0xff]
    %v489 = vld [vmem:[%s0 + $0x8] sm:$0xff]
    %v490 = vld [vmem:[#allocation5 + $0x120] sm:$0xff]
    %v491 = vld [vmem:[#allocation5 + $0x128] sm:$0xff]
    %v492 = vld [vmem:[#allocation5 + $0x130] sm:$0xff]
    %v493 = vld [vmem:[#allocation5 + $0x138] sm:$0xff]
    %v494 = vld [vmem:[#allocation5 + $0x140] sm:$0xff]
    %v495 = vld [vmem:[#allocation5 + $0x148] sm:$0xff]
    %v496 = vld [vmem:[#allocation5 + $0x150] sm:$0xff]
    %v497 = vld [vmem:[#allocation5 + $0x158] sm:$0xff]
    %v498 = vld [vmem:[#allocation5 + $0x160] sm:$0x1]
    %v499 = vlaneseq
    %v500 = vshrl.u32 %v499, 7
    %v501 = vsub.s32 0, %v500
    %v502 = vrot.slane %v498, %v501
    %v504 = vsel %vm414, %v488, 0
    %v507 = vsel %vm414, %v489, 0
    %509 = vmatprep.subr.mxu0 0.0
    %510 = vmatpush1.msra.mxu0 %v490
    %511 = vmatprep.subr.mxu0 0.0
    %512 = vmatpush1.msra.mxu0 %v491
    %513 = vmatprep.subr.mxu0 0.0
    %514 = vmatpush1.msra.mxu0 %v492
    %515 = vmatprep.subr.mxu0 0.0
    %516 = vmatpush1.msra.mxu0 %v493
    %517 = vmatprep.subr.mxu0 0.0
    %518 = vmatpush1.msra.mxu0 %v494
    %519 = vmatprep.subr.mxu0 0.0
    %520 = vmatpush1.msra.mxu0 %v495
    %521 = vmatprep.subr.mxu0 0.0
    %522 = vmatpush1.msra.mxu0 %v496
    %523 = vmatprep.subr.mxu0 0.0
    %524 = vmatpush1.msra.mxu0 %v497
    %525 = vmatprep.subr.mxu0 0.0
    %526 = vmatpush1.msra.mxu0 0.0
    %527 = vmatprep.subr.mxu0 0.0
    %528 = vmatpush1.msra.mxu0 0.0
    %529 = vmatprep.subr.mxu0 0.0
    %530 = vmatpush1.msra.mxu0 0.0
    %531 = vmatprep.subr.mxu0 0.0
    %532 = vmatpush1.msra.mxu0 0.0
    %533 = vmatprep.subr.mxu0 0.0
    %534 = vmatpush1.msra.mxu0 0.0
    %535 = vmatprep.subr.mxu0 0.0
    %536 = vmatpush1.msra.mxu0 0.0
    %537 = vmatprep.subr.mxu0 0.0
    %538 = vmatpush1.msra.mxu0 0.0
    %539 = vmatprep.subr.mxu0 0.0
    %540 = vmatpush1.msra.mxu0 0.0
    %541 = vmatprep.subr.mxu0 0.0
    %542 = vmatpush1.msra.mxu0 0.0
    %543 = vmatprep.subr.mxu0 0.0
    %544 = vmatpush1.msra.mxu0 0.0
    %545 = vmatprep.subr.mxu0 0.0
    %546 = vmatpush1.msra.mxu0 0.0
    %547 = vmatprep.subr.mxu0 0.0
    %548 = vmatpush1.msra.mxu0 0.0
    %549 = vmatprep.subr.mxu0 0.0
    %550 = vmatpush1.msra.mxu0 0.0
    %551 = vmatprep.subr.mxu0 0.0
    %552 = vmatpush1.msra.mxu0 0.0
    %553 = vmatprep.subr.mxu0 0.0
    %554 = vmatpush1.msra.mxu0 0.0
    %555 = vmatprep.subr.mxu0 0.0
    %556 = vmatpush1.msra.mxu0 0.0
    %557 = vmatprep.subr.mxu0 0.0
    %558 = vmatpush1.msra.mxu0 0.0
    %559 = vmatprep.subr.mxu0 0.0
    %560 = vmatpush1.msra.mxu0 0.0
    %561 = vmatprep.subr.mxu0 0.0
    %562 = vmatpush1.msra.mxu0 0.0
    %563 = vmatprep.subr.mxu0 0.0
    %564 = vmatpush1.msra.mxu0 0.0
    %565 = vmatprep.subr.mxu0 0.0
    %566 = vmatpush1.msra.mxu0 0.0
    %567 = vmatprep.subr.mxu0 0.0
    %568 = vmatpush1.msra.mxu0 0.0
    %569 = vmatprep.subr.mxu0 0.0
    %570 = vmatpush1.msra.mxu0 0.0
    %571 = vmatprep.subr.mxu0 0.0
    %572 = vmatpush1.msra.mxu0 0.0
    %573 = vmatprep.mubr.f32.mxu0 0.0
    %574 = vmatmul.mubr.f32.gmra.mrb[0].mxu0 %v504
    %v575 = vpop.f32.mrb[0].mxu0
    %v576 = vadd.f32 %v502, %v575
    %v577 = vpop.f32.mrb[0].mxu0
    %578 = vmatprep.mubr.f32.mxu0 0.0
    %579 = vmatmul.mubr.f32.gmra.mrb[0].mxu0 %v507
    %v580 = vpop.f32.mrb[0].mxu0
    %v581 = vadd.f32 %v502, %v580
    %v582 = vpop.f32.mrb[0].mxu0
    %583 = vdwg.mxu0
    %v584 = vld [vmem:[#allocation5 + $0x168] sm:$0xff]
    %v585 = vld [vmem:[#allocation5 + $0x170] sm:$0xff]
    %v586 = vld [vmem:[#allocation5 + $0x178] sm:$0xff]
    %v587 = vld [vmem:[#allocation5 + $0x180] sm:$0xff]
    %v588 = vld [vmem:[#allocation5 + $0x188] sm:$0xff]
    %v589 = vld [vmem:[#allocation5 + $0x190] sm:$0xff]
    %v590 = vld [vmem:[#allocation5 + $0x198] sm:$0xff]
    %v591 = vld [vmem:[#allocation5 + $0x1a0] sm:$0xff]
    %v592 = vld [vmem:[#allocation5 + $0x1a8] sm:$0xff]
    %v593 = vld [vmem:[#allocation5 + $0x1b0] sm:$0xff]
    %v594 = vld [vmem:[#allocation5 + $0x1b8] sm:$0xff]
    %v595 = vld [vmem:[#allocation5 + $0x1c0] sm:$0xff]
    %v596 = vld [vmem:[#allocation5 + $0x1c8] sm:$0xff]
    %v597 = vld [vmem:[#allocation5 + $0x1d0] sm:$0xff]
    %v598 = vld [vmem:[#allocation5 + $0x1d8] sm:$0xff]
    %v599 = vld [vmem:[#allocation5 + $0x1e0] sm:$0xff]
    %v600 = vld [vmem:[#allocation5 + $0x1e8] sm:$0x1]
    %v601 = vlaneseq
    %v602 = vshrl.u32 %v601, 7
    %v603 = vsub.s32 0, %v602
    %v604 = vrot.slane %v600, %v603
    %605 = vmatprep.subr.mxu0 0.0
    %606 = vmatpush1.msra.mxu0 %v584
    %607 = vmatprep.subr.mxu0 0.0
    %608 = vmatpush1.msra.mxu0 %v585
    %609 = vmatprep.subr.mxu0 0.0
    %610 = vmatpush1.msra.mxu0 %v586
    %611 = vmatprep.subr.mxu0 0.0
    %612 = vmatpush1.msra.mxu0 %v587
    %613 = vmatprep.subr.mxu0 0.0
    %614 = vmatpush1.msra.mxu0 %v588
    %615 = vmatprep.subr.mxu0 0.0
    %616 = vmatpush1.msra.mxu0 %v589
    %617 = vmatprep.subr.mxu0 0.0
    %618 = vmatpush1.msra.mxu0 %v590
    %619 = vmatprep.subr.mxu0 0.0
    %620 = vmatpush1.msra.mxu0 %v591
    %621 = vmatprep.subr.mxu0 0.0
    %622 = vmatpush1.msra.mxu0 %v592
    %623 = vmatprep.subr.mxu0 0.0
    %624 = vmatpush1.msra.mxu0 %v593
    %625 = vmatprep.subr.mxu0 0.0
    %626 = vmatpush1.msra.mxu0 %v594
    %627 = vmatprep.subr.mxu0 0.0
    %628 = vmatpush1.msra.mxu0 %v595
    %629 = vmatprep.subr.mxu0 0.0
    %630 = vmatpush1.msra.mxu0 %v596
    %631 = vmatprep.subr.mxu0 0.0
    %632 = vmatpush1.msra.mxu0 %v597
    %633 = vmatprep.subr.mxu0 0.0
    %634 = vmatpush1.msra.mxu0 %v598
    %635 = vmatprep.subr.mxu0 0.0
    %636 = vmatpush1.msra.mxu0 %v599
    %637 = vmatprep.subr.mxu0 0.0
    %638 = vmatpush1.msra.mxu0 0.0
    %639 = vmatprep.subr.mxu0 0.0
    %640 = vmatpush1.msra.mxu0 0.0
    %641 = vmatprep.subr.mxu0 0.0
    %642 = vmatpush1.msra.mxu0 0.0
    %643 = vmatprep.subr.mxu0 0.0
    %644 = vmatpush1.msra.mxu0 0.0
    %645 = vmatprep.subr.mxu0 0.0
    %646 = vmatpush1.msra.mxu0 0.0
    %647 = vmatprep.subr.mxu0 0.0
    %648 = vmatpush1.msra.mxu0 0.0
    %649 = vmatprep.subr.mxu0 0.0
    %650 = vmatpush1.msra.mxu0 0.0
    %651 = vmatprep.subr.mxu0 0.0
    %652 = vmatpush1.msra.mxu0 0.0
    %653 = vmatprep.subr.mxu0 0.0
    %654 = vmatpush1.msra.mxu0 0.0
    %655 = vmatprep.subr.mxu0 0.0
    %656 = vmatpush1.msra.mxu0 0.0
    %657 = vmatprep.subr.mxu0 0.0
    %658 = vmatpush1.msra.mxu0 0.0
    %659 = vmatprep.subr.mxu0 0.0
    %660 = vmatpush1.msra.mxu0 0.0
    %661 = vmatprep.subr.mxu0 0.0
    %662 = vmatpush1.msra.mxu0 0.0
    %663 = vmatprep.subr.mxu0 0.0
    %664 = vmatpush1.msra.mxu0 0.0
    %665 = vmatprep.subr.mxu0 0.0
    %666 = vmatpush1.msra.mxu0 0.0
    %667 = vmatprep.subr.mxu0 0.0
    %668 = vmatpush1.msra.mxu0 0.0
    %669 = vmatprep.mubr.f32.mxu0 0.0
    %670 = vmatmul.mubr.f32.gmra.mrb[0].mxu0 %v485
    %v671 = vpop.f32.mrb[0].mxu0
    %v672 = vadd.f32 %v604, %v671
    %v673 = vpop.f32.mrb[0].mxu0
    %674 = vdwg.mxu0
    %v675 = vld [vmem:[#allocation5 + $0x1f0] sm:$0xff]
    %v676 = vld [vmem:[#allocation5 + $0x1f8] sm:$0xff]
    %v677 = vld [vmem:[#allocation5 + $0x200] sm:$0xff]
    %v678 = vld [vmem:[#allocation5 + $0x208] sm:$0xff]
    %v679 = vld [vmem:[#allocation5 + $0x210] sm:$0xff]
    %v680 = vld [vmem:[#allocation5 + $0x218] sm:$0xff]
    %v681 = vld [vmem:[#allocation5 + $0x220] sm:$0xff]
    %v682 = vld [vmem:[#allocation5 + $0x228] sm:$0xff]
    %v683 = vld [vmem:[#allocation5 + $0x230] sm:$0x1]
    %v684 = vlaneseq
    %v685 = vshrl.u32 %v684, 7
    %v686 = vsub.s32 0, %v685
    %v687 = vrot.slane %v683, %v686
    %v689 = vsel %vm414, %v576, 0
    %v692 = vsel %vm414, %v581, 0
    %694 = vmatprep.subr.mxu0 0.0
    %695 = vmatpush1.msra.mxu0 %v675
    %696 = vmatprep.subr.mxu0 0.0
    %697 = vmatpush1.msra.mxu0 %v676
    %698 = vmatprep.subr.mxu0 0.0
    %699 = vmatpush1.msra.mxu0 %v677
    %700 = vmatprep.subr.mxu0 0.0
    %701 = vmatpush1.msra.mxu0 %v678
    %702 = vmatprep.subr.mxu0 0.0
    %703 = vmatpush1.msra.mxu0 %v679
    %704 = vmatprep.subr.mxu0 0.0
    %705 = vmatpush1.msra.mxu0 %v680
    %706 = vmatprep.subr.mxu0 0.0
    %707 = vmatpush1.msra.mxu0 %v681
    %708 = vmatprep.subr.mxu0 0.0
    %709 = vmatpush1.msra.mxu0 %v682
    %710 = vmatprep.subr.mxu0 0.0
    %711 = vmatpush1.msra.mxu0 0.0
    %712 = vmatprep.subr.mxu0 0.0
    %713 = vmatpush1.msra.mxu0 0.0
    %714 = vmatprep.subr.mxu0 0.0
    %715 = vmatpush1.msra.mxu0 0.0
    %716 = vmatprep.subr.mxu0 0.0
    %717 = vmatpush1.msra.mxu0 0.0
    %718 = vmatprep.subr.mxu0 0.0
    %719 = vmatpush1.msra.mxu0 0.0
    %720 = vmatprep.subr.mxu0 0.0
    %721 = vmatpush1.msra.mxu0 0.0
    %722 = vmatprep.subr.mxu0 0.0
    %723 = vmatpush1.msra.mxu0 0.0
    %724 = vmatprep.subr.mxu0 0.0
    %725 = vmatpush1.msra.mxu0 0.0
    %726 = vmatprep.subr.mxu0 0.0
    %727 = vmatpush1.msra.mxu0 0.0
    %728 = vmatprep.subr.mxu0 0.0
    %729 = vmatpush1.msra.mxu0 0.0
    %730 = vmatprep.subr.mxu0 0.0
    %731 = vmatpush1.msra.mxu0 0.0
    %732 = vmatprep.subr.mxu0 0.0
    %733 = vmatpush1.msra.mxu0 0.0
    %734 = vmatprep.subr.mxu0 0.0
    %735 = vmatpush1.msra.mxu0 0.0
    %736 = vmatprep.subr.mxu0 0.0
    %737 = vmatpush1.msra.mxu0 0.0
    %738 = vmatprep.subr.mxu0 0.0
    %739 = vmatpush1.msra.mxu0 0.0
    %740 = vmatprep.subr.mxu0 0.0
    %741 = vmatpush1.msra.mxu0 0.0
    %742 = vmatprep.subr.mxu0 0.0
    %743 = vmatpush1.msra.mxu0 0.0
    %744 = vmatprep.subr.mxu0 0.0
    %745 = vmatpush1.msra.mxu0 0.0
    %746 = vmatprep.subr.mxu0 0.0
    %747 = vmatpush1.msra.mxu0 0.0
    %748 = vmatprep.subr.mxu0 0.0
    %749 = vmatpush1.msra.mxu0 0.0
    %750 = vmatprep.subr.mxu0 0.0
    %751 = vmatpush1.msra.mxu0 0.0
    %752 = vmatprep.subr.mxu0 0.0
    %753 = vmatpush1.msra.mxu0 0.0
    %754 = vmatprep.subr.mxu0 0.0
    %755 = vmatpush1.msra.mxu0 0.0
    %756 = vmatprep.subr.mxu0 0.0
    %757 = vmatpush1.msra.mxu0 0.0
    %758 = vmatprep.mubr.f32.mxu0 0.0
    %759 = vmatmul.mubr.f32.gmra.mrb[0].mxu0 %v689
    %v760 = vpop.f32.mrb[0].mxu0
    %v761 = vadd.f32 %v687, %v760
    %v762 = vpop.f32.mrb[0].mxu0
    %763 = vmatprep.mubr.f32.mxu0 0.0
    %764 = vmatmul.mubr.f32.gmra.mrb[0].mxu0 %v692
    %v765 = vpop.f32.mrb[0].mxu0
    %v766 = vadd.f32 %v687, %v765
    %v767 = vpop.f32.mrb[0].mxu0
    %768 = vdwg.mxu0
    %v769 = vld [vmem:[#allocation5 + $0x238] sm:$0xff]
    %v770 = vld [vmem:[#allocation5 + $0x240] sm:$0xff]
    %v771 = vld [vmem:[#allocation5 + $0x248] sm:$0xff]
    %v772 = vld [vmem:[#allocation5 + $0x250] sm:$0xff]
    %v773 = vld [vmem:[#allocation5 + $0x258] sm:$0xff]
    %v774 = vld [vmem:[#allocation5 + $0x260] sm:$0xff]
    %v775 = vld [vmem:[#allocation5 + $0x268] sm:$0xff]
    %v776 = vld [vmem:[#allocation5 + $0x270] sm:$0xff]
    %v777 = vld [vmem:[#allocation5 + $0x278] sm:$0x1]
    %v778 = vlaneseq
    %v779 = vshrl.u32 %v778, 7
    %v780 = vsub.s32 0, %v779
    %v781 = vrot.slane %v777, %v780
    %v783 = vsel %vm414, %v672, 0
    %785 = vmatprep.subr.mxu0 0.0
    %786 = vmatpush1.msra.mxu0 %v769
    %787 = vmatprep.subr.mxu0 0.0
    %788 = vmatpush1.msra.mxu0 %v770
    %789 = vmatprep.subr.mxu0 0.0
    %790 = vmatpush1.msra.mxu0 %v771
    %791 = vmatprep.subr.mxu0 0.0
    %792 = vmatpush1.msra.mxu0 %v772
    %793 = vmatprep.subr.mxu0 0.0
    %794 = vmatpush1.msra.mxu0 %v773
    %795 = vmatprep.subr.mxu0 0.0
    %796 = vmatpush1.msra.mxu0 %v774
    %797 = vmatprep.subr.mxu0 0.0
    %798 = vmatpush1.msra.mxu0 %v775
    %799 = vmatprep.subr.mxu0 0.0
    %800 = vmatpush1.msra.mxu0 %v776
    %801 = vmatprep.subr.mxu0 0.0
    %802 = vmatpush1.msra.mxu0 0.0
    %803 = vmatprep.subr.mxu0 0.0
    %804 = vmatpush1.msra.mxu0 0.0
    %805 = vmatprep.subr.mxu0 0.0
    %806 = vmatpush1.msra.mxu0 0.0
    %807 = vmatprep.subr.mxu0 0.0
    %808 = vmatpush1.msra.mxu0 0.0
    %809 = vmatprep.subr.mxu0 0.0
    %810 = vmatpush1.msra.mxu0 0.0
    %811 = vmatprep.subr.mxu0 0.0
    %812 = vmatpush1.msra.mxu0 0.0
    %813 = vmatprep.subr.mxu0 0.0
    %814 = vmatpush1.msra.mxu0 0.0
    %815 = vmatprep.subr.mxu0 0.0
    %816 = vmatpush1.msra.mxu0 0.0
    %817 = vmatprep.subr.mxu0 0.0
    %818 = vmatpush1.msra.mxu0 0.0
    %819 = vmatprep.subr.mxu0 0.0
    %820 = vmatpush1.msra.mxu0 0.0
    %821 = vmatprep.subr.mxu0 0.0
    %822 = vmatpush1.msra.mxu0 0.0
    %823 = vmatprep.subr.mxu0 0.0
    %824 = vmatpush1.msra.mxu0 0.0
    %825 = vmatprep.subr.mxu0 0.0
    %826 = vmatpush1.msra.mxu0 0.0
    %827 = vmatprep.subr.mxu0 0.0
    %828 = vmatpush1.msra.mxu0 0.0
    %829 = vmatprep.subr.mxu0 0.0
    %830 = vmatpush1.msra.mxu0 0.0
    %831 = vmatprep.subr.mxu0 0.0
    %832 = vmatpush1.msra.mxu0 0.0
    %833 = vmatprep.subr.mxu0 0.0
    %834 = vmatpush1.msra.mxu0 0.0
    %835 = vmatprep.subr.mxu0 0.0
    %836 = vmatpush1.msra.mxu0 0.0
    %837 = vmatprep.subr.mxu0 0.0
    %838 = vmatpush1.msra.mxu0 0.0
    %839 = vmatprep.subr.mxu0 0.0
    %840 = vmatpush1.msra.mxu0 0.0
    %841 = vmatprep.subr.mxu0 0.0
    %842 = vmatpush1.msra.mxu0 0.0
    %843 = vmatprep.subr.mxu0 0.0
    %844 = vmatpush1.msra.mxu0 0.0
    %845 = vmatprep.subr.mxu0 0.0
    %846 = vmatpush1.msra.mxu0 0.0
    %847 = vmatprep.subr.mxu0 0.0
    %848 = vmatpush1.msra.mxu0 0.0
    %849 = vmatprep.mubr.f32.mxu0 0.0
    %850 = vmatmul.mubr.f32.gmra.mrb[0].mxu0 %v783
    %v851 = vpop.f32.mrb[0].mxu0
    %v852 = vadd.f32 %v781, %v851
    %v853 = vpop.f32.mrb[0].mxu0
    %854 = vdwg.mxu0
    %v855 = vld [vmem:[#allocation5 + $0x280] sm:$0xff]
    %v856 = vld [vmem:[#allocation5 + $0x288] sm:$0xff]
    %v857 = vld [vmem:[#allocation5 + $0x290] sm:$0xff]
    %v858 = vld [vmem:[#allocation5 + $0x298] sm:$0xff]
    %v859 = vld [vmem:[#allocation5 + $0x2a0] sm:$0xff]
    %v860 = vld [vmem:[#allocation5 + $0x2a8] sm:$0xff]
    %v861 = vld [vmem:[#allocation5 + $0x2b0] sm:$0xff]
    %v862 = vld [vmem:[#allocation5 + $0x2b8] sm:$0xff]
    %v863 = vld [vmem:[#allocation5 + $0x2c0] sm:$0x1]
    %v864 = vlaneseq
    %v865 = vshrl.u32 %v864, 7
    %v866 = vsub.s32 0, %v865
    %v867 = vrot.slane %v863, %v866
    %868 = vmatprep.subr.mxu0 0.0
    %869 = vmatpush1.msra.mxu0 %v855
    %870 = vmatprep.subr.mxu0 0.0
    %871 = vmatpush1.msra.mxu0 %v856
    %872 = vmatprep.subr.mxu0 0.0
    %873 = vmatpush1.msra.mxu0 %v857
    %874 = vmatprep.subr.mxu0 0.0
    %875 = vmatpush1.msra.mxu0 %v858
    %876 = vmatprep.subr.mxu0 0.0
    %877 = vmatpush1.msra.mxu0 %v859
    %878 = vmatprep.subr.mxu0 0.0
    %879 = vmatpush1.msra.mxu0 %v860
    %880 = vmatprep.subr.mxu0 0.0
    %881 = vmatpush1.msra.mxu0 %v861
    %882 = vmatprep.subr.mxu0 0.0
    %883 = vmatpush1.msra.mxu0 %v862
    %884 = vmatprep.subr.mxu0 0.0
    %885 = vmatpush1.msra.mxu0 0.0
    %886 = vmatprep.subr.mxu0 0.0
    %887 = vmatpush1.msra.mxu0 0.0
    %888 = vmatprep.subr.mxu0 0.0
    %889 = vmatpush1.msra.mxu0 0.0
    %890 = vmatprep.subr.mxu0 0.0
    %891 = vmatpush1.msra.mxu0 0.0
    %892 = vmatprep.subr.mxu0 0.0
    %893 = vmatpush1.msra.mxu0 0.0
    %894 = vmatprep.subr.mxu0 0.0
    %895 = vmatpush1.msra.mxu0 0.0
    %896 = vmatprep.subr.mxu0 0.0
    %897 = vmatpush1.msra.mxu0 0.0
    %898 = vmatprep.subr.mxu0 0.0
    %899 = vmatpush1.msra.mxu0 0.0
    %900 = vmatprep.subr.mxu0 0.0
    %901 = vmatpush1.msra.mxu0 0.0
    %902 = vmatprep.subr.mxu0 0.0
    %903 = vmatpush1.msra.mxu0 0.0
    %904 = vmatprep.subr.mxu0 0.0
    %905 = vmatpush1.msra.mxu0 0.0
    %906 = vmatprep.subr.mxu0 0.0
    %907 = vmatpush1.msra.mxu0 0.0
    %908 = vmatprep.subr.mxu0 0.0
    %909 = vmatpush1.msra.mxu0 0.0
    %910 = vmatprep.subr.mxu0 0.0
    %911 = vmatpush1.msra.mxu0 0.0
    %912 = vmatprep.subr.mxu0 0.0
    %913 = vmatpush1.msra.mxu0 0.0
    %914 = vmatprep.subr.mxu0 0.0
    %915 = vmatpush1.msra.mxu0 0.0
    %916 = vmatprep.subr.mxu0 0.0
    %917 = vmatpush1.msra.mxu0 0.0
    %918 = vmatprep.subr.mxu0 0.0
    %919 = vmatpush1.msra.mxu0 0.0
    %920 = vmatprep.subr.mxu0 0.0
    %921 = vmatpush1.msra.mxu0 0.0
    %922 = vmatprep.subr.mxu0 0.0
    %923 = vmatpush1.msra.mxu0 0.0
    %924 = vmatprep.subr.mxu0 0.0
    %925 = vmatpush1.msra.mxu0 0.0
    %926 = vmatprep.subr.mxu0 0.0
    %927 = vmatpush1.msra.mxu0 0.0
    %928 = vmatprep.subr.mxu0 0.0
    %929 = vmatpush1.msra.mxu0 0.0
    %930 = vmatprep.subr.mxu0 0.0
    %931 = vmatpush1.msra.mxu0 0.0
    %932 = vmatprep.mubr.f32.mxu0 0.0
    %933 = vmatmul.mubr.f32.gmra.mrb[0].mxu0 %v783
    %v934 = vpop.f32.mrb[0].mxu0
    %v935 = vadd.f32 %v867, %v934
    %v936 = vpop.f32.mrb[0].mxu0
    %937 = vdwg.mxu0
    %v938 = vld [vmem:[%s4] sm:$0xff]
    %v939 = vld [vmem:[%s4 + $0x8] sm:$0xff]
    %v940 = vld [vmem:[%s5] sm:$0xff]
    %v941 = vld [vmem:[%s5 + $0x8] sm:$0xff]
    %vm942 = vcmask 15360
    %v944 = vsel %vm942, %v940, 0
    %v947 = vsel %vm942, %v941, 0
    %v950 = vsel %vm320, %v852, 0
    %952 = vmatprep.subr.mxu0 0.0
    %953 = vmatpush1.msra.mxu0 %v950
    %954 = vmatprep.subr.mxu0 0.0
    %955 = vmatpush1.msra.mxu0 0.0
    %956 = vmatprep.subr.mxu0 0.0
    %957 = vmatpush1.msra.mxu0 0.0
    %958 = vmatprep.subr.mxu0 0.0
    %959 = vmatpush1.msra.mxu0 0.0
    %960 = vmatprep.subr.mxu0 0.0
    %961 = vmatpush1.msra.mxu0 0.0
    %962 = vmatprep.subr.mxu0 0.0
    %963 = vmatpush1.msra.mxu0 0.0
    %964 = vmatprep.subr.mxu0 0.0
    %965 = vmatpush1.msra.mxu0 0.0
    %966 = vmatprep.subr.mxu0 0.0
    %967 = vmatpush1.msra.mxu0 0.0
    %968 = vmatprep.subr.mxu0 0.0
    %969 = vmatpush1.msra.mxu0 0.0
    %970 = vmatprep.subr.mxu0 0.0
    %971 = vmatpush1.msra.mxu0 0.0
    %972 = vmatprep.subr.mxu0 0.0
    %973 = vmatpush1.msra.mxu0 0.0
    %974 = vmatprep.subr.mxu0 0.0
    %975 = vmatpush1.msra.mxu0 0.0
    %976 = vmatprep.subr.mxu0 0.0
    %977 = vmatpush1.msra.mxu0 0.0
    %978 = vmatprep.subr.mxu0 0.0
    %979 = vmatpush1.msra.mxu0 0.0
    %980 = vmatprep.subr.mxu0 0.0
    %981 = vmatpush1.msra.mxu0 0.0
    %982 = vmatprep.subr.mxu0 0.0
    %983 = vmatpush1.msra.mxu0 0.0
    %984 = vmatprep.subr.mxu0 0.0
    %985 = vmatpush1.msra.mxu0 0.0
    %986 = vmatprep.subr.mxu0 0.0
    %987 = vmatpush1.msra.mxu0 0.0
    %988 = vmatprep.subr.mxu0 0.0
    %989 = vmatpush1.msra.mxu0 0.0
    %990 = vmatprep.subr.mxu0 0.0
    %991 = vmatpush1.msra.mxu0 0.0
    %992 = vmatprep.subr.mxu0 0.0
    %993 = vmatpush1.msra.mxu0 0.0
    %994 = vmatprep.subr.mxu0 0.0
    %995 = vmatpush1.msra.mxu0 0.0
    %996 = vmatprep.subr.mxu0 0.0
    %997 = vmatpush1.msra.mxu0 0.0
    %998 = vmatprep.subr.mxu0 0.0
    %999 = vmatpush1.msra.mxu0 0.0
    %1000 = vmatprep.subr.mxu0 0.0
    %1001 = vmatpush1.msra.mxu0 0.0
    %1002 = vmatprep.subr.mxu0 0.0
    %1003 = vmatpush1.msra.mxu0 0.0
    %1004 = vmatprep.subr.mxu0 0.0
    %1005 = vmatpush1.msra.mxu0 0.0
    %1006 = vmatprep.subr.mxu0 0.0
    %1007 = vmatpush1.msra.mxu0 0.0
    %1008 = vmatprep.subr.mxu0 0.0
    %1009 = vmatpush1.msra.mxu0 0.0
    %1010 = vmatprep.subr.mxu0 0.0
    %1011 = vmatpush1.msra.mxu0 0.0
    %1012 = vmatprep.subr.mxu0 0.0
    %1013 = vmatpush1.msra.mxu0 0.0
    %1014 = vmatprep.subr.mxu0 0.0
    %1015 = vmatpush1.msra.mxu0 0.0
    %1016 = vmatprep.mubr.f32.mxu0 0.0
    %1017 = vmatmul.mubr.f32.gmra.mrb[0].mxu0 %v944
    %v1018 = vpop.f32.mrb[0].mxu0
    %v1019 = vadd.f32 0.0, %v1018
    %v1020 = vpop.f32.mrb[0].mxu0
    %1021 = vmatprep.mubr.f32.mxu0 0.0
    %1022 = vmatmul.mubr.f32.gmra.mrb[0].mxu0 %v947
    %v1023 = vpop.f32.mrb[0].mxu0
    %v1024 = vadd.f32 0.0, %v1023
    %v1025 = vpop.f32.mrb[0].mxu0
    %1026 = vdwg.mxu0
    %v1027 = vmul.f32 %v1019, %v938
    %v1028 = vmul.f32 %v1024, %v939
    %v1030 = vsel %vm320, %v935, 0
    %1032 = vmatprep.subr.mxu0 0.0
    %1033 = vmatpush1.msra.mxu0 %v1030
    %1034 = vmatprep.subr.mxu0 0.0
    %1035 = vmatpush1.msra.mxu0 0.0
    %1036 = vmatprep.subr.mxu0 0.0
    %1037 = vmatpush1.msra.mxu0 0.0
    %1038 = vmatprep.subr.mxu0 0.0
    %1039 = vmatpush1.msra.mxu0 0.0
    %1040 = vmatprep.subr.mxu0 0.0
    %1041 = vmatpush1.msra.mxu0 0.0
    %1042 = vmatprep.subr.mxu0 0.0
    %1043 = vmatpush1.msra.mxu0 0.0
    %1044 = vmatprep.subr.mxu0 0.0
    %1045 = vmatpush1.msra.mxu0 0.0
    %1046 = vmatprep.subr.mxu0 0.0
    %1047 = vmatpush1.msra.mxu0 0.0
    %1048 = vmatprep.subr.mxu0 0.0
    %1049 = vmatpush1.msra.mxu0 0.0
    %1050 = vmatprep.subr.mxu0 0.0
    %1051 = vmatpush1.msra.mxu0 0.0
    %1052 = vmatprep.subr.mxu0 0.0
    %1053 = vmatpush1.msra.mxu0 0.0
    %1054 = vmatprep.subr.mxu0 0.0
    %1055 = vmatpush1.msra.mxu0 0.0
    %1056 = vmatprep.subr.mxu0 0.0
    %1057 = vmatpush1.msra.mxu0 0.0
    %1058 = vmatprep.subr.mxu0 0.0
    %1059 = vmatpush1.msra.mxu0 0.0
    %1060 = vmatprep.subr.mxu0 0.0
    %1061 = vmatpush1.msra.mxu0 0.0
    %1062 = vmatprep.subr.mxu0 0.0
    %1063 = vmatpush1.msra.mxu0 0.0
    %1064 = vmatprep.subr.mxu0 0.0
    %1065 = vmatpush1.msra.mxu0 0.0
    %1066 = vmatprep.subr.mxu0 0.0
    %1067 = vmatpush1.msra.mxu0 0.0
    %1068 = vmatprep.subr.mxu0 0.0
    %1069 = vmatpush1.msra.mxu0 0.0
    %1070 = vmatprep.subr.mxu0 0.0
    %1071 = vmatpush1.msra.mxu0 0.0
    %1072 = vmatprep.subr.mxu0 0.0
    %1073 = vmatpush1.msra.mxu0 0.0
    %1074 = vmatprep.subr.mxu0 0.0
    %1075 = vmatpush1.msra.mxu0 0.0
    %1076 = vmatprep.subr.mxu0 0.0
    %1077 = vmatpush1.msra.mxu0 0.0
    %1078 = vmatprep.subr.mxu0 0.0
    %1079 = vmatpush1.msra.mxu0 0.0
    %1080 = vmatprep.subr.mxu0 0.0
    %1081 = vmatpush1.msra.mxu0 0.0
    %1082 = vmatprep.subr.mxu0 0.0
    %1083 = vmatpush1.msra.mxu0 0.0
    %1084 = vmatprep.subr.mxu0 0.0
    %1085 = vmatpush1.msra.mxu0 0.0
    %1086 = vmatprep.subr.mxu0 0.0
    %1087 = vmatpush1.msra.mxu0 0.0
    %1088 = vmatprep.subr.mxu0 0.0
    %1089 = vmatpush1.msra.mxu0 0.0
    %1090 = vmatprep.subr.mxu0 0.0
    %1091 = vmatpush1.msra.mxu0 0.0
    %1092 = vmatprep.subr.mxu0 0.0
    %1093 = vmatpush1.msra.mxu0 0.0
    %1094 = vmatprep.subr.mxu0 0.0
    %1095 = vmatpush1.msra.mxu0 0.0
    %1096 = vmatprep.mubr.f32.mxu0 0.0
    %1097 = vmatmul.mubr.f32.gmra.mrb[0].mxu0 %v944
    %v1098 = vpop.f32.mrb[0].mxu0
    %v1099 = vadd.f32 0.0, %v1098
    %v1100 = vpop.f32.mrb[0].mxu0
    %1101 = vmatprep.mubr.f32.mxu0 0.0
    %1102 = vmatmul.mubr.f32.gmra.mrb[0].mxu0 %v947
    %v1103 = vpop.f32.mrb[0].mxu0
    %v1104 = vadd.f32 0.0, %v1103
    %v1105 = vpop.f32.mrb[0].mxu0
    %1106 = vdwg.mxu0
    %v1107 = vmul.f32 %v1099, %v938
    %v1108 = vmul.f32 %v1104, %v939
    %v1110 = vsel %vm414, %v761, 0
    %v1113 = vsel %vm414, %v766, 0
    %v1116 = vsel %vm414, %v1027, 0
    %v1119 = vsel %vm414, %v1028, 0
    %1121 = vmatprep.subr.mxu0 0.0
    %1122 = vmatpush1.xpose.msra.mxu0 %v1116
    %1123 = vmatprep.subr.mxu0 0.0
    %1124 = vmatpush1.xpose.msra.mxu0 %v1119
    %1125 = vmatprep.subr.mxu0 0.0
    %1126 = vmatpush1.xpose.msra.mxu0 0.0
    %1127 = vmatprep.subr.mxu0 0.0
    %1128 = vmatpush1.xpose.msra.mxu0 0.0
    %1129 = vmatprep.subr.mxu0 0.0
    %1130 = vmatpush1.xpose.msra.mxu0 0.0
    %1131 = vmatprep.subr.mxu0 0.0
    %1132 = vmatpush1.xpose.msra.mxu0 0.0
    %1133 = vmatprep.subr.mxu0 0.0
    %1134 = vmatpush1.xpose.msra.mxu0 0.0
    %1135 = vmatprep.subr.mxu0 0.0
    %1136 = vmatpush1.xpose.msra.mxu0 0.0
    %1137 = vmatprep.subr.mxu0 0.0
    %1138 = vmatpush1.xpose.msra.mxu0 0.0
    %1139 = vmatprep.subr.mxu0 0.0
    %1140 = vmatpush1.xpose.msra.mxu0 0.0
    %1141 = vmatprep.subr.mxu0 0.0
    %1142 = vmatpush1.xpose.msra.mxu0 0.0
    %1143 = vmatprep.subr.mxu0 0.0
    %1144 = vmatpush1.xpose.msra.mxu0 0.0
    %1145 = vmatprep.subr.mxu0 0.0
    %1146 = vmatpush1.xpose.msra.mxu0 0.0
    %1147 = vmatprep.subr.mxu0 0.0
    %1148 = vmatpush1.xpose.msra.mxu0 0.0
    %1149 = vmatprep.subr.mxu0 0.0
    %1150 = vmatpush1.xpose.msra.mxu0 0.0
    %1151 = vmatprep.subr.mxu0 0.0
    %1152 = vmatpush1.xpose.msra.mxu0 0.0
    %1153 = vmatprep.subr.mxu0 0.0
    %1154 = vmatpush1.xpose.msra.mxu0 0.0
    %1155 = vmatprep.subr.mxu0 0.0
    %1156 = vmatpush1.xpose.msra.mxu0 0.0
    %1157 = vmatprep.subr.mxu0 0.0
    %1158 = vmatpush1.xpose.msra.mxu0 0.0
    %1159 = vmatprep.subr.mxu0 0.0
    %1160 = vmatpush1.xpose.msra.mxu0 0.0
    %1161 = vmatprep.subr.mxu0 0.0
    %1162 = vmatpush1.xpose.msra.mxu0 0.0
    %1163 = vmatprep.subr.mxu0 0.0
    %1164 = vmatpush1.xpose.msra.mxu0 0.0
    %1165 = vmatprep.subr.mxu0 0.0
    %1166 = vmatpush1.xpose.msra.mxu0 0.0
    %1167 = vmatprep.subr.mxu0 0.0
    %1168 = vmatpush1.xpose.msra.mxu0 0.0
    %1169 = vmatprep.subr.mxu0 0.0
    %1170 = vmatpush1.xpose.msra.mxu0 0.0
    %1171 = vmatprep.subr.mxu0 0.0
    %1172 = vmatpush1.xpose.msra.mxu0 0.0
    %1173 = vmatprep.subr.mxu0 0.0
    %1174 = vmatpush1.xpose.msra.mxu0 0.0
    %1175 = vmatprep.subr.mxu0 0.0
    %1176 = vmatpush1.xpose.msra.mxu0 0.0
    %1177 = vmatprep.subr.mxu0 0.0
    %1178 = vmatpush1.xpose.msra.mxu0 0.0
    %1179 = vmatprep.subr.mxu0 0.0
    %1180 = vmatpush1.xpose.msra.mxu0 0.0
    %1181 = vmatprep.subr.mxu0 0.0
    %1182 = vmatpush1.xpose.msra.mxu0 0.0
    %1183 = vmatprep.subr.mxu0 0.0
    %1184 = vmatpush1.xpose.msra.mxu0 0.0
    %1185 = vmatprep.mubr.f32.mxu0 0.0
    %1186 = vmatmul.mubr.f32.gmra.mrb[0].mxu0 %v1110
    %v1187 = vpop.f32.mrb[0].mxu0
    %v1188 = vadd.f32 0.0, %v1187
    %v1189 = vpop.f32.mrb[0].mxu0
    %1190 = vmatprep.mubr.f32.mxu0 0.0
    %1191 = vmatmul.mubr.f32.gmra.mrb[0].mxu0 %v1113
    %v1192 = vpop.f32.mrb[0].mxu0
    %v1193 = vadd.f32 0.0, %v1192
    %v1194 = vpop.f32.mrb[0].mxu0
    %1195 = vdwg.mxu0
    %v1196 = vmul.f32 %v1188, 0.35355338
    %v1197 = vmul.f32 %v1193, 0.35355338
    %1200 = vrot.lane.b32.xlu0 %v1196, 120
    %v1201 = vpop.permute.xlu0 %1200
    %1202 = vrot.lane.b32.xlu0 %v1197, 120
    %v1203 = vpop.permute.xlu0 %1202
    %v1206 = vmax.f32 %v1196, %v1201
    %v1207 = vmax.f32 %v1197, %v1203
    %1210 = vrot.lane.b32.xlu0 %v1206, 8
    %v1211 = vpop.permute.xlu0 %1210
    %1212 = vrot.lane.b32.xlu0 %v1207, 8
    %v1213 = vpop.permute.xlu0 %1212
    %vm1216 = vcmask 64512
    %v1217 = vsel %vm1216, %v1206, %v1211
    %v1218 = vsel %vm1216, %v1207, %v1213
    %v1219 = vsub.f32 %v1196, %v1217
    %v1220 = vsub.f32 %v1197, %v1218
    %v1221 = vmul.f32 %v1219, 1.442695
    %v1222 = vpow.pop %v1221
    %v1223 = vmul.f32 %v1220, 1.442695
    %v1224 = vpow.pop %v1223
    %1227 = vrot.lane.b32.xlu0 %v1222, 120
    %v1228 = vpop.permute.xlu0 %1227
    %1229 = vrot.lane.b32.xlu0 %v1224, 120
    %v1230 = vpop.permute.xlu0 %1229
    %v1233 = vadd.f32 %v1222, %v1228
    %v1234 = vadd.f32 %v1224, %v1230
    %v1235 = vrcp.pop %v1233
    %v1236 = vrcp.pop %v1234
    %1239 = vrot.lane.b32.xlu0 %v1235, 8
    %v1240 = vpop.permute.xlu0 %1239
    %1241 = vrot.lane.b32.xlu0 %v1236, 8
    %v1242 = vpop.permute.xlu0 %1241
    %v1245 = vsel %vm1216, %v1235, %v1240
    %v1246 = vsel %vm1216, %v1236, %v1242
    %v1247 = vmul.f32 %v1222, %v1245
    %v1248 = vmul.f32 %v1224, %v1246
    %vm1249 = vcmask 130048
    %v1251 = vsel %vm1249, %v1247, 0
    %v1254 = vsel %vm1249, %v1248, 0
    %1256 = vmatprep.subr.mxu0 0.0
    %1257 = vmatpush1.msra.mxu0 %v1107
    %1258 = vmatprep.subr.mxu0 0.0
    %1259 = vmatpush1.msra.mxu0 %v1108
    %1260 = vmatprep.subr.mxu0 0.0
    %1261 = vmatpush1.msra.mxu0 0.0
    %1262 = vmatprep.subr.mxu0 0.0
    %1263 = vmatpush1.msra.mxu0 0.0
    %1264 = vmatprep.subr.mxu0 0.0
    %1265 = vmatpush1.msra.mxu0 0.0
    %1266 = vmatprep.subr.mxu0 0.0
    %1267 = vmatpush1.msra.mxu0 0.0
    %1268 = vmatprep.subr.mxu0 0.0
    %1269 = vmatpush1.msra.mxu0 0.0
    %1270 = vmatprep.subr.mxu0 0.0
    %1271 = vmatpush1.msra.mxu0 0.0
    %1272 = vmatprep.subr.mxu0 0.0
    %1273 = vmatpush1.msra.mxu0 0.0
    %1274 = vmatprep.subr.mxu0 0.0
    %1275 = vmatpush1.msra.mxu0 0.0
    %1276 = vmatprep.subr.mxu0 0.0
    %1277 = vmatpush1.msra.mxu0 0.0
    %1278 = vmatprep.subr.mxu0 0.0
    %1279 = vmatpush1.msra.mxu0 0.0
    %1280 = vmatprep.subr.mxu0 0.0
    %1281 = vmatpush1.msra.mxu0 0.0
    %1282 = vmatprep.subr.mxu0 0.0
    %1283 = vmatpush1.msra.mxu0 0.0
    %1284 = vmatprep.subr.mxu0 0.0
    %1285 = vmatpush1.msra.mxu0 0.0
    %1286 = vmatprep.subr.mxu0 0.0
    %1287 = vmatpush1.msra.mxu0 0.0
    %1288 = vmatprep.subr.mxu0 0.0
    %1289 = vmatpush1.msra.mxu0 0.0
    %1290 = vmatprep.subr.mxu0 0.0
    %1291 = vmatpush1.msra.mxu0 0.0
    %1292 = vmatprep.subr.mxu0 0.0
    %1293 = vmatpush1.msra.mxu0 0.0
    %1294 = vmatprep.subr.mxu0 0.0
    %1295 = vmatpush1.msra.mxu0 0.0
    %1296 = vmatprep.subr.mxu0 0.0
    %1297 = vmatpush1.msra.mxu0 0.0
    %1298 = vmatprep.subr.mxu0 0.0
    %1299 = vmatpush1.msra.mxu0 0.0
    %1300 = vmatprep.subr.mxu0 0.0
    %1301 = vmatpush1.msra.mxu0 0.0
    %1302 = vmatprep.subr.mxu0 0.0
    %1303 = vmatpush1.msra.mxu0 0.0
    %1304 = vmatprep.subr.mxu0 0.0
    %1305 = vmatpush1.msra.mxu0 0.0
    %1306 = vmatprep.subr.mxu0 0.0
    %1307 = vmatpush1.msra.mxu0 0.0
    %1308 = vmatprep.subr.mxu0 0.0
    %1309 = vmatpush1.msra.mxu0 0.0
    %1310 = vmatprep.subr.mxu0 0.0
    %1311 = vmatpush1.msra.mxu0 0.0
    %1312 = vmatprep.subr.mxu0 0.0
    %1313 = vmatpush1.msra.mxu0 0.0
    %1314 = vmatprep.subr.mxu0 0.0
    %1315 = vmatpush1.msra.mxu0 0.0
    %1316 = vmatprep.subr.mxu0 0.0
    %1317 = vmatpush1.msra.mxu0 0.0
    %1318 = vmatprep.subr.mxu0 0.0
    %1319 = vmatpush1.msra.mxu0 0.0
    %1320 = vmatprep.mubr.f32.mxu0 0.0
    %1321 = vmatmul.mubr.f32.gmra.mrb[0].mxu0 %v1251
    %v1322 = vpop.f32.mrb[0].mxu0
    %v1323 = vadd.f32 0.0, %v1322
    %v1324 = vpop.f32.mrb[0].mxu0
    %1325 = vmatprep.mubr.f32.mxu0 0.0
    %1326 = vmatmul.mubr.f32.gmra.mrb[0].mxu0 %v1254
    %v1327 = vpop.f32.mrb[0].mxu0
    %v1328 = vadd.f32 0.0, %v1327
    %v1329 = vpop.f32.mrb[0].mxu0
    %1330 = vdwg.mxu0
    %v1331 = vld [vmem:[#allocation5 + $0x2c8] sm:$0xff]
    %v1332 = vld [vmem:[#allocation5 + $0x2d0] sm:$0xff]
    %v1333 = vld [vmem:[#allocation5 + $0x2d8] sm:$0xff]
    %v1334 = vld [vmem:[#allocation5 + $0x2e0] sm:$0xff]
    %v1335 = vld [vmem:[#allocation5 + $0x2e8] sm:$0xff]
    %v1336 = vld [vmem:[#allocation5 + $0x2f0] sm:$0xff]
    %v1337 = vld [vmem:[#allocation5 + $0x2f8] sm:$0xff]
    %v1338 = vld [vmem:[#allocation5 + $0x300] sm:$0xff]
    %v1339 = vld [vmem:[#allocation5 + $0x308] sm:$0x1]
    %v1340 = vlaneseq
    %v1341 = vshrl.u32 %v1340, 7
    %v1342 = vsub.s32 0, %v1341
    %v1343 = vrot.slane %v1339, %v1342
    %v1345 = vsel %vm414, %v1323, 0
    %v1348 = vsel %vm414, %v1328, 0
    %1350 = vmatprep.subr.mxu0 0.0
    %1351 = vmatpush1.msra.mxu0 %v1331
    %1352 = vmatprep.subr.mxu0 0.0
    %1353 = vmatpush1.msra.mxu0 %v1332
    %1354 = vmatprep.subr.mxu0 0.0
    %1355 = vmatpush1.msra.mxu0 %v1333
    %1356 = vmatprep.subr.mxu0 0.0
    %1357 = vmatpush1.msra.mxu0 %v1334
    %1358 = vmatprep.subr.mxu0 0.0
    %1359 = vmatpush1.msra.mxu0 %v1335
    %1360 = vmatprep.subr.mxu0 0.0
    %1361 = vmatpush1.msra.mxu0 %v1336
    %1362 = vmatprep.subr.mxu0 0.0
    %1363 = vmatpush1.msra.mxu0 %v1337
    %1364 = vmatprep.subr.mxu0 0.0
    %1365 = vmatpush1.msra.mxu0 %v1338
    %1366 = vmatprep.subr.mxu0 0.0
    %1367 = vmatpush1.msra.mxu0 0.0
    %1368 = vmatprep.subr.mxu0 0.0
    %1369 = vmatpush1.msra.mxu0 0.0
    %1370 = vmatprep.subr.mxu0 0.0
    %1371 = vmatpush1.msra.mxu0 0.0
    %1372 = vmatprep.subr.mxu0 0.0
    %1373 = vmatpush1.msra.mxu0 0.0
    %1374 = vmatprep.subr.mxu0 0.0
    %1375 = vmatpush1.msra.mxu0 0.0
    %1376 = vmatprep.subr.mxu0 0.0
    %1377 = vmatpush1.msra.mxu0 0.0
    %1378 = vmatprep.subr.mxu0 0.0
    %1379 = vmatpush1.msra.mxu0 0.0
    %1380 = vmatprep.subr.mxu0 0.0
    %1381 = vmatpush1.msra.mxu0 0.0
    %1382 = vmatprep.subr.mxu0 0.0
    %1383 = vmatpush1.msra.mxu0 0.0
    %1384 = vmatprep.subr.mxu0 0.0
    %1385 = vmatpush1.msra.mxu0 0.0
    %1386 = vmatprep.subr.mxu0 0.0
    %1387 = vmatpush1.msra.mxu0 0.0
    %1388 = vmatprep.subr.mxu0 0.0
    %1389 = vmatpush1.msra.mxu0 0.0
    %1390 = vmatprep.subr.mxu0 0.0
    %1391 = vmatpush1.msra.mxu0 0.0
    %1392 = vmatprep.subr.mxu0 0.0
    %1393 = vmatpush1.msra.mxu0 0.0
    %1394 = vmatprep.subr.mxu0 0.0
    %1395 = vmatpush1.msra.mxu0 0.0
    %1396 = vmatprep.subr.mxu0 0.0
    %1397 = vmatpush1.msra.mxu0 0.0
    %1398 = vmatprep.subr.mxu0 0.0
    %1399 = vmatpush1.msra.mxu0 0.0
    %1400 = vmatprep.subr.mxu0 0.0
    %1401 = vmatpush1.msra.mxu0 0.0
    %1402 = vmatprep.subr.mxu0 0.0
    %1403 = vmatpush1.msra.mxu0 0.0
    %1404 = vmatprep.subr.mxu0 0.0
    %1405 = vmatpush1.msra.mxu0 0.0
    %1406 = vmatprep.subr.mxu0 0.0
    %1407 = vmatpush1.msra.mxu0 0.0
    %1408 = vmatprep.subr.mxu0 0.0
    %1409 = vmatpush1.msra.mxu0 0.0
    %1410 = vmatprep.subr.mxu0 0.0
    %1411 = vmatpush1.msra.mxu0 0.0
    %1412 = vmatprep.subr.mxu0 0.0
    %1413 = vmatpush1.msra.mxu0 0.0
    %1414 = vmatprep.mubr.f32.mxu0 0.0
    %1415 = vmatmul.mubr.f32.gmra.mrb[0].mxu0 %v1345
    %v1416 = vpop.f32.mrb[0].mxu0
    %v1417 = vadd.f32 %v1343, %v1416
    %v1418 = vpop.f32.mrb[0].mxu0
    %1419 = vmatprep.mubr.f32.mxu0 0.0
    %1420 = vmatmul.mubr.f32.gmra.mrb[0].mxu0 %v1348
    %v1421 = vpop.f32.mrb[0].mxu0
    %v1422 = vadd.f32 %v1343, %v1421
    %v1423 = vpop.f32.mrb[0].mxu0
    %1424 = vdwg.mxu0
    %v1425 = vadd.f32 %v1417, %v576
    %v1426 = vadd.f32 %v1422, %v581
    %v1427 = vld [vmem:[#allocation5 + $0x310] sm:$0xff]
    %v1428 = vld [vmem:[#allocation5 + $0x318] sm:$0xff]
    %v1429 = vld [vmem:[#allocation5 + $0x320] sm:$0xff]
    %v1430 = vld [vmem:[#allocation5 + $0x328] sm:$0xff]
    %v1431 = vld [vmem:[#allocation5 + $0x330] sm:$0xff]
    %v1432 = vld [vmem:[#allocation5 + $0x338] sm:$0xff]
    %v1433 = vld [vmem:[#allocation5 + $0x340] sm:$0xff]
    %v1434 = vld [vmem:[#allocation5 + $0x348] sm:$0xff]
    %v1435 = vld [vmem:[#allocation5 + $0x350] sm:$0x1]
    %v1436 = vlaneseq
    %v1437 = vshrl.u32 %v1436, 7
    %v1438 = vsub.s32 0, %v1437
    %v1439 = vrot.slane %v1435, %v1438
    %v1441 = vsel %vm414, %v1425, 0
    %v1444 = vsel %vm414, %v1426, 0
    %1446 = vmatprep.subr.mxu0 0.0
    %1447 = vmatpush1.msra.mxu0 %v1427
    %1448 = vmatprep.subr.mxu0 0.0
    %1449 = vmatpush1.msra.mxu0 %v1428
    %1450 = vmatprep.subr.mxu0 0.0
    %1451 = vmatpush1.msra.mxu0 %v1429
    %1452 = vmatprep.subr.mxu0 0.0
    %1453 = vmatpush1.msra.mxu0 %v1430
    %1454 = vmatprep.subr.mxu0 0.0
    %1455 = vmatpush1.msra.mxu0 %v1431
    %1456 = vmatprep.subr.mxu0 0.0
    %1457 = vmatpush1.msra.mxu0 %v1432
    %1458 = vmatprep.subr.mxu0 0.0
    %1459 = vmatpush1.msra.mxu0 %v1433
    %1460 = vmatprep.subr.mxu0 0.0
    %1461 = vmatpush1.msra.mxu0 %v1434
    %1462 = vmatprep.subr.mxu0 0.0
    %1463 = vmatpush1.msra.mxu0 0.0
    %1464 = vmatprep.subr.mxu0 0.0
    %1465 = vmatpush1.msra.mxu0 0.0
    %1466 = vmatprep.subr.mxu0 0.0
    %1467 = vmatpush1.msra.mxu0 0.0
    %1468 = vmatprep.subr.mxu0 0.0
    %1469 = vmatpush1.msra.mxu0 0.0
    %1470 = vmatprep.subr.mxu0 0.0
    %1471 = vmatpush1.msra.mxu0 0.0
    %1472 = vmatprep.subr.mxu0 0.0
    %1473 = vmatpush1.msra.mxu0 0.0
    %1474 = vmatprep.subr.mxu0 0.0
    %1475 = vmatpush1.msra.mxu0 0.0
    %1476 = vmatprep.subr.mxu0 0.0
    %1477 = vmatpush1.msra.mxu0 0.0
    %1478 = vmatprep.subr.mxu0 0.0
    %1479 = vmatpush1.msra.mxu0 0.0
    %1480 = vmatprep.subr.mxu0 0.0
    %1481 = vmatpush1.msra.mxu0 0.0
    %1482 = vmatprep.subr.mxu0 0.0
    %1483 = vmatpush1.msra.mxu0 0.0
    %1484 = vmatprep.subr.mxu0 0.0
    %1485 = vmatpush1.msra.mxu0 0.0
    %1486 = vmatprep.subr.mxu0 0.0
    %1487 = vmatpush1.msra.mxu0 0.0
    %1488 = vmatprep.subr.mxu0 0.0
    %1489 = vmatpush1.msra.mxu0 0.0
    %1490 = vmatprep.subr.mxu0 0.0
    %1491 = vmatpush1.msra.mxu0 0.0
    %1492 = vmatprep.subr.mxu0 0.0
    %1493 = vmatpush1.msra.mxu0 0.0
    %1494 = vmatprep.subr.mxu0 0.0
    %1495 = vmatpush1.msra.mxu0 0.0
    %1496 = vmatprep.subr.mxu0 0.0
    %1497 = vmatpush1.msra.mxu0 0.0
    %1498 = vmatprep.subr.mxu0 0.0
    %1499 = vmatpush1.msra.mxu0 0.0
    %1500 = vmatprep.subr.mxu0 0.0
    %1501 = vmatpush1.msra.mxu0 0.0
    %1502 = vmatprep.subr.mxu0 0.0
    %1503 = vmatpush1.msra.mxu0 0.0
    %1504 = vmatprep.subr.mxu0 0.0
    %1505 = vmatpush1.msra.mxu0 0.0
    %1506 = vmatprep.subr.mxu0 0.0
    %1507 = vmatpush1.msra.mxu0 0.0
    %1508 = vmatprep.subr.mxu0 0.0
    %1509 = vmatpush1.msra.mxu0 0.0
    %1510 = vmatprep.mubr.f32.mxu0 0.0
    %1511 = vmatmul.mubr.f32.gmra.mrb[0].mxu0 %v1441
    %v1512 = vpop.f32.mrb[0].mxu0
    %v1513 = vadd.f32 %v1439, %v1512
    %v1514 = vpop.f32.mrb[0].mxu0
    %1515 = vmatprep.mubr.f32.mxu0 0.0
    %1516 = vmatmul.mubr.f32.gmra.mrb[0].mxu0 %v1444
    %v1517 = vpop.f32.mrb[0].mxu0
    %v1518 = vadd.f32 %v1439, %v1517
    %v1519 = vpop.f32.mrb[0].mxu0
    %1520 = vdwg.mxu0
    %v1521 = vmax.f32 %v1513, 0.0
    %v1522 = vmax.f32 %v1518, 0.0
    %v1523 = vld [vmem:[#allocation5 + $0x358] sm:$0xff]
    %v1524 = vld [vmem:[#allocation5 + $0x360] sm:$0xff]
    %v1525 = vld [vmem:[#allocation5 + $0x368] sm:$0xff]
    %v1526 = vld [vmem:[#allocation5 + $0x370] sm:$0xff]
    %v1527 = vld [vmem:[#allocation5 + $0x378] sm:$0xff]
    %v1528 = vld [vmem:[#allocation5 + $0x380] sm:$0xff]
    %v1529 = vld [vmem:[#allocation5 + $0x388] sm:$0xff]
    %v1530 = vld [vmem:[#allocation5 + $0x390] sm:$0xff]
    %v1531 = vld [vmem:[#allocation5 + $0x398] sm:$0x1]
    %v1532 = vlaneseq
    %v1533 = vshrl.u32 %v1532, 7
    %v1534 = vsub.s32 0, %v1533
    %v1535 = vrot.slane %v1531, %v1534
    %1536 = vmatprep.subr.mxu0 0.0
    %1537 = vmatpush1.msra.mxu0 %v1523
    %1538 = vmatprep.subr.mxu0 0.0
    %1539 = vmatpush1.msra.mxu0 %v1524
    %1540 = vmatprep.subr.mxu0 0.0
    %1541 = vmatpush1.msra.mxu0 %v1525
    %1542 = vmatprep.subr.mxu0 0.0
    %1543 = vmatpush1.msra.mxu0 %v1526
    %1544 = vmatprep.subr.mxu0 0.0
    %1545 = vmatpush1.msra.mxu0 %v1527
    %1546 = vmatprep.subr.mxu0 0.0
    %1547 = vmatpush1.msra.mxu0 %v1528
    %1548 = vmatprep.subr.mxu0 0.0
    %1549 = vmatpush1.msra.mxu0 %v1529
    %1550 = vmatprep.subr.mxu0 0.0
    %1551 = vmatpush1.msra.mxu0 %v1530
    %1552 = vmatprep.subr.mxu0 0.0
    %1553 = vmatpush1.msra.mxu0 0.0
    %1554 = vmatprep.subr.mxu0 0.0
    %1555 = vmatpush1.msra.mxu0 0.0
    %1556 = vmatprep.subr.mxu0 0.0
    %1557 = vmatpush1.msra.mxu0 0.0
    %1558 = vmatprep.subr.mxu0 0.0
    %1559 = vmatpush1.msra.mxu0 0.0
    %1560 = vmatprep.subr.mxu0 0.0
    %1561 = vmatpush1.msra.mxu0 0.0
    %1562 = vmatprep.subr.mxu0 0.0
    %1563 = vmatpush1.msra.mxu0 0.0
    %1564 = vmatprep.subr.mxu0 0.0
    %1565 = vmatpush1.msra.mxu0 0.0
    %1566 = vmatprep.subr.mxu0 0.0
    %1567 = vmatpush1.msra.mxu0 0.0
    %1568 = vmatprep.subr.mxu0 0.0
    %1569 = vmatpush1.msra.mxu0 0.0
    %1570 = vmatprep.subr.mxu0 0.0
    %1571 = vmatpush1.msra.mxu0 0.0
    %1572 = vmatprep.subr.mxu0 0.0
    %1573 = vmatpush1.msra.mxu0 0.0
    %1574 = vmatprep.subr.mxu0 0.0
    %1575 = vmatpush1.msra.mxu0 0.0
    %1576 = vmatprep.subr.mxu0 0.0
    %1577 = vmatpush1.msra.mxu0 0.0
    %1578 = vmatprep.subr.mxu0 0.0
    %1579 = vmatpush1.msra.mxu0 0.0
    %1580 = vmatprep.subr.mxu0 0.0
    %1581 = vmatpush1.msra.mxu0 0.0
    %1582 = vmatprep.subr.mxu0 0.0
    %1583 = vmatpush1.msra.mxu0 0.0
    %1584 = vmatprep.subr.mxu0 0.0
    %1585 = vmatpush1.msra.mxu0 0.0
    %1586 = vmatprep.subr.mxu0 0.0
    %1587 = vmatpush1.msra.mxu0 0.0
    %1588 = vmatprep.subr.mxu0 0.0
    %1589 = vmatpush1.msra.mxu0 0.0
    %1590 = vmatprep.subr.mxu0 0.0
    %1591 = vmatpush1.msra.mxu0 0.0
    %1592 = vmatprep.subr.mxu0 0.0
    %1593 = vmatpush1.msra.mxu0 0.0
    %1594 = vmatprep.subr.mxu0 0.0
    %1595 = vmatpush1.msra.mxu0 0.0
    %1596 = vmatprep.subr.mxu0 0.0
    %1597 = vmatpush1.msra.mxu0 0.0
    %1598 = vmatprep.subr.mxu0 0.0
    %1599 = vmatpush1.msra.mxu0 0.0
    %1600 = vmatprep.mubr.f32.mxu0 0.0
    %1601 = vmatmul.mubr.f32.gmra.mrb[0].mxu0 %v1441
    %v1602 = vpop.f32.mrb[0].mxu0
    %v1603 = vadd.f32 %v1535, %v1602
    %v1604 = vpop.f32.mrb[0].mxu0
    %1605 = vmatprep.mubr.f32.mxu0 0.0
    %1606 = vmatmul.mubr.f32.gmra.mrb[0].mxu0 %v1444
    %v1607 = vpop.f32.mrb[0].mxu0
    %v1608 = vadd.f32 %v1535, %v1607
    %v1609 = vpop.f32.mrb[0].mxu0
    %1610 = vdwg.mxu0
    %v1611 = vmax.f32 %v1603, 0.0
    %v1612 = vmax.f32 %v1608, 0.0
    %v1613 = vld [vmem:[#allocation5 + $0x3a0] sm:$0xff]
    %v1614 = vld [vmem:[#allocation5 + $0x3a8] sm:$0xff]
    %v1615 = vld [vmem:[#allocation5 + $0x3b0] sm:$0xff]
    %v1616 = vld [vmem:[#allocation5 + $0x3b8] sm:$0xff]
    %v1617 = vld [vmem:[#allocation5 + $0x3c0] sm:$0xff]
    %v1618 = vld [vmem:[#allocation5 + $0x3c8] sm:$0xff]
    %v1619 = vld [vmem:[#allocation5 + $0x3d0] sm:$0xff]
    %v1620 = vld [vmem:[#allocation5 + $0x3d8] sm:$0xff]
    %v1621 = vld [vmem:[#allocation5 + $0x3e0] sm:$0x1]
    %v1622 = vlaneseq
    %v1623 = vshrl.u32 %v1622, 7
    %v1624 = vsub.s32 0, %v1623
    %v1625 = vrot.slane %v1621, %v1624
    %1626 = vmatprep.subr.mxu0 0.0
    %1627 = vmatpush1.msra.mxu0 %v1613
    %1628 = vmatprep.subr.mxu0 0.0
    %1629 = vmatpush1.msra.mxu0 %v1614
    %1630 = vmatprep.subr.mxu0 0.0
    %1631 = vmatpush1.msra.mxu0 %v1615
    %1632 = vmatprep.subr.mxu0 0.0
    %1633 = vmatpush1.msra.mxu0 %v1616
    %1634 = vmatprep.subr.mxu0 0.0
    %1635 = vmatpush1.msra.mxu0 %v1617
    %1636 = vmatprep.subr.mxu0 0.0
    %1637 = vmatpush1.msra.mxu0 %v1618
    %1638 = vmatprep.subr.mxu0 0.0
    %1639 = vmatpush1.msra.mxu0 %v1619
    %1640 = vmatprep.subr.mxu0 0.0
    %1641 = vmatpush1.msra.mxu0 %v1620
    %1642 = vmatprep.subr.mxu0 0.0
    %1643 = vmatpush1.msra.mxu0 0.0
    %1644 = vmatprep.subr.mxu0 0.0
    %1645 = vmatpush1.msra.mxu0 0.0
    %1646 = vmatprep.subr.mxu0 0.0
    %1647 = vmatpush1.msra.mxu0 0.0
    %1648 = vmatprep.subr.mxu0 0.0
    %1649 = vmatpush1.msra.mxu0 0.0
    %1650 = vmatprep.subr.mxu0 0.0
    %1651 = vmatpush1.msra.mxu0 0.0
    %1652 = vmatprep.subr.mxu0 0.0
    %1653 = vmatpush1.msra.mxu0 0.0
    %1654 = vmatprep.subr.mxu0 0.0
    %1655 = vmatpush1.msra.mxu0 0.0
    %1656 = vmatprep.subr.mxu0 0.0
    %1657 = vmatpush1.msra.mxu0 0.0
    %1658 = vmatprep.subr.mxu0 0.0
    %1659 = vmatpush1.msra.mxu0 0.0
    %1660 = vmatprep.subr.mxu0 0.0
    %1661 = vmatpush1.msra.mxu0 0.0
    %1662 = vmatprep.subr.mxu0 0.0
    %1663 = vmatpush1.msra.mxu0 0.0
    %1664 = vmatprep.subr.mxu0 0.0
    %1665 = vmatpush1.msra.mxu0 0.0
    %1666 = vmatprep.subr.mxu0 0.0
    %1667 = vmatpush1.msra.mxu0 0.0
    %1668 = vmatprep.subr.mxu0 0.0
    %1669 = vmatpush1.msra.mxu0 0.0
    %1670 = vmatprep.subr.mxu0 0.0
    %1671 = vmatpush1.msra.mxu0 0.0
    %1672 = vmatprep.subr.mxu0 0.0
    %1673 = vmatpush1.msra.mxu0 0.0
    %1674 = vmatprep.subr.mxu0 0.0
    %1675 = vmatpush1.msra.mxu0 0.0
    %1676 = vmatprep.subr.mxu0 0.0
    %1677 = vmatpush1.msra.mxu0 0.0
    %1678 = vmatprep.subr.mxu0 0.0
    %1679 = vmatpush1.msra.mxu0 0.0
    %1680 = vmatprep.subr.mxu0 0.0
    %1681 = vmatpush1.msra.mxu0 0.0
    %1682 = vmatprep.subr.mxu0 0.0
    %1683 = vmatpush1.msra.mxu0 0.0
    %1684 = vmatprep.subr.mxu0 0.0
    %1685 = vmatpush1.msra.mxu0 0.0
    %1686 = vmatprep.subr.mxu0 0.0
    %1687 = vmatpush1.msra.mxu0 0.0
    %1688 = vmatprep.subr.mxu0 0.0
    %1689 = vmatpush1.msra.mxu0 0.0
    %1690 = vmatprep.mubr.f32.mxu0 0.0
    %1691 = vmatmul.mubr.f32.gmra.mrb[0].mxu0 %v1441
    %v1692 = vpop.f32.mrb[0].mxu0
    %v1693 = vadd.f32 %v1625, %v1692
    %v1694 = vpop.f32.mrb[0].mxu0
    %1695 = vmatprep.mubr.f32.mxu0 0.0
    %1696 = vmatmul.mubr.f32.gmra.mrb[0].mxu0 %v1444
    %v1697 = vpop.f32.mrb[0].mxu0
    %v1698 = vadd.f32 %v1625, %v1697
    %v1699 = vpop.f32.mrb[0].mxu0
    %1700 = vdwg.mxu0
    %v1701 = vmax.f32 %v1693, 0.0
    %v1702 = vmax.f32 %v1698, 0.0
    %v1703 = vld [vmem:[#allocation5 + $0x3e8] sm:$0xff]
    %v1704 = vld [vmem:[#allocation5 + $0x3f0] sm:$0xff]
    %v1705 = vld [vmem:[#allocation5 + $0x3f8] sm:$0xff]
    %v1706 = vld [vmem:[#allocation5 + $0x400] sm:$0xff]
    %v1707 = vld [vmem:[#allocation5 + $0x408] sm:$0xff]
    %v1708 = vld [vmem:[#allocation5 + $0x410] sm:$0xff]
    %v1709 = vld [vmem:[#allocation5 + $0x418] sm:$0xff]
    %v1710 = vld [vmem:[#allocation5 + $0x420] sm:$0xff]
    %v1711 = vld [vmem:[#allocation5 + $0x428] sm:$0x1]
    %v1712 = vlaneseq
    %v1713 = vshrl.u32 %v1712, 7
    %v1714 = vsub.s32 0, %v1713
    %v1715 = vrot.slane %v1711, %v1714
    %1716 = vmatprep.subr.mxu0 0.0
    %1717 = vmatpush1.msra.mxu0 %v1703
    %1718 = vmatprep.subr.mxu0 0.0
    %1719 = vmatpush1.msra.mxu0 %v1704
    %1720 = vmatprep.subr.mxu0 0.0
    %1721 = vmatpush1.msra.mxu0 %v1705
    %1722 = vmatprep.subr.mxu0 0.0
    %1723 = vmatpush1.msra.mxu0 %v1706
    %1724 = vmatprep.subr.mxu0 0.0
    %1725 = vmatpush1.msra.mxu0 %v1707
    %1726 = vmatprep.subr.mxu0 0.0
    %1727 = vmatpush1.msra.mxu0 %v1708
    %1728 = vmatprep.subr.mxu0 0.0
    %1729 = vmatpush1.msra.mxu0 %v1709
    %1730 = vmatprep.subr.mxu0 0.0
    %1731 = vmatpush1.msra.mxu0 %v1710
    %1732 = vmatprep.subr.mxu0 0.0
    %1733 = vmatpush1.msra.mxu0 0.0
    %1734 = vmatprep.subr.mxu0 0.0
    %1735 = vmatpush1.msra.mxu0 0.0
    %1736 = vmatprep.subr.mxu0 0.0
    %1737 = vmatpush1.msra.mxu0 0.0
    %1738 = vmatprep.subr.mxu0 0.0
    %1739 = vmatpush1.msra.mxu0 0.0
    %1740 = vmatprep.subr.mxu0 0.0
    %1741 = vmatpush1.msra.mxu0 0.0
    %1742 = vmatprep.subr.mxu0 0.0
    %1743 = vmatpush1.msra.mxu0 0.0
    %1744 = vmatprep.subr.mxu0 0.0
    %1745 = vmatpush1.msra.mxu0 0.0
    %1746 = vmatprep.subr.mxu0 0.0
    %1747 = vmatpush1.msra.mxu0 0.0
    %1748 = vmatprep.subr.mxu0 0.0
    %1749 = vmatpush1.msra.mxu0 0.0
    %1750 = vmatprep.subr.mxu0 0.0
    %1751 = vmatpush1.msra.mxu0 0.0
    %1752 = vmatprep.subr.mxu0 0.0
    %1753 = vmatpush1.msra.mxu0 0.0
    %1754 = vmatprep.subr.mxu0 0.0
    %1755 = vmatpush1.msra.mxu0 0.0
    %1756 = vmatprep.subr.mxu0 0.0
    %1757 = vmatpush1.msra.mxu0 0.0
    %1758 = vmatprep.subr.mxu0 0.0
    %1759 = vmatpush1.msra.mxu0 0.0
    %1760 = vmatprep.subr.mxu0 0.0
    %1761 = vmatpush1.msra.mxu0 0.0
    %1762 = vmatprep.subr.mxu0 0.0
    %1763 = vmatpush1.msra.mxu0 0.0
    %1764 = vmatprep.subr.mxu0 0.0
    %1765 = vmatpush1.msra.mxu0 0.0
    %1766 = vmatprep.subr.mxu0 0.0
    %1767 = vmatpush1.msra.mxu0 0.0
    %1768 = vmatprep.subr.mxu0 0.0
    %1769 = vmatpush1.msra.mxu0 0.0
    %1770 = vmatprep.subr.mxu0 0.0
    %1771 = vmatpush1.msra.mxu0 0.0
    %1772 = vmatprep.subr.mxu0 0.0
    %1773 = vmatpush1.msra.mxu0 0.0
    %1774 = vmatprep.subr.mxu0 0.0
    %1775 = vmatpush1.msra.mxu0 0.0
    %1776 = vmatprep.subr.mxu0 0.0
    %1777 = vmatpush1.msra.mxu0 0.0
    %1778 = vmatprep.subr.mxu0 0.0
    %1779 = vmatpush1.msra.mxu0 0.0
    %1780 = vmatprep.mubr.f32.mxu0 0.0
    %1781 = vmatmul.mubr.f32.gmra.mrb[0].mxu0 %v1441
    %v1782 = vpop.f32.mrb[0].mxu0
    %v1783 = vadd.f32 %v1715, %v1782
    %v1784 = vpop.f32.mrb[0].mxu0
    %1785 = vmatprep.mubr.f32.mxu0 0.0
    %1786 = vmatmul.mubr.f32.gmra.mrb[0].mxu0 %v1444
    %v1787 = vpop.f32.mrb[0].mxu0
    %v1788 = vadd.f32 %v1715, %v1787
    %v1789 = vpop.f32.mrb[0].mxu0
    %1790 = vdwg.mxu0
    %v1791 = vmax.f32 %v1783, 0.0
    %v1792 = vmax.f32 %v1788, 0.0
    %v1793 = vld [vmem:[#allocation5 + $0x430] sm:$0xff]
    %v1794 = vld [vmem:[#allocation5 + $0x438] sm:$0xff]
    %v1795 = vld [vmem:[#allocation5 + $0x440] sm:$0xff]
    %v1796 = vld [vmem:[#allocation5 + $0x448] sm:$0xff]
    %v1797 = vld [vmem:[#allocation5 + $0x450] sm:$0xff]
    %v1798 = vld [vmem:[#allocation5 + $0x458] sm:$0xff]
    %v1799 = vld [vmem:[#allocation5 + $0x460] sm:$0xff]
    %v1800 = vld [vmem:[#allocation5 + $0x468] sm:$0xff]
    %v1801 = vld [vmem:[#allocation5 + $0x470] sm:$0xff]
    %v1802 = vld [vmem:[#allocation5 + $0x478] sm:$0xff]
    %v1803 = vld [vmem:[#allocation5 + $0x480] sm:$0xff]
    %v1804 = vld [vmem:[#allocation5 + $0x488] sm:$0xff]
    %v1805 = vld [vmem:[#allocation5 + $0x490] sm:$0xff]
    %v1806 = vld [vmem:[#allocation5 + $0x498] sm:$0xff]
    %v1807 = vld [vmem:[#allocation5 + $0x4a0] sm:$0xff]
    %v1808 = vld [vmem:[#allocation5 + $0x4a8] sm:$0xff]
    %v1809 = vld [vmem:[#allocation5 + $0x4b0] sm:$0xff]
    %v1810 = vld [vmem:[#allocation5 + $0x4b8] sm:$0xff]
    %v1811 = vld [vmem:[#allocation5 + $0x4c0] sm:$0xff]
    %v1812 = vld [vmem:[#allocation5 + $0x4c8] sm:$0xff]
    %v1813 = vld [vmem:[#allocation5 + $0x4d0] sm:$0xff]
    %v1814 = vld [vmem:[#allocation5 + $0x4d8] sm:$0xff]
    %v1815 = vld [vmem:[#allocation5 + $0x4e0] sm:$0xff]
    %v1816 = vld [vmem:[#allocation5 + $0x4e8] sm:$0xff]
    %v1817 = vld [vmem:[#allocation5 + $0x4f0] sm:$0xff]
    %v1818 = vld [vmem:[#allocation5 + $0x4f8] sm:$0xff]
    %v1819 = vld [vmem:[#allocation5 + $0x500] sm:$0xff]
    %v1820 = vld [vmem:[#allocation5 + $0x508] sm:$0xff]
    %v1821 = vld [vmem:[#allocation5 + $0x510] sm:$0xff]
    %v1822 = vld [vmem:[#allocation5 + $0x518] sm:$0xff]
    %v1823 = vld [vmem:[#allocation5 + $0x520] sm:$0xff]
    %v1824 = vld [vmem:[#allocation5 + $0x528] sm:$0xff]
    %v1825 = vld [vmem:[#allocation5 + $0x530] sm:$0xff]
    %v1826 = vld [vmem:[#allocation5 + $0x538] sm:$0xff]
    %v1827 = vld [vmem:[#allocation5 + $0x540] sm:$0xff]
    %v1828 = vld [vmem:[#allocation5 + $0x548] sm:$0xff]
    %v1829 = vld [vmem:[#allocation5 + $0x550] sm:$0xff]
    %v1830 = vld [vmem:[#allocation5 + $0x558] sm:$0xff]
    %v1831 = vld [vmem:[#allocation5 + $0x560] sm:$0xff]
    %v1832 = vld [vmem:[#allocation5 + $0x568] sm:$0xff]
    %v1833 = vld [vmem:[#allocation5 + $0x570] sm:$0xff]
    %v1834 = vld [vmem:[#allocation5 + $0x578] sm:$0xff]
    %v1835 = vld [vmem:[#allocation5 + $0x580] sm:$0xff]
    %v1836 = vld [vmem:[#allocation5 + $0x588] sm:$0xff]
    %v1837 = vld [vmem:[#allocation5 + $0x590] sm:$0xff]
    %v1838 = vld [vmem:[#allocation5 + $0x598] sm:$0xff]
    %v1839 = vld [vmem:[#allocation5 + $0x5a0] sm:$0xff]
    %v1840 = vld [vmem:[#allocation5 + $0x5a8] sm:$0xff]
    %v1841 = vld [vmem:[#allocation5 + $0x5b0] sm:$0xff]
    %v1842 = vld [vmem:[#allocation5 + $0x5b8] sm:$0xff]
    %v1843 = vld [vmem:[#allocation5 + $0x5c0] sm:$0xff]
    %v1844 = vld [vmem:[#allocation5 + $0x5c8] sm:$0xff]
    %v1845 = vld [vmem:[#allocation5 + $0x5d0] sm:$0xff]
    %v1846 = vld [vmem:[#allocation5 + $0x5d8] sm:$0xff]
    %v1847 = vld [vmem:[#allocation5 + $0x5e0] sm:$0xff]
    %v1848 = vld [vmem:[#allocation5 + $0x5e8] sm:$0xff]
    %v1849 = vld [vmem:[#allocation5 + $0x5f0] sm:$0xff]
    %v1850 = vld [vmem:[#allocation5 + $0x5f8] sm:$0xff]
    %v1851 = vld [vmem:[#allocation5 + $0x600] sm:$0xff]
    %v1852 = vld [vmem:[#allocation5 + $0x608] sm:$0xff]
    %v1853 = vld [vmem:[#allocation5 + $0x610] sm:$0xff]
    %v1854 = vld [vmem:[#allocation5 + $0x618] sm:$0xff]
    %v1855 = vld [vmem:[#allocation5 + $0x620] sm:$0xff]
    %v1856 = vld [vmem:[#allocation5 + $0x628] sm:$0xff]
    %v1857 = vld [vmem:[#allocation5 + $0x630] sm:$0x1]
    %v1858 = vlaneseq
    %v1859 = vshrl.u32 %v1858, 7
    %v1860 = vsub.s32 0, %v1859
    %v1861 = vrot.slane %v1857, %v1860
    %1862 = vmatprep.subr.mxu0 0.0
    %1863 = vmatpush1.msra.mxu0 %v1793
    %1864 = vmatprep.subr.mxu0 0.0
    %1865 = vmatpush1.msra.mxu0 %v1794
    %1866 = vmatprep.subr.mxu0 0.0
    %1867 = vmatpush1.msra.mxu0 %v1795
    %1868 = vmatprep.subr.mxu0 0.0
    %1869 = vmatpush1.msra.mxu0 %v1796
    %1870 = vmatprep.subr.mxu0 0.0
    %1871 = vmatpush1.msra.mxu0 %v1797
    %1872 = vmatprep.subr.mxu0 0.0
    %1873 = vmatpush1.msra.mxu0 %v1798
    %1874 = vmatprep.subr.mxu0 0.0
    %1875 = vmatpush1.msra.mxu0 %v1799
    %1876 = vmatprep.subr.mxu0 0.0
    %1877 = vmatpush1.msra.mxu0 %v1800
    %1878 = vmatprep.subr.mxu0 0.0
    %1879 = vmatpush1.msra.mxu0 %v1801
    %1880 = vmatprep.subr.mxu0 0.0
    %1881 = vmatpush1.msra.mxu0 %v1802
    %1882 = vmatprep.subr.mxu0 0.0
    %1883 = vmatpush1.msra.mxu0 %v1803
    %1884 = vmatprep.subr.mxu0 0.0
    %1885 = vmatpush1.msra.mxu0 %v1804
    %1886 = vmatprep.subr.mxu0 0.0
    %1887 = vmatpush1.msra.mxu0 %v1805
    %1888 = vmatprep.subr.mxu0 0.0
    %1889 = vmatpush1.msra.mxu0 %v1806
    %1890 = vmatprep.subr.mxu0 0.0
    %1891 = vmatpush1.msra.mxu0 %v1807
    %1892 = vmatprep.subr.mxu0 0.0
    %1893 = vmatpush1.msra.mxu0 %v1808
    %1894 = vmatprep.subr.mxu0 0.0
    %1895 = vmatpush1.msra.mxu0 %v1809
    %1896 = vmatprep.subr.mxu0 0.0
    %1897 = vmatpush1.msra.mxu0 %v1810
    %1898 = vmatprep.subr.mxu0 0.0
    %1899 = vmatpush1.msra.mxu0 %v1811
    %1900 = vmatprep.subr.mxu0 0.0
    %1901 = vmatpush1.msra.mxu0 %v1812
    %1902 = vmatprep.subr.mxu0 0.0
    %1903 = vmatpush1.msra.mxu0 %v1813
    %1904 = vmatprep.subr.mxu0 0.0
    %1905 = vmatpush1.msra.mxu0 %v1814
    %1906 = vmatprep.subr.mxu0 0.0
    %1907 = vmatpush1.msra.mxu0 %v1815
    %1908 = vmatprep.subr.mxu0 0.0
    %1909 = vmatpush1.msra.mxu0 %v1816
    %1910 = vmatprep.subr.mxu0 0.0
    %1911 = vmatpush1.msra.mxu0 %v1817
    %1912 = vmatprep.subr.mxu0 0.0
    %1913 = vmatpush1.msra.mxu0 %v1818
    %1914 = vmatprep.subr.mxu0 0.0
    %1915 = vmatpush1.msra.mxu0 %v1819
    %1916 = vmatprep.subr.mxu0 0.0
    %1917 = vmatpush1.msra.mxu0 %v1820
    %1918 = vmatprep.subr.mxu0 0.0
    %1919 = vmatpush1.msra.mxu0 %v1821
    %1920 = vmatprep.subr.mxu0 0.0
    %1921 = vmatpush1.msra.mxu0 %v1822
    %1922 = vmatprep.subr.mxu0 0.0
    %1923 = vmatpush1.msra.mxu0 %v1823
    %1924 = vmatprep.subr.mxu0 0.0
    %1925 = vmatpush1.msra.mxu0 %v1824
    %1926 = vmatprep.mubr.f32.mxu0 %v1611
    %1927 = vmatmul.mubr.f32.gmra.mrb[0].mxu0 %v1521
    %v1928 = vpop.f32.mrb[0].mxu0
    %v1929 = vadd.f32 %v1861, %v1928
    %v1930 = vpop.f32.mrb[0].mxu0
    %1931 = vmatprep.mubr.f32.mxu0 %v1612
    %1932 = vmatmul.mubr.f32.gmra.mrb[0].mxu0 %v1522
    %v1933 = vpop.f32.mrb[0].mxu0
    %v1934 = vadd.f32 %v1861, %v1933
    %v1935 = vpop.f32.mrb[0].mxu0
    %1936 = vdwg.mxu0
    %1937 = vmatprep.subr.mxu0 0.0
    %1938 = vmatpush1.msra.mxu0 %v1825
    %1939 = vmatprep.subr.mxu0 0.0
    %1940 = vmatpush1.msra.mxu0 %v1826
    %1941 = vmatprep.subr.mxu0 0.0
    %1942 = vmatpush1.msra.mxu0 %v1827
    %1943 = vmatprep.subr.mxu0 0.0
    %1944 = vmatpush1.msra.mxu0 %v1828
    %1945 = vmatprep.subr.mxu0 0.0
    %1946 = vmatpush1.msra.mxu0 %v1829
    %1947 = vmatprep.subr.mxu0 0.0
    %1948 = vmatpush1.msra.mxu0 %v1830
    %1949 = vmatprep.subr.mxu0 0.0
    %1950 = vmatpush1.msra.mxu0 %v1831
    %1951 = vmatprep.subr.mxu0 0.0
    %1952 = vmatpush1.msra.mxu0 %v1832
    %1953 = vmatprep.subr.mxu0 0.0
    %1954 = vmatpush1.msra.mxu0 %v1833
    %1955 = vmatprep.subr.mxu0 0.0
    %1956 = vmatpush1.msra.mxu0 %v1834
    %1957 = vmatprep.subr.mxu0 0.0
    %1958 = vmatpush1.msra.mxu0 %v1835
    %1959 = vmatprep.subr.mxu0 0.0
    %1960 = vmatpush1.msra.mxu0 %v1836
    %1961 = vmatprep.subr.mxu0 0.0
    %1962 = vmatpush1.msra.mxu0 %v1837
    %1963 = vmatprep.subr.mxu0 0.0
    %1964 = vmatpush1.msra.mxu0 %v1838
    %1965 = vmatprep.subr.mxu0 0.0
    %1966 = vmatpush1.msra.mxu0 %v1839
    %1967 = vmatprep.subr.mxu0 0.0
    %1968 = vmatpush1.msra.mxu0 %v1840
    %1969 = vmatprep.subr.mxu0 0.0
    %1970 = vmatpush1.msra.mxu0 %v1841
    %1971 = vmatprep.subr.mxu0 0.0
    %1972 = vmatpush1.msra.mxu0 %v1842
    %1973 = vmatprep.subr.mxu0 0.0
    %1974 = vmatpush1.msra.mxu0 %v1843
    %1975 = vmatprep.subr.mxu0 0.0
    %1976 = vmatpush1.msra.mxu0 %v1844
    %1977 = vmatprep.subr.mxu0 0.0
    %1978 = vmatpush1.msra.mxu0 %v1845
    %1979 = vmatprep.subr.mxu0 0.0
    %1980 = vmatpush1.msra.mxu0 %v1846
    %1981 = vmatprep.subr.mxu0 0.0
    %1982 = vmatpush1.msra.mxu0 %v1847
    %1983 = vmatprep.subr.mxu0 0.0
    %1984 = vmatpush1.msra.mxu0 %v1848
    %1985 = vmatprep.subr.mxu0 0.0
    %1986 = vmatpush1.msra.mxu0 %v1849
    %1987 = vmatprep.subr.mxu0 0.0
    %1988 = vmatpush1.msra.mxu0 %v1850
    %1989 = vmatprep.subr.mxu0 0.0
    %1990 = vmatpush1.msra.mxu0 %v1851
    %1991 = vmatprep.subr.mxu0 0.0
    %1992 = vmatpush1.msra.mxu0 %v1852
    %1993 = vmatprep.subr.mxu0 0.0
    %1994 = vmatpush1.msra.mxu0 %v1853
    %1995 = vmatprep.subr.mxu0 0.0
    %1996 = vmatpush1.msra.mxu0 %v1854
    %1997 = vmatprep.subr.mxu0 0.0
    %1998 = vmatpush1.msra.mxu0 %v1855
    %1999 = vmatprep.subr.mxu0 0.0
    %2000 = vmatpush1.msra.mxu0 %v1856
    %2001 = vmatprep.mubr.f32.mxu0 %v1791
    %2002 = vmatmul.mubr.f32.gmra.mrb[0].mxu0 %v1701
    %v2003 = vpop.f32.mrb[0].mxu0
    %v2004 = vadd.f32 %v1929, %v2003
    %v2005 = vpop.f32.mrb[0].mxu0
    %2006 = vmatprep.mubr.f32.mxu0 %v1792
    %2007 = vmatmul.mubr.f32.gmra.mrb[0].mxu0 %v1702
    %v2008 = vpop.f32.mrb[0].mxu0
    %v2009 = vadd.f32 %v1934, %v2008
    %v2010 = vpop.f32.mrb[0].mxu0
    %2011 = vdwg.mxu0
    %v2012 = vadd.f32 %v2004, %v1425
    %v2013 = vadd.f32 %v2009, %v1426
    %v2014 = vld [vmem:[%s1] sm:$0x3]
    %v2015 = vld [vmem:[#allocation5 + $0x638] sm:$0x3]
    %v2016 = vld [vmem:[#allocation5 + $0x640] sm:$0x1]
    %v2017 = vlaneseq
    %v2018 = vshrl.u32 %v2017, 7
    %v2019 = vsub.s32 0, %v2018
    %v2020 = vrot.slane %v2016, %v2019
    %v2022 = vsel %vm942, %v2014, 0
    %v2025 = vsel %vm320, %v2015, 0
    %2027 = vmatprep.subr.mxu0 0.0
    %2028 = vmatpush1.msra.mxu0 %v2025
    %2029 = vmatprep.subr.mxu0 0.0
    %2030 = vmatpush1.msra.mxu0 0.0
    %2031 = vmatprep.subr.mxu0 0.0
    %2032 = vmatpush1.msra.mxu0 0.0
    %2033 = vmatprep.subr.mxu0 0.0
    %2034 = vmatpush1.msra.mxu0 0.0
    %2035 = vmatprep.subr.mxu0 0.0
    %2036 = vmatpush1.msra.mxu0 0.0
    %2037 = vmatprep.subr.mxu0 0.0
    %2038 = vmatpush1.msra.mxu0 0.0
    %2039 = vmatprep.subr.mxu0 0.0
    %2040 = vmatpush1.msra.mxu0 0.0
    %2041 = vmatprep.subr.mxu0 0.0
    %2042 = vmatpush1.msra.mxu0 0.0
    %2043 = vmatprep.subr.mxu0 0.0
    %2044 = vmatpush1.msra.mxu0 0.0
    %2045 = vmatprep.subr.mxu0 0.0
    %2046 = vmatpush1.msra.mxu0 0.0
    %2047 = vmatprep.subr.mxu0 0.0
    %2048 = vmatpush1.msra.mxu0 0.0
    %2049 = vmatprep.subr.mxu0 0.0
    %2050 = vmatpush1.msra.mxu0 0.0
    %2051 = vmatprep.subr.mxu0 0.0
    %2052 = vmatpush1.msra.mxu0 0.0
    %2053 = vmatprep.subr.mxu0 0.0
    %2054 = vmatpush1.msra.mxu0 0.0
    %2055 = vmatprep.subr.mxu0 0.0
    %2056 = vmatpush1.msra.mxu0 0.0
    %2057 = vmatprep.subr.mxu0 0.0
    %2058 = vmatpush1.msra.mxu0 0.0
    %2059 = vmatprep.subr.mxu0 0.0
    %2060 = vmatpush1.msra.mxu0 0.0
    %2061 = vmatprep.subr.mxu0 0.0
    %2062 = vmatpush1.msra.mxu0 0.0
    %2063 = vmatprep.subr.mxu0 0.0
    %2064 = vmatpush1.msra.mxu0 0.0
    %2065 = vmatprep.subr.mxu0 0.0
    %2066 = vmatpush1.msra.mxu0 0.0
    %2067 = vmatprep.subr.mxu0 0.0
    %2068 = vmatpush1.msra.mxu0 0.0
    %2069 = vmatprep.subr.mxu0 0.0
    %2070 = vmatpush1.msra.mxu0 0.0
    %2071 = vmatprep.subr.mxu0 0.0
    %2072 = vmatpush1.msra.mxu0 0.0
    %2073 = vmatprep.subr.mxu0 0.0
    %2074 = vmatpush1.msra.mxu0 0.0
    %2075 = vmatprep.subr.mxu0 0.0
    %2076 = vmatpush1.msra.mxu0 0.0
    %2077 = vmatprep.subr.mxu0 0.0
    %2078 = vmatpush1.msra.mxu0 0.0
    %2079 = vmatprep.subr.mxu0 0.0
    %2080 = vmatpush1.msra.mxu0 0.0
    %2081 = vmatprep.subr.mxu0 0.0
    %2082 = vmatpush1.msra.mxu0 0.0
    %2083 = vmatprep.subr.mxu0 0.0
    %2084 = vmatpush1.msra.mxu0 0.0
    %2085 = vmatprep.subr.mxu0 0.0
    %2086 = vmatpush1.msra.mxu0 0.0
    %2087 = vmatprep.subr.mxu0 0.0
    %2088 = vmatpush1.msra.mxu0 0.0
    %2089 = vmatprep.subr.mxu0 0.0
    %2090 = vmatpush1.msra.mxu0 0.0
    %2091 = vmatprep.mubr.f32.mxu0 0.0
    %2092 = vmatmul.mubr.f32.gmra.mrb[0].mxu0 %v2022
    %v2093 = vpop.f32.mrb[0].mxu0
    %v2094 = vadd.f32 %v2020, %v2093
    %v2095 = vpop.f32.mrb[0].mxu0
    %2096 = vdwg.mxu0
    %v2097 = vld [vmem:[#allocation5 + $0x648] sm:$0xff]
    %v2098 = vld [vmem:[#allocation5 + $0x650] sm:$0xff]
    %v2099 = vld [vmem:[#allocation5 + $0x658] sm:$0xff]
    %v2100 = vld [vmem:[#allocation5 + $0x660] sm:$0xff]
    %v2101 = vld [vmem:[#allocation5 + $0x668] sm:$0xff]
    %v2102 = vld [vmem:[#allocation5 + $0x670] sm:$0xff]
    %v2103 = vld [vmem:[#allocation5 + $0x678] sm:$0xff]
    %v2104 = vld [vmem:[#allocation5 + $0x680] sm:$0xff]
    %v2105 = vld [vmem:[#allocation5 + $0x688] sm:$0x1]
    %v2106 = vlaneseq
    %v2107 = vshrl.u32 %v2106, 7
    %v2108 = vsub.s32 0, %v2107
    %v2109 = vrot.slane %v2105, %v2108
    %v2111 = vsel %vm414, %v2012, 0
    %v2114 = vsel %vm414, %v2013, 0
    %2116 = vmatprep.subr.mxu0 0.0
    %2117 = vmatpush1.msra.mxu0 %v2097
    %2118 = vmatprep.subr.mxu0 0.0
    %2119 = vmatpush1.msra.mxu0 %v2098
    %2120 = vmatprep.subr.mxu0 0.0
    %2121 = vmatpush1.msra.mxu0 %v2099
    %2122 = vmatprep.subr.mxu0 0.0
    %2123 = vmatpush1.msra.mxu0 %v2100
    %2124 = vmatprep.subr.mxu0 0.0
    %2125 = vmatpush1.msra.mxu0 %v2101
    %2126 = vmatprep.subr.mxu0 0.0
    %2127 = vmatpush1.msra.mxu0 %v2102
    %2128 = vmatprep.subr.mxu0 0.0
    %2129 = vmatpush1.msra.mxu0 %v2103
    %2130 = vmatprep.subr.mxu0 0.0
    %2131 = vmatpush1.msra.mxu0 %v2104
    %2132 = vmatprep.subr.mxu0 0.0
    %2133 = vmatpush1.msra.mxu0 0.0
    %2134 = vmatprep.subr.mxu0 0.0
    %2135 = vmatpush1.msra.mxu0 0.0
    %2136 = vmatprep.subr.mxu0 0.0
    %2137 = vmatpush1.msra.mxu0 0.0
    %2138 = vmatprep.subr.mxu0 0.0
    %2139 = vmatpush1.msra.mxu0 0.0
    %2140 = vmatprep.subr.mxu0 0.0
    %2141 = vmatpush1.msra.mxu0 0.0
    %2142 = vmatprep.subr.mxu0 0.0
    %2143 = vmatpush1.msra.mxu0 0.0
    %2144 = vmatprep.subr.mxu0 0.0
    %2145 = vmatpush1.msra.mxu0 0.0
    %2146 = vmatprep.subr.mxu0 0.0
    %2147 = vmatpush1.msra.mxu0 0.0
    %2148 = vmatprep.subr.mxu0 0.0
    %2149 = vmatpush1.msra.mxu0 0.0
    %2150 = vmatprep.subr.mxu0 0.0
    %2151 = vmatpush1.msra.mxu0 0.0
    %2152 = vmatprep.subr.mxu0 0.0
    %2153 = vmatpush1.msra.mxu0 0.0
    %2154 = vmatprep.subr.mxu0 0.0
    %2155 = vmatpush1.msra.mxu0 0.0
    %2156 = vmatprep.subr.mxu0 0.0
    %2157 = vmatpush1.msra.mxu0 0.0
    %2158 = vmatprep.subr.mxu0 0.0
    %2159 = vmatpush1.msra.mxu0 0.0
    %2160 = vmatprep.subr.mxu0 0.0
    %2161 = vmatpush1.msra.mxu0 0.0
    %2162 = vmatprep.subr.mxu0 0.0
    %2163 = vmatpush1.msra.mxu0 0.0
    %2164 = vmatprep.subr.mxu0 0.0
    %2165 = vmatpush1.msra.mxu0 0.0
    %2166 = vmatprep.subr.mxu0 0.0
    %2167 = vmatpush1.msra.mxu0 0.0
    %2168 = vmatprep.subr.mxu0 0.0
    %2169 = vmatpush1.msra.mxu0 0.0
    %2170 = vmatprep.subr.mxu0 0.0
    %2171 = vmatpush1.msra.mxu0 0.0
    %2172 = vmatprep.subr.mxu0 0.0
    %2173 = vmatpush1.msra.mxu0 0.0
    %2174 = vmatprep.subr.mxu0 0.0
    %2175 = vmatpush1.msra.mxu0 0.0
    %2176 = vmatprep.subr.mxu0 0.0
    %2177 = vmatpush1.msra.mxu0 0.0
    %2178 = vmatprep.subr.mxu0 0.0
    %2179 = vmatpush1.msra.mxu0 0.0
    %2180 = vmatprep.mubr.f32.mxu0 0.0
    %2181 = vmatmul.mubr.f32.gmra.mrb[0].mxu0 %v2111
    %v2182 = vpop.f32.mrb[0].mxu0
    %v2183 = vadd.f32 %v2109, %v2182
    %v2184 = vpop.f32.mrb[0].mxu0
    %2185 = vmatprep.mubr.f32.mxu0 0.0
    %2186 = vmatmul.mubr.f32.gmra.mrb[0].mxu0 %v2114
    %v2187 = vpop.f32.mrb[0].mxu0
    %v2188 = vadd.f32 %v2109, %v2187
    %v2189 = vpop.f32.mrb[0].mxu0
    %2190 = vdwg.mxu0
    %v2191 = vld [vmem:[#allocation5 + $0x690] sm:$0xff]
    %v2192 = vld [vmem:[#allocation5 + $0x698] sm:$0xff]
    %v2193 = vld [vmem:[#allocation5 + $0x6a0] sm:$0xff]
    %v2194 = vld [vmem:[#allocation5 + $0x6a8] sm:$0xff]
    %v2195 = vld [vmem:[#allocation5 + $0x6b0] sm:$0x1]
    %v2196 = vld [vmem:[#allocation5 + $0x6b8] sm:$0xff]
    %v2197 = vld [vmem:[#allocation5 + $0x6c0] sm:$0xff]
    %v2198 = vld [vmem:[#allocation5 + $0x6c8] sm:$0xff]
    %v2199 = vld [vmem:[#allocation5 + $0x6d0] sm:$0xff]
    %v2200 = vld [vmem:[#allocation5 + $0x6d8] sm:$0x1]
    %vm2201 = vcmask 261120
    %v2203 = vsel %vm2201, %v2094, 0
    %2205 = vmatprep.subr.mxu0 0.0
    %2206 = vmatpush1.msra.mxu0 %v2191
    %2207 = vmatprep.subr.mxu0 0.0
    %2208 = vmatpush1.msra.mxu0 %v2192
    %2209 = vmatprep.subr.mxu0 0.0
    %2210 = vmatpush1.msra.mxu0 %v2193
    %2211 = vmatprep.subr.mxu0 0.0
    %2212 = vmatpush1.msra.mxu0 %v2194
    %2213 = vmatprep.subr.mxu0 0.0
    %2214 = vmatpush1.msra.mxu0 0.0
    %2215 = vmatprep.subr.mxu0 0.0
    %2216 = vmatpush1.msra.mxu0 0.0
    %2217 = vmatprep.subr.mxu0 0.0
    %2218 = vmatpush1.msra.mxu0 0.0
    %2219 = vmatprep.subr.mxu0 0.0
    %2220 = vmatpush1.msra.mxu0 0.0
    %2221 = vmatprep.subr.mxu0 0.0
    %2222 = vmatpush1.msra.mxu0 0.0
    %2223 = vmatprep.subr.mxu0 0.0
    %2224 = vmatpush1.msra.mxu0 0.0
    %2225 = vmatprep.subr.mxu0 0.0
    %2226 = vmatpush1.msra.mxu0 0.0
    %2227 = vmatprep.subr.mxu0 0.0
    %2228 = vmatpush1.msra.mxu0 0.0
    %2229 = vmatprep.subr.mxu0 0.0
    %2230 = vmatpush1.msra.mxu0 0.0
    %2231 = vmatprep.subr.mxu0 0.0
    %2232 = vmatpush1.msra.mxu0 0.0
    %2233 = vmatprep.subr.mxu0 0.0
    %2234 = vmatpush1.msra.mxu0 0.0
    %2235 = vmatprep.subr.mxu0 0.0
    %2236 = vmatpush1.msra.mxu0 0.0
    %2237 = vmatprep.subr.mxu0 0.0
    %2238 = vmatpush1.msra.mxu0 0.0
    %2239 = vmatprep.subr.mxu0 0.0
    %2240 = vmatpush1.msra.mxu0 0.0
    %2241 = vmatprep.subr.mxu0 0.0
    %2242 = vmatpush1.msra.mxu0 0.0
    %2243 = vmatprep.subr.mxu0 0.0
    %2244 = vmatpush1.msra.mxu0 0.0
    %2245 = vmatprep.subr.mxu0 0.0
    %2246 = vmatpush1.msra.mxu0 0.0
    %2247 = vmatprep.subr.mxu0 0.0
    %2248 = vmatpush1.msra.mxu0 0.0
    %2249 = vmatprep.subr.mxu0 0.0
    %2250 = vmatpush1.msra.mxu0 0.0
    %2251 = vmatprep.subr.mxu0 0.0
    %2252 = vmatpush1.msra.mxu0 0.0
    %2253 = vmatprep.subr.mxu0 0.0
    %2254 = vmatpush1.msra.mxu0 0.0
    %2255 = vmatprep.subr.mxu0 0.0
    %2256 = vmatpush1.msra.mxu0 0.0
    %2257 = vmatprep.subr.mxu0 0.0
    %2258 = vmatpush1.msra.mxu0 0.0
    %2259 = vmatprep.subr.mxu0 0.0
    %2260 = vmatpush1.msra.mxu0 0.0
    %2261 = vmatprep.subr.mxu0 0.0
    %2262 = vmatpush1.msra.mxu0 0.0
    %2263 = vmatprep.subr.mxu0 0.0
    %2264 = vmatpush1.msra.mxu0 0.0
    %2265 = vmatprep.subr.mxu0 0.0
    %2266 = vmatpush1.msra.mxu0 0.0
    %2267 = vmatprep.subr.mxu0 0.0
    %2268 = vmatpush1.msra.mxu0 0.0
    %2269 = vmatprep.mubr.f32.mxu0 0.0
    %2270 = vmatmul.mubr.f32.gmra.mrb[0].mxu0 %v2203
    %v2271 = vpop.f32.mrb[0].mxu0
    %v2272 = vadd.f32 0.0, %v2271
    %v2273 = vpop.f32.mrb[0].mxu0
    %2274 = vdwg.mxu0
    %v2276 = vrot.slane %v2272, 1
    %v2279 = vadd.f32 %v2183, %v2272
    %v2280 = vadd.f32 %v2188, %v2276
    %v2281 = vxor.u32 %v2279, 2147483648
    %v2282 = vxor.u32 %v2280, 2147483648
    %v2283 = vmul.f32 %v2281, 1.442695
    %v2284 = vpow.pop %v2283
    %v2285 = vmul.f32 %v2282, 1.442695
    %v2286 = vpow.pop %v2285
    %v2287 = vadd.f32 %v2284, 1.0
    %v2288 = vadd.f32 %v2286, 1.0
    %v2289 = vrcp.pop %v2287
    %v2290 = vmul.f32 1.0, %v2289
    %v2291 = vrcp.pop %v2288
    %v2292 = vmul.f32 1.0, %v2291
    %v2293 = vlaneseq
    %v2294 = vshrl.u32 %v2293, 7
    %v2295 = vsub.s32 0, %v2294
    %v2296 = vrot.slane %v2195, %v2295
    %2298 = vrot.lane.b32.xlu0 %v2296, 64
    %v2299 = vpop.permute.xlu0 %2298
    %v2301 = vadd.f32 %v2272, %v2299
    %v2303 = vrot.slane %v2301, 1
    %2304 = vrot.lane.b32.xlu0 %v2301, 64
    %v2305 = vpop.permute.xlu0 %2304
    %2306 = vrot.lane.b32.xlu0 %v2303, 64
    %v2307 = vpop.permute.xlu0 %2306
    %v2310 = vmul.f32 %v2290, %v2305
    %v2311 = vmul.f32 %v2292, %v2307
    %2314 = vrot.lane.b32.xlu0 %v2310, 64
    %v2315 = vpop.permute.xlu0 %2314
    %2316 = vrot.lane.b32.xlu0 %v2311, 64
    %v2317 = vpop.permute.xlu0 %2316
    %v2320 = vadd.f32 %v2183, %v2315
    %v2321 = vadd.f32 %v2188, %v2317
    %v2322 = vtanh.pop %v2320
    %v2323 = vtanh.pop %v2321
    %v2324 = vsub.f32 1.0, %v2290
    %v2325 = vsub.f32 1.0, %v2292
    %2328 = vrot.lane.b32.xlu0 %v2322, 96
    %v2329 = vpop.permute.xlu0 %2328
    %2330 = vrot.lane.b32.xlu0 %v2323, 96
    %v2331 = vpop.permute.xlu0 %2330
    %v2334 = vmul.f32 %v2324, %v2329
    %v2335 = vmul.f32 %v2325, %v2331
    %v2336 = vrot.slane %v2094, 1
    %2337 = vrot.lane.b32.xlu0 %v2094, 32
    %v2338 = vpop.permute.xlu0 %2337
    %2339 = vrot.lane.b32.xlu0 %v2336, 32
    %v2340 = vpop.permute.xlu0 %2339
    %v2343 = vmul.f32 %v2290, %v2338
    %v2344 = vmul.f32 %v2292, %v2340
    %v2345 = vadd.f32 %v2334, %v2343
    %v2346 = vadd.f32 %v2335, %v2344
    %v2347 = vlaneseq
    %v2348 = vshrl.u32 %v2347, 7
    %v2349 = vsub.s32 0, %v2348
    %v2350 = vrot.slane %v2200, %v2349
    %v2353 = vrot.slane %v2346, 7
    %vm2354 = vcmask 1041409
    %v2355 = vsel %vm2354, %v2353, %v2345
    %2356 = vrot.lane.b32.xlu0 %v2355, 96
    %v2357 = vpop.permute.xlu0 %2356
    %v2358 = vsel %vm2201, %v2357, 0
    %2360 = vmatprep.subr.mxu0 0.0
    %2361 = vmatpush1.msra.mxu0 %v2196
    %2362 = vmatprep.subr.mxu0 0.0
    %2363 = vmatpush1.msra.mxu0 %v2197
    %2364 = vmatprep.subr.mxu0 0.0
    %2365 = vmatpush1.msra.mxu0 %v2198
    %2366 = vmatprep.subr.mxu0 0.0
    %2367 = vmatpush1.msra.mxu0 %v2199
    %2368 = vmatprep.subr.mxu0 0.0
    %2369 = vmatpush1.msra.mxu0 0.0
    %2370 = vmatprep.subr.mxu0 0.0
    %2371 = vmatpush1.msra.mxu0 0.0
    %2372 = vmatprep.subr.mxu0 0.0
    %2373 = vmatpush1.msra.mxu0 0.0
    %2374 = vmatprep.subr.mxu0 0.0
    %2375 = vmatpush1.msra.mxu0 0.0
    %2376 = vmatprep.subr.mxu0 0.0
    %2377 = vmatpush1.msra.mxu0 0.0
    %2378 = vmatprep.subr.mxu0 0.0
    %2379 = vmatpush1.msra.mxu0 0.0
    %2380 = vmatprep.subr.mxu0 0.0
    %2381 = vmatpush1.msra.mxu0 0.0
    %2382 = vmatprep.subr.mxu0 0.0
    %2383 = vmatpush1.msra.mxu0 0.0
    %2384 = vmatprep.subr.mxu0 0.0
    %2385 = vmatpush1.msra.mxu0 0.0
    %2386 = vmatprep.subr.mxu0 0.0
    %2387 = vmatpush1.msra.mxu0 0.0
    %2388 = vmatprep.subr.mxu0 0.0
    %2389 = vmatpush1.msra.mxu0 0.0
    %2390 = vmatprep.subr.mxu0 0.0
    %2391 = vmatpush1.msra.mxu0 0.0
    %2392 = vmatprep.subr.mxu0 0.0
    %2393 = vmatpush1.msra.mxu0 0.0
    %2394 = vmatprep.subr.mxu0 0.0
    %2395 = vmatpush1.msra.mxu0 0.0
    %2396 = vmatprep.subr.mxu0 0.0
    %2397 = vmatpush1.msra.mxu0 0.0
    %2398 = vmatprep.subr.mxu0 0.0
    %2399 = vmatpush1.msra.mxu0 0.0
    %2400 = vmatprep.subr.mxu0 0.0
    %2401 = vmatpush1.msra.mxu0 0.0
    %2402 = vmatprep.subr.mxu0 0.0
    %2403 = vmatpush1.msra.mxu0 0.0
    %2404 = vmatprep.subr.mxu0 0.0
    %2405 = vmatpush1.msra.mxu0 0.0
    %2406 = vmatprep.subr.mxu0 0.0
    %2407 = vmatpush1.msra.mxu0 0.0
    %2408 = vmatprep.subr.mxu0 0.0
    %2409 = vmatpush1.msra.mxu0 0.0
    %2410 = vmatprep.subr.mxu0 0.0
    %2411 = vmatpush1.msra.mxu0 0.0
    %2412 = vmatprep.subr.mxu0 0.0
    %2413 = vmatpush1.msra.mxu0 0.0
    %2414 = vmatprep.subr.mxu0 0.0
    %2415 = vmatpush1.msra.mxu0 0.0
    %2416 = vmatprep.subr.mxu0 0.0
    %2417 = vmatpush1.msra.mxu0 0.0
    %2418 = vmatprep.subr.mxu0 0.0
    %2419 = vmatpush1.msra.mxu0 0.0
    %2420 = vmatprep.subr.mxu0 0.0
    %2421 = vmatpush1.msra.mxu0 0.0
    %2422 = vmatprep.subr.mxu0 0.0
    %2423 = vmatpush1.msra.mxu0 0.0
    %2424 = vmatprep.mubr.f32.mxu0 0.0
    %2425 = vmatmul.mubr.f32.gmra.mrb[0].mxu0 %v2358
    %v2426 = vpop.f32.mrb[0].mxu0
    %v2427 = vadd.f32 %v2350, %v2426
    %v2428 = vpop.f32.mrb[0].mxu0
    %2429 = vdwg.mxu0
    %2430 = vmatprep.subr.mxu0 0.0
    %2431 = vmatpush1.msra.mxu0 %v2191
    %2432 = vmatprep.subr.mxu0 0.0
    %2433 = vmatpush1.msra.mxu0 %v2192
    %2434 = vmatprep.subr.mxu0 0.0
    %2435 = vmatpush1.msra.mxu0 %v2193
    %2436 = vmatprep.subr.mxu0 0.0
    %2437 = vmatpush1.msra.mxu0 %v2194
    %2438 = vmatprep.subr.mxu0 0.0
    %2439 = vmatpush1.msra.mxu0 0.0
    %2440 = vmatprep.subr.mxu0 0.0
    %2441 = vmatpush1.msra.mxu0 0.0
    %2442 = vmatprep.subr.mxu0 0.0
    %2443 = vmatpush1.msra.mxu0 0.0
    %2444 = vmatprep.subr.mxu0 0.0
    %2445 = vmatpush1.msra.mxu0 0.0
    %2446 = vmatprep.subr.mxu0 0.0
    %2447 = vmatpush1.msra.mxu0 0.0
    %2448 = vmatprep.subr.mxu0 0.0
    %2449 = vmatpush1.msra.mxu0 0.0
    %2450 = vmatprep.subr.mxu0 0.0
    %2451 = vmatpush1.msra.mxu0 0.0
    %2452 = vmatprep.subr.mxu0 0.0
    %2453 = vmatpush1.msra.mxu0 0.0
    %2454 = vmatprep.subr.mxu0 0.0
    %2455 = vmatpush1.msra.mxu0 0.0
    %2456 = vmatprep.subr.mxu0 0.0
    %2457 = vmatpush1.msra.mxu0 0.0
    %2458 = vmatprep.subr.mxu0 0.0
    %2459 = vmatpush1.msra.mxu0 0.0
    %2460 = vmatprep.subr.mxu0 0.0
    %2461 = vmatpush1.msra.mxu0 0.0
    %2462 = vmatprep.subr.mxu0 0.0
    %2463 = vmatpush1.msra.mxu0 0.0
    %2464 = vmatprep.subr.mxu0 0.0
    %2465 = vmatpush1.msra.mxu0 0.0
    %2466 = vmatprep.subr.mxu0 0.0
    %2467 = vmatpush1.msra.mxu0 0.0
    %2468 = vmatprep.subr.mxu0 0.0
    %2469 = vmatpush1.msra.mxu0 0.0
    %2470 = vmatprep.subr.mxu0 0.0
    %2471 = vmatpush1.msra.mxu0 0.0
    %2472 = vmatprep.subr.mxu0 0.0
    %2473 = vmatpush1.msra.mxu0 0.0
    %2474 = vmatprep.subr.mxu0 0.0
    %2475 = vmatpush1.msra.mxu0 0.0
    %2476 = vmatprep.subr.mxu0 0.0
    %2477 = vmatpush1.msra.mxu0 0.0
    %2478 = vmatprep.subr.mxu0 0.0
    %2479 = vmatpush1.msra.mxu0 0.0
    %2480 = vmatprep.subr.mxu0 0.0
    %2481 = vmatpush1.msra.mxu0 0.0
    %2482 = vmatprep.subr.mxu0 0.0
    %2483 = vmatpush1.msra.mxu0 0.0
    %2484 = vmatprep.subr.mxu0 0.0
    %2485 = vmatpush1.msra.mxu0 0.0
    %2486 = vmatprep.subr.mxu0 0.0
    %2487 = vmatpush1.msra.mxu0 0.0
    %2488 = vmatprep.subr.mxu0 0.0
    %2489 = vmatpush1.msra.mxu0 0.0
    %2490 = vmatprep.subr.mxu0 0.0
    %2491 = vmatpush1.msra.mxu0 0.0
    %2492 = vmatprep.subr.mxu0 0.0
    %2493 = vmatpush1.msra.mxu0 0.0
    %2494 = vmatprep.mubr.f32.mxu0 0.0
    %2495 = vmatmul.mubr.f32.gmra.mrb[0].mxu0 %v2358
    %v2496 = vpop.f32.mrb[0].mxu0
    %v2497 = vadd.f32 0.0, %v2496
    %v2498 = vpop.f32.mrb[0].mxu0
    %2499 = vdwg.mxu0
    %v2501 = vrot.slane %v2497, 7
    %v2504 = vadd.f32 %v2183, %v2501
    %v2505 = vadd.f32 %v2188, %v2497
    %v2506 = vxor.u32 %v2504, 2147483648
    %v2507 = vxor.u32 %v2505, 2147483648
    %v2508 = vmul.f32 %v2506, 1.442695
    %v2509 = vpow.pop %v2508
    %v2510 = vmul.f32 %v2507, 1.442695
    %v2511 = vpow.pop %v2510
    %v2512 = vadd.f32 %v2509, 1.0
    %v2513 = vadd.f32 %v2511, 1.0
    %v2514 = vrcp.pop %v2512
    %v2515 = vmul.f32 1.0, %v2514
    %v2516 = vrcp.pop %v2513
    %v2517 = vmul.f32 1.0, %v2516
    %v2518 = vadd.f32 %v2497, %v2299
    %v2520 = vrot.slane %v2518, 7
    %2521 = vrot.lane.b32.xlu0 %v2520, 64
    %v2522 = vpop.permute.xlu0 %2521
    %2523 = vrot.lane.b32.xlu0 %v2518, 64
    %v2524 = vpop.permute.xlu0 %2523
    %v2527 = vmul.f32 %v2515, %v2522
    %v2528 = vmul.f32 %v2517, %v2524
    %2531 = vrot.lane.b32.xlu0 %v2527, 64
    %v2532 = vpop.permute.xlu0 %2531
    %2533 = vrot.lane.b32.xlu0 %v2528, 64
    %v2534 = vpop.permute.xlu0 %2533
    %v2537 = vadd.f32 %v2183, %v2532
    %v2538 = vadd.f32 %v2188, %v2534
    %v2539 = vtanh.pop %v2537
    %v2540 = vtanh.pop %v2538
    %v2541 = vsub.f32 1.0, %v2515
    %v2542 = vsub.f32 1.0, %v2517
    %2545 = vrot.lane.b32.xlu0 %v2539, 96
    %v2546 = vpop.permute.xlu0 %2545
    %2547 = vrot.lane.b32.xlu0 %v2540, 96
    %v2548 = vpop.permute.xlu0 %2547
    %v2551 = vmul.f32 %v2541, %v2546
    %v2552 = vmul.f32 %v2542, %v2548
    %v2553 = vrot.slane %v2345, 7
    %v2556 = vmul.f32 %v2515, %v2553
    %v2557 = vmul.f32 %v2517, %v2353
    %v2558 = vadd.f32 %v2551, %v2556
    %v2559 = vadd.f32 %v2552, %v2557
    %v2562 = vrot.slane %v2558, 1
    %v2563 = vsel %vm2354, %v2559, %v2562
    %2564 = vrot.lane.b32.xlu0 %v2563, 96
    %v2565 = vpop.permute.xlu0 %2564
    %v2566 = vsel %vm2201, %v2565, 0
    %2568 = vmatprep.subr.mxu0 0.0
    %2569 = vmatpush1.msra.mxu0 %v2196
    %2570 = vmatprep.subr.mxu0 0.0
    %2571 = vmatpush1.msra.mxu0 %v2197
    %2572 = vmatprep.subr.mxu0 0.0
    %2573 = vmatpush1.msra.mxu0 %v2198
    %2574 = vmatprep.subr.mxu0 0.0
    %2575 = vmatpush1.msra.mxu0 %v2199
    %2576 = vmatprep.subr.mxu0 0.0
    %2577 = vmatpush1.msra.mxu0 0.0
    %2578 = vmatprep.subr.mxu0 0.0
    %2579 = vmatpush1.msra.mxu0 0.0
    %2580 = vmatprep.subr.mxu0 0.0
    %2581 = vmatpush1.msra.mxu0 0.0
    %2582 = vmatprep.subr.mxu0 0.0
    %2583 = vmatpush1.msra.mxu0 0.0
    %2584 = vmatprep.subr.mxu0 0.0
    %2585 = vmatpush1.msra.mxu0 0.0
    %2586 = vmatprep.subr.mxu0 0.0
    %2587 = vmatpush1.msra.mxu0 0.0
    %2588 = vmatprep.subr.mxu0 0.0
    %2589 = vmatpush1.msra.mxu0 0.0
    %2590 = vmatprep.subr.mxu0 0.0
    %2591 = vmatpush1.msra.mxu0 0.0
    %2592 = vmatprep.subr.mxu0 0.0
    %2593 = vmatpush1.msra.mxu0 0.0
    %2594 = vmatprep.subr.mxu0 0.0
    %2595 = vmatpush1.msra.mxu0 0.0
    %2596 = vmatprep.subr.mxu0 0.0
    %2597 = vmatpush1.msra.mxu0 0.0
    %2598 = vmatprep.subr.mxu0 0.0
    %2599 = vmatpush1.msra.mxu0 0.0
    %2600 = vmatprep.subr.mxu0 0.0
    %2601 = vmatpush1.msra.mxu0 0.0
    %2602 = vmatprep.subr.mxu0 0.0
    %2603 = vmatpush1.msra.mxu0 0.0
    %2604 = vmatprep.subr.mxu0 0.0
    %2605 = vmatpush1.msra.mxu0 0.0
    %2606 = vmatprep.subr.mxu0 0.0
    %2607 = vmatpush1.msra.mxu0 0.0
    %2608 = vmatprep.subr.mxu0 0.0
    %2609 = vmatpush1.msra.mxu0 0.0
    %2610 = vmatprep.subr.mxu0 0.0
    %2611 = vmatpush1.msra.mxu0 0.0
    %2612 = vmatprep.subr.mxu0 0.0
    %2613 = vmatpush1.msra.mxu0 0.0
    %2614 = vmatprep.subr.mxu0 0.0
    %2615 = vmatpush1.msra.mxu0 0.0
    %2616 = vmatprep.subr.mxu0 0.0
    %2617 = vmatpush1.msra.mxu0 0.0
    %2618 = vmatprep.subr.mxu0 0.0
    %2619 = vmatpush1.msra.mxu0 0.0
    %2620 = vmatprep.subr.mxu0 0.0
    %2621 = vmatpush1.msra.mxu0 0.0
    %2622 = vmatprep.subr.mxu0 0.0
    %2623 = vmatpush1.msra.mxu0 0.0
    %2624 = vmatprep.subr.mxu0 0.0
    %2625 = vmatpush1.msra.mxu0 0.0
    %2626 = vmatprep.subr.mxu0 0.0
    %2627 = vmatpush1.msra.mxu0 0.0
    %2628 = vmatprep.subr.mxu0 0.0
    %2629 = vmatpush1.msra.mxu0 0.0
    %2630 = vmatprep.subr.mxu0 0.0
    %2631 = vmatpush1.msra.mxu0 0.0
    %2632 = vmatprep.mubr.f32.mxu0 0.0
    %2633 = vmatmul.mubr.f32.gmra.mrb[0].mxu0 %v2566
    %v2634 = vpop.f32.mrb[0].mxu0
    %v2635 = vadd.f32 0.0, %v2634
    %v2636 = vpop.f32.mrb[0].mxu0
    %2637 = vdwg.mxu0
    %v2638 = vadd.f32 %v2427, %v2635
    %v2639 = vadd.f32 %v2638, %v2350
    %2640 = vmatprep.subr.mxu0 0.0
    %2641 = vmatpush1.msra.mxu0 %v2191
    %2642 = vmatprep.subr.mxu0 0.0
    %2643 = vmatpush1.msra.mxu0 %v2192
    %2644 = vmatprep.subr.mxu0 0.0
    %2645 = vmatpush1.msra.mxu0 %v2193
    %2646 = vmatprep.subr.mxu0 0.0
    %2647 = vmatpush1.msra.mxu0 %v2194
    %2648 = vmatprep.subr.mxu0 0.0
    %2649 = vmatpush1.msra.mxu0 0.0
    %2650 = vmatprep.subr.mxu0 0.0
    %2651 = vmatpush1.msra.mxu0 0.0
    %2652 = vmatprep.subr.mxu0 0.0
    %2653 = vmatpush1.msra.mxu0 0.0
    %2654 = vmatprep.subr.mxu0 0.0
    %2655 = vmatpush1.msra.mxu0 0.0
    %2656 = vmatprep.subr.mxu0 0.0
    %2657 = vmatpush1.msra.mxu0 0.0
    %2658 = vmatprep.subr.mxu0 0.0
    %2659 = vmatpush1.msra.mxu0 0.0
    %2660 = vmatprep.subr.mxu0 0.0
    %2661 = vmatpush1.msra.mxu0 0.0
    %2662 = vmatprep.subr.mxu0 0.0
    %2663 = vmatpush1.msra.mxu0 0.0
    %2664 = vmatprep.subr.mxu0 0.0
    %2665 = vmatpush1.msra.mxu0 0.0
    %2666 = vmatprep.subr.mxu0 0.0
    %2667 = vmatpush1.msra.mxu0 0.0
    %2668 = vmatprep.subr.mxu0 0.0
    %2669 = vmatpush1.msra.mxu0 0.0
    %2670 = vmatprep.subr.mxu0 0.0
    %2671 = vmatpush1.msra.mxu0 0.0
    %2672 = vmatprep.subr.mxu0 0.0
    %2673 = vmatpush1.msra.mxu0 0.0
    %2674 = vmatprep.subr.mxu0 0.0
    %2675 = vmatpush1.msra.mxu0 0.0
    %2676 = vmatprep.subr.mxu0 0.0
    %2677 = vmatpush1.msra.mxu0 0.0
    %2678 = vmatprep.subr.mxu0 0.0
    %2679 = vmatpush1.msra.mxu0 0.0
    %2680 = vmatprep.subr.mxu0 0.0
    %2681 = vmatpush1.msra.mxu0 0.0
    %2682 = vmatprep.subr.mxu0 0.0
    %2683 = vmatpush1.msra.mxu0 0.0
    %2684 = vmatprep.subr.mxu0 0.0
    %2685 = vmatpush1.msra.mxu0 0.0
    %2686 = vmatprep.subr.mxu0 0.0
    %2687 = vmatpush1.msra.mxu0 0.0
    %2688 = vmatprep.subr.mxu0 0.0
    %2689 = vmatpush1.msra.mxu0 0.0
    %2690 = vmatprep.subr.mxu0 0.0
    %2691 = vmatpush1.msra.mxu0 0.0
    %2692 = vmatprep.subr.mxu0 0.0
    %2693 = vmatpush1.msra.mxu0 0.0
    %2694 = vmatprep.subr.mxu0 0.0
    %2695 = vmatpush1.msra.mxu0 0.0
    %2696 = vmatprep.subr.mxu0 0.0
    %2697 = vmatpush1.msra.mxu0 0.0
    %2698 = vmatprep.subr.mxu0 0.0
    %2699 = vmatpush1.msra.mxu0 0.0
    %2700 = vmatprep.subr.mxu0 0.0
    %2701 = vmatpush1.msra.mxu0 0.0
    %2702 = vmatprep.subr.mxu0 0.0
    %2703 = vmatpush1.msra.mxu0 0.0
    %2704 = vmatprep.mubr.f32.mxu0 0.0
    %2705 = vmatmul.mubr.f32.gmra.mrb[0].mxu0 %v2566
    %v2706 = vpop.f32.mrb[0].mxu0
    %v2707 = vadd.f32 0.0, %v2706
    %v2708 = vpop.f32.mrb[0].mxu0
    %2709 = vdwg.mxu0
    %v2711 = vrot.slane %v2707, 6
    %v2712 = vrot.slane %v2707, 7
    %v2715 = vadd.f32 %v2183, %v2711
    %v2716 = vadd.f32 %v2188, %v2712
    %v2717 = vxor.u32 %v2715, 2147483648
    %v2718 = vxor.u32 %v2716, 2147483648
    %v2719 = vmul.f32 %v2717, 1.442695
    %v2720 = vpow.pop %v2719
    %v2721 = vmul.f32 %v2718, 1.442695
    %v2722 = vpow.pop %v2721
    %v2723 = vadd.f32 %v2720, 1.0
    %v2724 = vadd.f32 %v2722, 1.0
    %v2725 = vrcp.pop %v2723
    %v2726 = vmul.f32 1.0, %v2725
    %v2727 = vrcp.pop %v2724
    %v2728 = vmul.f32 1.0, %v2727
    %v2729 = vadd.f32 %v2707, %v2299
    %v2731 = vrot.slane %v2729, 6
    %v2732 = vrot.slane %v2729, 7
    %2733 = vrot.lane.b32.xlu0 %v2731, 64
    %v2734 = vpop.permute.xlu0 %2733
    %2735 = vrot.lane.b32.xlu0 %v2732, 64
    %v2736 = vpop.permute.xlu0 %2735
    %v2739 = vmul.f32 %v2726, %v2734
    %v2740 = vmul.f32 %v2728, %v2736
    %2743 = vrot.lane.b32.xlu0 %v2739, 64
    %v2744 = vpop.permute.xlu0 %2743
    %2745 = vrot.lane.b32.xlu0 %v2740, 64
    %v2746 = vpop.permute.xlu0 %2745
    %v2749 = vadd.f32 %v2183, %v2744
    %v2750 = vadd.f32 %v2188, %v2746
    %v2751 = vtanh.pop %v2749
    %v2752 = vtanh.pop %v2750
    %v2753 = vsub.f32 1.0, %v2726
    %v2754 = vsub.f32 1.0, %v2728
    %2757 = vrot.lane.b32.xlu0 %v2751, 96
    %v2758 = vpop.permute.xlu0 %2757
    %2759 = vrot.lane.b32.xlu0 %v2752, 96
    %v2760 = vpop.permute.xlu0 %2759
    %v2763 = vmul.f32 %v2753, %v2758
    %v2764 = vmul.f32 %v2754, %v2760
    %v2765 = vrot.slane %v2558, 7
    %v2766 = vrot.slane %v2559, 7
    %v2769 = vmul.f32 %v2726, %v2765
    %v2770 = vmul.f32 %v2728, %v2766
    %v2771 = vadd.f32 %v2763, %v2769
    %v2772 = vadd.f32 %v2764, %v2770
    %v2775 = vrot.slane %v2771, 2
    %v2776 = vrot.slane %v2772, 1
    %v2777 = vsel %vm2354, %v2776, %v2775
    %2778 = vrot.lane.b32.xlu0 %v2777, 96
    %v2779 = vpop.permute.xlu0 %2778
    %v2780 = vsel %vm2201, %v2779, 0
    %2782 = vmatprep.subr.mxu0 0.0
    %2783 = vmatpush1.msra.mxu0 %v2196
    %2784 = vmatprep.subr.mxu0 0.0
    %2785 = vmatpush1.msra.mxu0 %v2197
    %2786 = vmatprep.subr.mxu0 0.0
    %2787 = vmatpush1.msra.mxu0 %v2198
    %2788 = vmatprep.subr.mxu0 0.0
    %2789 = vmatpush1.msra.mxu0 %v2199
    %2790 = vmatprep.subr.mxu0 0.0
    %2791 = vmatpush1.msra.mxu0 0.0
    %2792 = vmatprep.subr.mxu0 0.0
    %2793 = vmatpush1.msra.mxu0 0.0
    %2794 = vmatprep.subr.mxu0 0.0
    %2795 = vmatpush1.msra.mxu0 0.0
    %2796 = vmatprep.subr.mxu0 0.0
    %2797 = vmatpush1.msra.mxu0 0.0
    %2798 = vmatprep.subr.mxu0 0.0
    %2799 = vmatpush1.msra.mxu0 0.0
    %2800 = vmatprep.subr.mxu0 0.0
    %2801 = vmatpush1.msra.mxu0 0.0
    %2802 = vmatprep.subr.mxu0 0.0
    %2803 = vmatpush1.msra.mxu0 0.0
    %2804 = vmatprep.subr.mxu0 0.0
    %2805 = vmatpush1.msra.mxu0 0.0
    %2806 = vmatprep.subr.mxu0 0.0
    %2807 = vmatpush1.msra.mxu0 0.0
    %2808 = vmatprep.subr.mxu0 0.0
    %2809 = vmatpush1.msra.mxu0 0.0
    %2810 = vmatprep.subr.mxu0 0.0
    %2811 = vmatpush1.msra.mxu0 0.0
    %2812 = vmatprep.subr.mxu0 0.0
    %2813 = vmatpush1.msra.mxu0 0.0
    %2814 = vmatprep.subr.mxu0 0.0
    %2815 = vmatpush1.msra.mxu0 0.0
    %2816 = vmatprep.subr.mxu0 0.0
    %2817 = vmatpush1.msra.mxu0 0.0
    %2818 = vmatprep.subr.mxu0 0.0
    %2819 = vmatpush1.msra.mxu0 0.0
    %2820 = vmatprep.subr.mxu0 0.0
    %2821 = vmatpush1.msra.mxu0 0.0
    %2822 = vmatprep.subr.mxu0 0.0
    %2823 = vmatpush1.msra.mxu0 0.0
    %2824 = vmatprep.subr.mxu0 0.0
    %2825 = vmatpush1.msra.mxu0 0.0
    %2826 = vmatprep.subr.mxu0 0.0
    %2827 = vmatpush1.msra.mxu0 0.0
    %2828 = vmatprep.subr.mxu0 0.0
    %2829 = vmatpush1.msra.mxu0 0.0
    %2830 = vmatprep.subr.mxu0 0.0
    %2831 = vmatpush1.msra.mxu0 0.0
    %2832 = vmatprep.subr.mxu0 0.0
    %2833 = vmatpush1.msra.mxu0 0.0
    %2834 = vmatprep.subr.mxu0 0.0
    %2835 = vmatpush1.msra.mxu0 0.0
    %2836 = vmatprep.subr.mxu0 0.0
    %2837 = vmatpush1.msra.mxu0 0.0
    %2838 = vmatprep.subr.mxu0 0.0
    %2839 = vmatpush1.msra.mxu0 0.0
    %2840 = vmatprep.subr.mxu0 0.0
    %2841 = vmatpush1.msra.mxu0 0.0
    %2842 = vmatprep.subr.mxu0 0.0
    %2843 = vmatpush1.msra.mxu0 0.0
    %2844 = vmatprep.subr.mxu0 0.0
    %2845 = vmatpush1.msra.mxu0 0.0
    %2846 = vmatprep.mubr.f32.mxu0 0.0
    %2847 = vmatmul.mubr.f32.gmra.mrb[0].mxu0 %v2780
    %v2848 = vpop.f32.mrb[0].mxu0
    %v2849 = vadd.f32 0.0, %v2848
    %v2850 = vpop.f32.mrb[0].mxu0
    %2851 = vdwg.mxu0
    %v2852 = vadd.f32 %v2639, %v2849
    %v2853 = vadd.f32 %v2852, %v2350
    %2854 = vmatprep.subr.mxu0 0.0
    %2855 = vmatpush1.msra.mxu0 %v2191
    %2856 = vmatprep.subr.mxu0 0.0
    %2857 = vmatpush1.msra.mxu0 %v2192
    %2858 = vmatprep.subr.mxu0 0.0
    %2859 = vmatpush1.msra.mxu0 %v2193
    %2860 = vmatprep.subr.mxu0 0.0
    %2861 = vmatpush1.msra.mxu0 %v2194
    %2862 = vmatprep.subr.mxu0 0.0
    %2863 = vmatpush1.msra.mxu0 0.0
    %2864 = vmatprep.subr.mxu0 0.0
    %2865 = vmatpush1.msra.mxu0 0.0
    %2866 = vmatprep.subr.mxu0 0.0
    %2867 = vmatpush1.msra.mxu0 0.0
    %2868 = vmatprep.subr.mxu0 0.0
    %2869 = vmatpush1.msra.mxu0 0.0
    %2870 = vmatprep.subr.mxu0 0.0
    %2871 = vmatpush1.msra.mxu0 0.0
    %2872 = vmatprep.subr.mxu0 0.0
    %2873 = vmatpush1.msra.mxu0 0.0
    %2874 = vmatprep.subr.mxu0 0.0
    %2875 = vmatpush1.msra.mxu0 0.0
    %2876 = vmatprep.subr.mxu0 0.0
    %2877 = vmatpush1.msra.mxu0 0.0
    %2878 = vmatprep.subr.mxu0 0.0
    %2879 = vmatpush1.msra.mxu0 0.0
    %2880 = vmatprep.subr.mxu0 0.0
    %2881 = vmatpush1.msra.mxu0 0.0
    %2882 = vmatprep.subr.mxu0 0.0
    %2883 = vmatpush1.msra.mxu0 0.0
    %2884 = vmatprep.subr.mxu0 0.0
    %2885 = vmatpush1.msra.mxu0 0.0
    %2886 = vmatprep.subr.mxu0 0.0
    %2887 = vmatpush1.msra.mxu0 0.0
    %2888 = vmatprep.subr.mxu0 0.0
    %2889 = vmatpush1.msra.mxu0 0.0
    %2890 = vmatprep.subr.mxu0 0.0
    %2891 = vmatpush1.msra.mxu0 0.0
    %2892 = vmatprep.subr.mxu0 0.0
    %2893 = vmatpush1.msra.mxu0 0.0
    %2894 = vmatprep.subr.mxu0 0.0
    %2895 = vmatpush1.msra.mxu0 0.0
    %2896 = vmatprep.subr.mxu0 0.0
    %2897 = vmatpush1.msra.mxu0 0.0
    %2898 = vmatprep.subr.mxu0 0.0
    %2899 = vmatpush1.msra.mxu0 0.0
    %2900 = vmatprep.subr.mxu0 0.0
    %2901 = vmatpush1.msra.mxu0 0.0
    %2902 = vmatprep.subr.mxu0 0.0
    %2903 = vmatpush1.msra.mxu0 0.0
    %2904 = vmatprep.subr.mxu0 0.0
    %2905 = vmatpush1.msra.mxu0 0.0
    %2906 = vmatprep.subr.mxu0 0.0
    %2907 = vmatpush1.msra.mxu0 0.0
    %2908 = vmatprep.subr.mxu0 0.0
    %2909 = vmatpush1.msra.mxu0 0.0
    %2910 = vmatprep.subr.mxu0 0.0
    %2911 = vmatpush1.msra.mxu0 0.0
    %2912 = vmatprep.subr.mxu0 0.0
    %2913 = vmatpush1.msra.mxu0 0.0
    %2914 = vmatprep.subr.mxu0 0.0
    %2915 = vmatpush1.msra.mxu0 0.0
    %2916 = vmatprep.subr.mxu0 0.0
    %2917 = vmatpush1.msra.mxu0 0.0
    %2918 = vmatprep.mubr.f32.mxu0 0.0
    %2919 = vmatmul.mubr.f32.gmra.mrb[0].mxu0 %v2780
    %v2920 = vpop.f32.mrb[0].mxu0
    %v2921 = vadd.f32 0.0, %v2920
    %v2922 = vpop.f32.mrb[0].mxu0
    %2923 = vdwg.mxu0
    %v2925 = vrot.slane %v2921, 5
    %v2926 = vrot.slane %v2921, 6
    %v2929 = vadd.f32 %v2183, %v2925
    %v2930 = vadd.f32 %v2188, %v2926
    %v2931 = vxor.u32 %v2929, 2147483648
    %v2932 = vxor.u32 %v2930, 2147483648
    %v2933 = vmul.f32 %v2931, 1.442695
    %v2934 = vpow.pop %v2933
    %v2935 = vmul.f32 %v2932, 1.442695
    %v2936 = vpow.pop %v2935
    %v2937 = vadd.f32 %v2934, 1.0
    %v2938 = vadd.f32 %v2936, 1.0
    %v2939 = vrcp.pop %v2937
    %v2940 = vmul.f32 1.0, %v2939
    %v2941 = vrcp.pop %v2938
    %v2942 = vmul.f32 1.0, %v2941
    %v2943 = vadd.f32 %v2921, %v2299
    %v2945 = vrot.slane %v2943, 5
    %v2946 = vrot.slane %v2943, 6
    %2947 = vrot.lane.b32.xlu0 %v2945, 64
    %v2948 = vpop.permute.xlu0 %2947
    %2949 = vrot.lane.b32.xlu0 %v2946, 64
    %v2950 = vpop.permute.xlu0 %2949
    %v2953 = vmul.f32 %v2940, %v2948
    %v2954 = vmul.f32 %v2942, %v2950
    %2957 = vrot.lane.b32.xlu0 %v2953, 64
    %v2958 = vpop.permute.xlu0 %2957
    %2959 = vrot.lane.b32.xlu0 %v2954, 64
    %v2960 = vpop.permute.xlu0 %2959
    %v2963 = vadd.f32 %v2183, %v2958
    %v2964 = vadd.f32 %v2188, %v2960
    %v2965 = vtanh.pop %v2963
    %v2966 = vtanh.pop %v2964
    %v2967 = vsub.f32 1.0, %v2940
    %v2968 = vsub.f32 1.0, %v2942
    %2971 = vrot.lane.b32.xlu0 %v2965, 96
    %v2972 = vpop.permute.xlu0 %2971
    %2973 = vrot.lane.b32.xlu0 %v2966, 96
    %v2974 = vpop.permute.xlu0 %2973
    %v2977 = vmul.f32 %v2967, %v2972
    %v2978 = vmul.f32 %v2968, %v2974
    %v2979 = vrot.slane %v2771, 7
    %v2980 = vrot.slane %v2772, 7
    %v2983 = vmul.f32 %v2940, %v2979
    %v2984 = vmul.f32 %v2942, %v2980
    %v2985 = vadd.f32 %v2977, %v2983
    %v2986 = vadd.f32 %v2978, %v2984
    %v2989 = vrot.slane %v2985, 3
    %v2990 = vrot.slane %v2986, 2
    %v2991 = vsel %vm2354, %v2990, %v2989
    %2992 = vrot.lane.b32.xlu0 %v2991, 96
    %v2993 = vpop.permute.xlu0 %2992
    %v2994 = vsel %vm2201, %v2993, 0
    %2996 = vmatprep.subr.mxu0 0.0
    %2997 = vmatpush1.msra.mxu0 %v2196
    %2998 = vmatprep.subr.mxu0 0.0
    %2999 = vmatpush1.msra.mxu0 %v2197
    %3000 = vmatprep.subr.mxu0 0.0
    %3001 = vmatpush1.msra.mxu0 %v2198
    %3002 = vmatprep.subr.mxu0 0.0
    %3003 = vmatpush1.msra.mxu0 %v2199
    %3004 = vmatprep.subr.mxu0 0.0
    %3005 = vmatpush1.msra.mxu0 0.0
    %3006 = vmatprep.subr.mxu0 0.0
    %3007 = vmatpush1.msra.mxu0 0.0
    %3008 = vmatprep.subr.mxu0 0.0
    %3009 = vmatpush1.msra.mxu0 0.0
    %3010 = vmatprep.subr.mxu0 0.0
    %3011 = vmatpush1.msra.mxu0 0.0
    %3012 = vmatprep.subr.mxu0 0.0
    %3013 = vmatpush1.msra.mxu0 0.0
    %3014 = vmatprep.subr.mxu0 0.0
    %3015 = vmatpush1.msra.mxu0 0.0
    %3016 = vmatprep.subr.mxu0 0.0
    %3017 = vmatpush1.msra.mxu0 0.0
    %3018 = vmatprep.subr.mxu0 0.0
    %3019 = vmatpush1.msra.mxu0 0.0
    %3020 = vmatprep.subr.mxu0 0.0
    %3021 = vmatpush1.msra.mxu0 0.0
    %3022 = vmatprep.subr.mxu0 0.0
    %3023 = vmatpush1.msra.mxu0 0.0
    %3024 = vmatprep.subr.mxu0 0.0
    %3025 = vmatpush1.msra.mxu0 0.0
    %3026 = vmatprep.subr.mxu0 0.0
    %3027 = vmatpush1.msra.mxu0 0.0
    %3028 = vmatprep.subr.mxu0 0.0
    %3029 = vmatpush1.msra.mxu0 0.0
    %3030 = vmatprep.subr.mxu0 0.0
    %3031 = vmatpush1.msra.mxu0 0.0
    %3032 = vmatprep.subr.mxu0 0.0
    %3033 = vmatpush1.msra.mxu0 0.0
    %3034 = vmatprep.subr.mxu0 0.0
    %3035 = vmatpush1.msra.mxu0 0.0
    %3036 = vmatprep.subr.mxu0 0.0
    %3037 = vmatpush1.msra.mxu0 0.0
    %3038 = vmatprep.subr.mxu0 0.0
    %3039 = vmatpush1.msra.mxu0 0.0
    %3040 = vmatprep.subr.mxu0 0.0
    %3041 = vmatpush1.msra.mxu0 0.0
    %3042 = vmatprep.subr.mxu0 0.0
    %3043 = vmatpush1.msra.mxu0 0.0
    %3044 = vmatprep.subr.mxu0 0.0
    %3045 = vmatpush1.msra.mxu0 0.0
    %3046 = vmatprep.subr.mxu0 0.0
    %3047 = vmatpush1.msra.mxu0 0.0
    %3048 = vmatprep.subr.mxu0 0.0
    %3049 = vmatpush1.msra.mxu0 0.0
    %3050 = vmatprep.subr.mxu0 0.0
    %3051 = vmatpush1.msra.mxu0 0.0
    %3052 = vmatprep.subr.mxu0 0.0
    %3053 = vmatpush1.msra.mxu0 0.0
    %3054 = vmatprep.subr.mxu0 0.0
    %3055 = vmatpush1.msra.mxu0 0.0
    %3056 = vmatprep.subr.mxu0 0.0
    %3057 = vmatpush1.msra.mxu0 0.0
    %3058 = vmatprep.subr.mxu0 0.0
    %3059 = vmatpush1.msra.mxu0 0.0
    %3060 = vmatprep.mubr.f32.mxu0 0.0
    %3061 = vmatmul.mubr.f32.gmra.mrb[0].mxu0 %v2994
    %v3062 = vpop.f32.mrb[0].mxu0
    %v3063 = vadd.f32 0.0, %v3062
    %v3064 = vpop.f32.mrb[0].mxu0
    %3065 = vdwg.mxu0
    %v3066 = vadd.f32 %v2853, %v3063
    %v3067 = vadd.f32 %v3066, %v2350
    %3068 = vmatprep.subr.mxu0 0.0
    %3069 = vmatpush1.msra.mxu0 %v2191
    %3070 = vmatprep.subr.mxu0 0.0
    %3071 = vmatpush1.msra.mxu0 %v2192
    %3072 = vmatprep.subr.mxu0 0.0
    %3073 = vmatpush1.msra.mxu0 %v2193
    %3074 = vmatprep.subr.mxu0 0.0
    %3075 = vmatpush1.msra.mxu0 %v2194
    %3076 = vmatprep.subr.mxu0 0.0
    %3077 = vmatpush1.msra.mxu0 0.0
    %3078 = vmatprep.subr.mxu0 0.0
    %3079 = vmatpush1.msra.mxu0 0.0
    %3080 = vmatprep.subr.mxu0 0.0
    %3081 = vmatpush1.msra.mxu0 0.0
    %3082 = vmatprep.subr.mxu0 0.0
    %3083 = vmatpush1.msra.mxu0 0.0
    %3084 = vmatprep.subr.mxu0 0.0
    %3085 = vmatpush1.msra.mxu0 0.0
    %3086 = vmatprep.subr.mxu0 0.0
    %3087 = vmatpush1.msra.mxu0 0.0
    %3088 = vmatprep.subr.mxu0 0.0
    %3089 = vmatpush1.msra.mxu0 0.0
    %3090 = vmatprep.subr.mxu0 0.0
    %3091 = vmatpush1.msra.mxu0 0.0
    %3092 = vmatprep.subr.mxu0 0.0
    %3093 = vmatpush1.msra.mxu0 0.0
    %3094 = vmatprep.subr.mxu0 0.0
    %3095 = vmatpush1.msra.mxu0 0.0
    %3096 = vmatprep.subr.mxu0 0.0
    %3097 = vmatpush1.msra.mxu0 0.0
    %3098 = vmatprep.subr.mxu0 0.0
    %3099 = vmatpush1.msra.mxu0 0.0
    %3100 = vmatprep.subr.mxu0 0.0
    %3101 = vmatpush1.msra.mxu0 0.0
    %3102 = vmatprep.subr.mxu0 0.0
    %3103 = vmatpush1.msra.mxu0 0.0
    %3104 = vmatprep.subr.mxu0 0.0
    %3105 = vmatpush1.msra.mxu0 0.0
    %3106 = vmatprep.subr.mxu0 0.0
    %3107 = vmatpush1.msra.mxu0 0.0
    %3108 = vmatprep.subr.mxu0 0.0
    %3109 = vmatpush1.msra.mxu0 0.0
    %3110 = vmatprep.subr.mxu0 0.0
    %3111 = vmatpush1.msra.mxu0 0.0
    %3112 = vmatprep.subr.mxu0 0.0
    %3113 = vmatpush1.msra.mxu0 0.0
    %3114 = vmatprep.subr.mxu0 0.0
    %3115 = vmatpush1.msra.mxu0 0.0
    %3116 = vmatprep.subr.mxu0 0.0
    %3117 = vmatpush1.msra.mxu0 0.0
    %3118 = vmatprep.subr.mxu0 0.0
    %3119 = vmatpush1.msra.mxu0 0.0
    %3120 = vmatprep.subr.mxu0 0.0
    %3121 = vmatpush1.msra.mxu0 0.0
    %3122 = vmatprep.subr.mxu0 0.0
    %3123 = vmatpush1.msra.mxu0 0.0
    %3124 = vmatprep.subr.mxu0 0.0
    %3125 = vmatpush1.msra.mxu0 0.0
    %3126 = vmatprep.subr.mxu0 0.0
    %3127 = vmatpush1.msra.mxu0 0.0
    %3128 = vmatprep.subr.mxu0 0.0
    %3129 = vmatpush1.msra.mxu0 0.0
    %3130 = vmatprep.subr.mxu0 0.0
    %3131 = vmatpush1.msra.mxu0 0.0
    %3132 = vmatprep.mubr.f32.mxu0 0.0
    %3133 = vmatmul.mubr.f32.gmra.mrb[0].mxu0 %v2994
    %v3134 = vpop.f32.mrb[0].mxu0
    %v3135 = vadd.f32 0.0, %v3134
    %v3136 = vpop.f32.mrb[0].mxu0
    %3137 = vdwg.mxu0
    %v3139 = vrot.slane %v3135, 4
    %v3140 = vrot.slane %v3135, 5
    %v3143 = vadd.f32 %v2183, %v3139
    %v3144 = vadd.f32 %v2188, %v3140
    %v3145 = vxor.u32 %v3143, 2147483648
    %v3146 = vxor.u32 %v3144, 2147483648
    %v3147 = vmul.f32 %v3145, 1.442695
    %v3148 = vpow.pop %v3147
    %v3149 = vmul.f32 %v3146, 1.442695
    %v3150 = vpow.pop %v3149
    %v3151 = vadd.f32 %v3148, 1.0
    %v3152 = vadd.f32 %v3150, 1.0
    %v3153 = vrcp.pop %v3151
    %v3154 = vmul.f32 1.0, %v3153
    %v3155 = vrcp.pop %v3152
    %v3156 = vmul.f32 1.0, %v3155
    %v3157 = vadd.f32 %v3135, %v2299
    %v3159 = vrot.slane %v3157, 4
    %v3160 = vrot.slane %v3157, 5
    %3161 = vrot.lane.b32.xlu0 %v3159, 64
    %v3162 = vpop.permute.xlu0 %3161
    %3163 = vrot.lane.b32.xlu0 %v3160, 64
    %v3164 = vpop.permute.xlu0 %3163
    %v3167 = vmul.f32 %v3154, %v3162
    %v3168 = vmul.f32 %v3156, %v3164
    %3171 = vrot.lane.b32.xlu0 %v3167, 64
    %v3172 = vpop.permute.xlu0 %3171
    %3173 = vrot.lane.b32.xlu0 %v3168, 64
    %v3174 = vpop.permute.xlu0 %3173
    %v3177 = vadd.f32 %v2183, %v3172
    %v3178 = vadd.f32 %v2188, %v3174
    %v3179 = vtanh.pop %v3177
    %v3180 = vtanh.pop %v3178
    %v3181 = vsub.f32 1.0, %v3154
    %v3182 = vsub.f32 1.0, %v3156
    %3185 = vrot.lane.b32.xlu0 %v3179, 96
    %v3186 = vpop.permute.xlu0 %3185
    %3187 = vrot.lane.b32.xlu0 %v3180, 96
    %v3188 = vpop.permute.xlu0 %3187
    %v3191 = vmul.f32 %v3181, %v3186
    %v3192 = vmul.f32 %v3182, %v3188
    %v3193 = vrot.slane %v2985, 7
    %v3194 = vrot.slane %v2986, 7
    %v3197 = vmul.f32 %v3154, %v3193
    %v3198 = vmul.f32 %v3156, %v3194
    %v3199 = vadd.f32 %v3191, %v3197
    %v3200 = vadd.f32 %v3192, %v3198
    %v3203 = vrot.slane %v3199, 4
    %v3204 = vrot.slane %v3200, 3
    %v3205 = vsel %vm2354, %v3204, %v3203
    %3206 = vrot.lane.b32.xlu0 %v3205, 96
    %v3207 = vpop.permute.xlu0 %3206
    %v3208 = vsel %vm2201, %v3207, 0
    %3210 = vmatprep.subr.mxu0 0.0
    %3211 = vmatpush1.msra.mxu0 %v2196
    %3212 = vmatprep.subr.mxu0 0.0
    %3213 = vmatpush1.msra.mxu0 %v2197
    %3214 = vmatprep.subr.mxu0 0.0
    %3215 = vmatpush1.msra.mxu0 %v2198
    %3216 = vmatprep.subr.mxu0 0.0
    %3217 = vmatpush1.msra.mxu0 %v2199
    %3218 = vmatprep.subr.mxu0 0.0
    %3219 = vmatpush1.msra.mxu0 0.0
    %3220 = vmatprep.subr.mxu0 0.0
    %3221 = vmatpush1.msra.mxu0 0.0
    %3222 = vmatprep.subr.mxu0 0.0
    %3223 = vmatpush1.msra.mxu0 0.0
    %3224 = vmatprep.subr.mxu0 0.0
    %3225 = vmatpush1.msra.mxu0 0.0
    %3226 = vmatprep.subr.mxu0 0.0
    %3227 = vmatpush1.msra.mxu0 0.0
    %3228 = vmatprep.subr.mxu0 0.0
    %3229 = vmatpush1.msra.mxu0 0.0
    %3230 = vmatprep.subr.mxu0 0.0
    %3231 = vmatpush1.msra.mxu0 0.0
    %3232 = vmatprep.subr.mxu0 0.0
    %3233 = vmatpush1.msra.mxu0 0.0
    %3234 = vmatprep.subr.mxu0 0.0
    %3235 = vmatpush1.msra.mxu0 0.0
    %3236 = vmatprep.subr.mxu0 0.0
    %3237 = vmatpush1.msra.mxu0 0.0
    %3238 = vmatprep.subr.mxu0 0.0
    %3239 = vmatpush1.msra.mxu0 0.0
    %3240 = vmatprep.subr.mxu0 0.0
    %3241 = vmatpush1.msra.mxu0 0.0
    %3242 = vmatprep.subr.mxu0 0.0
    %3243 = vmatpush1.msra.mxu0 0.0
    %3244 = vmatprep.subr.mxu0 0.0
    %3245 = vmatpush1.msra.mxu0 0.0
    %3246 = vmatprep.subr.mxu0 0.0
    %3247 = vmatpush1.msra.mxu0 0.0
    %3248 = vmatprep.subr.mxu0 0.0
    %3249 = vmatpush1.msra.mxu0 0.0
    %3250 = vmatprep.subr.mxu0 0.0
    %3251 = vmatpush1.msra.mxu0 0.0
    %3252 = vmatprep.subr.mxu0 0.0
    %3253 = vmatpush1.msra.mxu0 0.0
    %3254 = vmatprep.subr.mxu0 0.0
    %3255 = vmatpush1.msra.mxu0 0.0
    %3256 = vmatprep.subr.mxu0 0.0
    %3257 = vmatpush1.msra.mxu0 0.0
    %3258 = vmatprep.subr.mxu0 0.0
    %3259 = vmatpush1.msra.mxu0 0.0
    %3260 = vmatprep.subr.mxu0 0.0
    %3261 = vmatpush1.msra.mxu0 0.0
    %3262 = vmatprep.subr.mxu0 0.0
    %3263 = vmatpush1.msra.mxu0 0.0
    %3264 = vmatprep.subr.mxu0 0.0
    %3265 = vmatpush1.msra.mxu0 0.0
    %3266 = vmatprep.subr.mxu0 0.0
    %3267 = vmatpush1.msra.mxu0 0.0
    %3268 = vmatprep.subr.mxu0 0.0
    %3269 = vmatpush1.msra.mxu0 0.0
    %3270 = vmatprep.subr.mxu0 0.0
    %3271 = vmatpush1.msra.mxu0 0.0
    %3272 = vmatprep.subr.mxu0 0.0
    %3273 = vmatpush1.msra.mxu0 0.0
    %3274 = vmatprep.mubr.f32.mxu0 0.0
    %3275 = vmatmul.mubr.f32.gmra.mrb[0].mxu0 %v3208
    %v3276 = vpop.f32.mrb[0].mxu0
    %v3277 = vadd.f32 0.0, %v3276
    %v3278 = vpop.f32.mrb[0].mxu0
    %3279 = vdwg.mxu0
    %v3280 = vadd.f32 %v3067, %v3277
    %v3281 = vadd.f32 %v3280, %v2350
    %3282 = vmatprep.subr.mxu0 0.0
    %3283 = vmatpush1.msra.mxu0 %v2191
    %3284 = vmatprep.subr.mxu0 0.0
    %3285 = vmatpush1.msra.mxu0 %v2192
    %3286 = vmatprep.subr.mxu0 0.0
    %3287 = vmatpush1.msra.mxu0 %v2193
    %3288 = vmatprep.subr.mxu0 0.0
    %3289 = vmatpush1.msra.mxu0 %v2194
    %3290 = vmatprep.subr.mxu0 0.0
    %3291 = vmatpush1.msra.mxu0 0.0
    %3292 = vmatprep.subr.mxu0 0.0
    %3293 = vmatpush1.msra.mxu0 0.0
    %3294 = vmatprep.subr.mxu0 0.0
    %3295 = vmatpush1.msra.mxu0 0.0
    %3296 = vmatprep.subr.mxu0 0.0
    %3297 = vmatpush1.msra.mxu0 0.0
    %3298 = vmatprep.subr.mxu0 0.0
    %3299 = vmatpush1.msra.mxu0 0.0
    %3300 = vmatprep.subr.mxu0 0.0
    %3301 = vmatpush1.msra.mxu0 0.0
    %3302 = vmatprep.subr.mxu0 0.0
    %3303 = vmatpush1.msra.mxu0 0.0
    %3304 = vmatprep.subr.mxu0 0.0
    %3305 = vmatpush1.msra.mxu0 0.0
    %3306 = vmatprep.subr.mxu0 0.0
    %3307 = vmatpush1.msra.mxu0 0.0
    %3308 = vmatprep.subr.mxu0 0.0
    %3309 = vmatpush1.msra.mxu0 0.0
    %3310 = vmatprep.subr.mxu0 0.0
    %3311 = vmatpush1.msra.mxu0 0.0
    %3312 = vmatprep.subr.mxu0 0.0
    %3313 = vmatpush1.msra.mxu0 0.0
    %3314 = vmatprep.subr.mxu0 0.0
    %3315 = vmatpush1.msra.mxu0 0.0
    %3316 = vmatprep.subr.mxu0 0.0
    %3317 = vmatpush1.msra.mxu0 0.0
    %3318 = vmatprep.subr.mxu0 0.0
    %3319 = vmatpush1.msra.mxu0 0.0
    %3320 = vmatprep.subr.mxu0 0.0
    %3321 = vmatpush1.msra.mxu0 0.0
    %3322 = vmatprep.subr.mxu0 0.0
    %3323 = vmatpush1.msra.mxu0 0.0
    %3324 = vmatprep.subr.mxu0 0.0
    %3325 = vmatpush1.msra.mxu0 0.0
    %3326 = vmatprep.subr.mxu0 0.0
    %3327 = vmatpush1.msra.mxu0 0.0
    %3328 = vmatprep.subr.mxu0 0.0
    %3329 = vmatpush1.msra.mxu0 0.0
    %3330 = vmatprep.subr.mxu0 0.0
    %3331 = vmatpush1.msra.mxu0 0.0
    %3332 = vmatprep.subr.mxu0 0.0
    %3333 = vmatpush1.msra.mxu0 0.0
    %3334 = vmatprep.subr.mxu0 0.0
    %3335 = vmatpush1.msra.mxu0 0.0
    %3336 = vmatprep.subr.mxu0 0.0
    %3337 = vmatpush1.msra.mxu0 0.0
    %3338 = vmatprep.subr.mxu0 0.0
    %3339 = vmatpush1.msra.mxu0 0.0
    %3340 = vmatprep.subr.mxu0 0.0
    %3341 = vmatpush1.msra.mxu0 0.0
    %3342 = vmatprep.subr.mxu0 0.0
    %3343 = vmatpush1.msra.mxu0 0.0
    %3344 = vmatprep.subr.mxu0 0.0
    %3345 = vmatpush1.msra.mxu0 0.0
    %3346 = vmatprep.mubr.f32.mxu0 0.0
    %3347 = vmatmul.mubr.f32.gmra.mrb[0].mxu0 %v3208
    %v3348 = vpop.f32.mrb[0].mxu0
    %v3349 = vadd.f32 0.0, %v3348
    %v3350 = vpop.f32.mrb[0].mxu0
    %3351 = vdwg.mxu0
    %v3353 = vrot.slane %v3349, 3
    %v3354 = vrot.slane %v3349, 4
    %v3357 = vadd.f32 %v2183, %v3353
    %v3358 = vadd.f32 %v2188, %v3354
    %v3359 = vxor.u32 %v3357, 2147483648
    %v3360 = vxor.u32 %v3358, 2147483648
    %v3361 = vmul.f32 %v3359, 1.442695
    %v3362 = vpow.pop %v3361
    %v3363 = vmul.f32 %v3360, 1.442695
    %v3364 = vpow.pop %v3363
    %v3365 = vadd.f32 %v3362, 1.0
    %v3366 = vadd.f32 %v3364, 1.0
    %v3367 = vrcp.pop %v3365
    %v3368 = vmul.f32 1.0, %v3367
    %v3369 = vrcp.pop %v3366
    %v3370 = vmul.f32 1.0, %v3369
    %v3371 = vadd.f32 %v3349, %v2299
    %v3373 = vrot.slane %v3371, 3
    %v3374 = vrot.slane %v3371, 4
    %3375 = vrot.lane.b32.xlu0 %v3373, 64
    %v3376 = vpop.permute.xlu0 %3375
    %3377 = vrot.lane.b32.xlu0 %v3374, 64
    %v3378 = vpop.permute.xlu0 %3377
    %v3381 = vmul.f32 %v3368, %v3376
    %v3382 = vmul.f32 %v3370, %v3378
    %3385 = vrot.lane.b32.xlu0 %v3381, 64
    %v3386 = vpop.permute.xlu0 %3385
    %3387 = vrot.lane.b32.xlu0 %v3382, 64
    %v3388 = vpop.permute.xlu0 %3387
    %v3391 = vadd.f32 %v2183, %v3386
    %v3392 = vadd.f32 %v2188, %v3388
    %v3393 = vtanh.pop %v3391
    %v3394 = vtanh.pop %v3392
    %v3395 = vsub.f32 1.0, %v3368
    %v3396 = vsub.f32 1.0, %v3370
    %3399 = vrot.lane.b32.xlu0 %v3393, 96
    %v3400 = vpop.permute.xlu0 %3399
    %3401 = vrot.lane.b32.xlu0 %v3394, 96
    %v3402 = vpop.permute.xlu0 %3401
    %v3405 = vmul.f32 %v3395, %v3400
    %v3406 = vmul.f32 %v3396, %v3402
    %v3407 = vrot.slane %v3199, 7
    %v3408 = vrot.slane %v3200, 7
    %v3411 = vmul.f32 %v3368, %v3407
    %v3412 = vmul.f32 %v3370, %v3408
    %v3413 = vadd.f32 %v3405, %v3411
    %v3414 = vadd.f32 %v3406, %v3412
    %v3417 = vrot.slane %v3413, 5
    %v3418 = vrot.slane %v3414, 4
    %v3419 = vsel %vm2354, %v3418, %v3417
    %3420 = vrot.lane.b32.xlu0 %v3419, 96
    %v3421 = vpop.permute.xlu0 %3420
    %v3422 = vsel %vm2201, %v3421, 0
    %3424 = vmatprep.subr.mxu0 0.0
    %3425 = vmatpush1.msra.mxu0 %v2196
    %3426 = vmatprep.subr.mxu0 0.0
    %3427 = vmatpush1.msra.mxu0 %v2197
    %3428 = vmatprep.subr.mxu0 0.0
    %3429 = vmatpush1.msra.mxu0 %v2198
    %3430 = vmatprep.subr.mxu0 0.0
    %3431 = vmatpush1.msra.mxu0 %v2199
    %3432 = vmatprep.subr.mxu0 0.0
    %3433 = vmatpush1.msra.mxu0 0.0
    %3434 = vmatprep.subr.mxu0 0.0
    %3435 = vmatpush1.msra.mxu0 0.0
    %3436 = vmatprep.subr.mxu0 0.0
    %3437 = vmatpush1.msra.mxu0 0.0
    %3438 = vmatprep.subr.mxu0 0.0
    %3439 = vmatpush1.msra.mxu0 0.0
    %3440 = vmatprep.subr.mxu0 0.0
    %3441 = vmatpush1.msra.mxu0 0.0
    %3442 = vmatprep.subr.mxu0 0.0
    %3443 = vmatpush1.msra.mxu0 0.0
    %3444 = vmatprep.subr.mxu0 0.0
    %3445 = vmatpush1.msra.mxu0 0.0
    %3446 = vmatprep.subr.mxu0 0.0
    %3447 = vmatpush1.msra.mxu0 0.0
    %3448 = vmatprep.subr.mxu0 0.0
    %3449 = vmatpush1.msra.mxu0 0.0
    %3450 = vmatprep.subr.mxu0 0.0
    %3451 = vmatpush1.msra.mxu0 0.0
    %3452 = vmatprep.subr.mxu0 0.0
    %3453 = vmatpush1.msra.mxu0 0.0
    %3454 = vmatprep.subr.mxu0 0.0
    %3455 = vmatpush1.msra.mxu0 0.0
    %3456 = vmatprep.subr.mxu0 0.0
    %3457 = vmatpush1.msra.mxu0 0.0
    %3458 = vmatprep.subr.mxu0 0.0
    %3459 = vmatpush1.msra.mxu0 0.0
    %3460 = vmatprep.subr.mxu0 0.0
    %3461 = vmatpush1.msra.mxu0 0.0
    %3462 = vmatprep.subr.mxu0 0.0
    %3463 = vmatpush1.msra.mxu0 0.0
    %3464 = vmatprep.subr.mxu0 0.0
    %3465 = vmatpush1.msra.mxu0 0.0
    %3466 = vmatprep.subr.mxu0 0.0
    %3467 = vmatpush1.msra.mxu0 0.0
    %3468 = vmatprep.subr.mxu0 0.0
    %3469 = vmatpush1.msra.mxu0 0.0
    %3470 = vmatprep.subr.mxu0 0.0
    %3471 = vmatpush1.msra.mxu0 0.0
    %3472 = vmatprep.subr.mxu0 0.0
    %3473 = vmatpush1.msra.mxu0 0.0
    %3474 = vmatprep.subr.mxu0 0.0
    %3475 = vmatpush1.msra.mxu0 0.0
    %3476 = vmatprep.subr.mxu0 0.0
    %3477 = vmatpush1.msra.mxu0 0.0
    %3478 = vmatprep.subr.mxu0 0.0
    %3479 = vmatpush1.msra.mxu0 0.0
    %3480 = vmatprep.subr.mxu0 0.0
    %3481 = vmatpush1.msra.mxu0 0.0
    %3482 = vmatprep.subr.mxu0 0.0
    %3483 = vmatpush1.msra.mxu0 0.0
    %3484 = vmatprep.subr.mxu0 0.0
    %3485 = vmatpush1.msra.mxu0 0.0
    %3486 = vmatprep.subr.mxu0 0.0
    %3487 = vmatpush1.msra.mxu0 0.0
    %3488 = vmatprep.mubr.f32.mxu0 0.0
    %3489 = vmatmul.mubr.f32.gmra.mrb[0].mxu0 %v3422
    %v3490 = vpop.f32.mrb[0].mxu0
    %v3491 = vadd.f32 0.0, %v3490
    %v3492 = vpop.f32.mrb[0].mxu0
    %3493 = vdwg.mxu0
    %v3494 = vadd.f32 %v3281, %v3491
    %v3495 = vadd.f32 %v3494, %v2350
    %3496 = vmatprep.subr.mxu0 0.0
    %3497 = vmatpush1.msra.mxu0 %v2191
    %3498 = vmatprep.subr.mxu0 0.0
    %3499 = vmatpush1.msra.mxu0 %v2192
    %3500 = vmatprep.subr.mxu0 0.0
    %3501 = vmatpush1.msra.mxu0 %v2193
    %3502 = vmatprep.subr.mxu0 0.0
    %3503 = vmatpush1.msra.mxu0 %v2194
    %3504 = vmatprep.subr.mxu0 0.0
    %3505 = vmatpush1.msra.mxu0 0.0
    %3506 = vmatprep.subr.mxu0 0.0
    %3507 = vmatpush1.msra.mxu0 0.0
    %3508 = vmatprep.subr.mxu0 0.0
    %3509 = vmatpush1.msra.mxu0 0.0
    %3510 = vmatprep.subr.mxu0 0.0
    %3511 = vmatpush1.msra.mxu0 0.0
    %3512 = vmatprep.subr.mxu0 0.0
    %3513 = vmatpush1.msra.mxu0 0.0
    %3514 = vmatprep.subr.mxu0 0.0
    %3515 = vmatpush1.msra.mxu0 0.0
    %3516 = vmatprep.subr.mxu0 0.0
    %3517 = vmatpush1.msra.mxu0 0.0
    %3518 = vmatprep.subr.mxu0 0.0
    %3519 = vmatpush1.msra.mxu0 0.0
    %3520 = vmatprep.subr.mxu0 0.0
    %3521 = vmatpush1.msra.mxu0 0.0
    %3522 = vmatprep.subr.mxu0 0.0
    %3523 = vmatpush1.msra.mxu0 0.0
    %3524 = vmatprep.subr.mxu0 0.0
    %3525 = vmatpush1.msra.mxu0 0.0
    %3526 = vmatprep.subr.mxu0 0.0
    %3527 = vmatpush1.msra.mxu0 0.0
    %3528 = vmatprep.subr.mxu0 0.0
    %3529 = vmatpush1.msra.mxu0 0.0
    %3530 = vmatprep.subr.mxu0 0.0
    %3531 = vmatpush1.msra.mxu0 0.0
    %3532 = vmatprep.subr.mxu0 0.0
    %3533 = vmatpush1.msra.mxu0 0.0
    %3534 = vmatprep.subr.mxu0 0.0
    %3535 = vmatpush1.msra.mxu0 0.0
    %3536 = vmatprep.subr.mxu0 0.0
    %3537 = vmatpush1.msra.mxu0 0.0
    %3538 = vmatprep.subr.mxu0 0.0
    %3539 = vmatpush1.msra.mxu0 0.0
    %3540 = vmatprep.subr.mxu0 0.0
    %3541 = vmatpush1.msra.mxu0 0.0
    %3542 = vmatprep.subr.mxu0 0.0
    %3543 = vmatpush1.msra.mxu0 0.0
    %3544 = vmatprep.subr.mxu0 0.0
    %3545 = vmatpush1.msra.mxu0 0.0
    %3546 = vmatprep.subr.mxu0 0.0
    %3547 = vmatpush1.msra.mxu0 0.0
    %3548 = vmatprep.subr.mxu0 0.0
    %3549 = vmatpush1.msra.mxu0 0.0
    %3550 = vmatprep.subr.mxu0 0.0
    %3551 = vmatpush1.msra.mxu0 0.0
    %3552 = vmatprep.subr.mxu0 0.0
    %3553 = vmatpush1.msra.mxu0 0.0
    %3554 = vmatprep.subr.mxu0 0.0
    %3555 = vmatpush1.msra.mxu0 0.0
    %3556 = vmatprep.subr.mxu0 0.0
    %3557 = vmatpush1.msra.mxu0 0.0
    %3558 = vmatprep.subr.mxu0 0.0
    %3559 = vmatpush1.msra.mxu0 0.0
    %3560 = vmatprep.mubr.f32.mxu0 0.0
    %3561 = vmatmul.mubr.f32.gmra.mrb[0].mxu0 %v3422
    %v3562 = vpop.f32.mrb[0].mxu0
    %v3563 = vadd.f32 0.0, %v3562
    %v3564 = vpop.f32.mrb[0].mxu0
    %3565 = vdwg.mxu0
    %v3567 = vrot.slane %v3563, 2
    %v3568 = vrot.slane %v3563, 3
    %v3571 = vadd.f32 %v2183, %v3567
    %v3572 = vadd.f32 %v2188, %v3568
    %v3573 = vxor.u32 %v3571, 2147483648
    %v3574 = vxor.u32 %v3572, 2147483648
    %v3575 = vmul.f32 %v3573, 1.442695
    %v3576 = vpow.pop %v3575
    %v3577 = vmul.f32 %v3574, 1.442695
    %v3578 = vpow.pop %v3577
    %v3579 = vadd.f32 %v3576, 1.0
    %v3580 = vadd.f32 %v3578, 1.0
    %v3581 = vrcp.pop %v3579
    %v3582 = vmul.f32 1.0, %v3581
    %v3583 = vrcp.pop %v3580
    %v3584 = vmul.f32 1.0, %v3583
    %v3585 = vadd.f32 %v3563, %v2299
    %v3587 = vrot.slane %v3585, 2
    %v3588 = vrot.slane %v3585, 3
    %3589 = vrot.lane.b32.xlu0 %v3587, 64
    %v3590 = vpop.permute.xlu0 %3589
    %3591 = vrot.lane.b32.xlu0 %v3588, 64
    %v3592 = vpop.permute.xlu0 %3591
    %v3595 = vmul.f32 %v3582, %v3590
    %v3596 = vmul.f32 %v3584, %v3592
    %3599 = vrot.lane.b32.xlu0 %v3595, 64
    %v3600 = vpop.permute.xlu0 %3599
    %3601 = vrot.lane.b32.xlu0 %v3596, 64
    %v3602 = vpop.permute.xlu0 %3601
    %v3605 = vadd.f32 %v2183, %v3600
    %v3606 = vadd.f32 %v2188, %v3602
    %v3607 = vtanh.pop %v3605
    %v3608 = vtanh.pop %v3606
    %v3609 = vsub.f32 1.0, %v3582
    %v3610 = vsub.f32 1.0, %v3584
    %3613 = vrot.lane.b32.xlu0 %v3607, 96
    %v3614 = vpop.permute.xlu0 %3613
    %3615 = vrot.lane.b32.xlu0 %v3608, 96
    %v3616 = vpop.permute.xlu0 %3615
    %v3619 = vmul.f32 %v3609, %v3614
    %v3620 = vmul.f32 %v3610, %v3616
    %v3621 = vrot.slane %v3413, 7
    %v3622 = vrot.slane %v3414, 7
    %v3625 = vmul.f32 %v3582, %v3621
    %v3626 = vmul.f32 %v3584, %v3622
    %v3627 = vadd.f32 %v3619, %v3625
    %v3628 = vadd.f32 %v3620, %v3626
    %v3631 = vrot.slane %v3627, 6
    %v3632 = vrot.slane %v3628, 5
    %v3633 = vsel %vm2354, %v3632, %v3631
    %3634 = vrot.lane.b32.xlu0 %v3633, 96
    %v3635 = vpop.permute.xlu0 %3634
    %v3636 = vsel %vm2201, %v3635, 0
    %3638 = vmatprep.subr.mxu0 0.0
    %3639 = vmatpush1.msra.mxu0 %v2196
    %3640 = vmatprep.subr.mxu0 0.0
    %3641 = vmatpush1.msra.mxu0 %v2197
    %3642 = vmatprep.subr.mxu0 0.0
    %3643 = vmatpush1.msra.mxu0 %v2198
    %3644 = vmatprep.subr.mxu0 0.0
    %3645 = vmatpush1.msra.mxu0 %v2199
    %3646 = vmatprep.subr.mxu0 0.0
    %3647 = vmatpush1.msra.mxu0 0.0
    %3648 = vmatprep.subr.mxu0 0.0
    %3649 = vmatpush1.msra.mxu0 0.0
    %3650 = vmatprep.subr.mxu0 0.0
    %3651 = vmatpush1.msra.mxu0 0.0
    %3652 = vmatprep.subr.mxu0 0.0
    %3653 = vmatpush1.msra.mxu0 0.0
    %3654 = vmatprep.subr.mxu0 0.0
    %3655 = vmatpush1.msra.mxu0 0.0
    %3656 = vmatprep.subr.mxu0 0.0
    %3657 = vmatpush1.msra.mxu0 0.0
    %3658 = vmatprep.subr.mxu0 0.0
    %3659 = vmatpush1.msra.mxu0 0.0
    %3660 = vmatprep.subr.mxu0 0.0
    %3661 = vmatpush1.msra.mxu0 0.0
    %3662 = vmatprep.subr.mxu0 0.0
    %3663 = vmatpush1.msra.mxu0 0.0
    %3664 = vmatprep.subr.mxu0 0.0
    %3665 = vmatpush1.msra.mxu0 0.0
    %3666 = vmatprep.subr.mxu0 0.0
    %3667 = vmatpush1.msra.mxu0 0.0
    %3668 = vmatprep.subr.mxu0 0.0
    %3669 = vmatpush1.msra.mxu0 0.0
    %3670 = vmatprep.subr.mxu0 0.0
    %3671 = vmatpush1.msra.mxu0 0.0
    %3672 = vmatprep.subr.mxu0 0.0
    %3673 = vmatpush1.msra.mxu0 0.0
    %3674 = vmatprep.subr.mxu0 0.0
    %3675 = vmatpush1.msra.mxu0 0.0
    %3676 = vmatprep.subr.mxu0 0.0
    %3677 = vmatpush1.msra.mxu0 0.0
    %3678 = vmatprep.subr.mxu0 0.0
    %3679 = vmatpush1.msra.mxu0 0.0
    %3680 = vmatprep.subr.mxu0 0.0
    %3681 = vmatpush1.msra.mxu0 0.0
    %3682 = vmatprep.subr.mxu0 0.0
    %3683 = vmatpush1.msra.mxu0 0.0
    %3684 = vmatprep.subr.mxu0 0.0
    %3685 = vmatpush1.msra.mxu0 0.0
    %3686 = vmatprep.subr.mxu0 0.0
    %3687 = vmatpush1.msra.mxu0 0.0
    %3688 = vmatprep.subr.mxu0 0.0
    %3689 = vmatpush1.msra.mxu0 0.0
    %3690 = vmatprep.subr.mxu0 0.0
    %3691 = vmatpush1.msra.mxu0 0.0
    %3692 = vmatprep.subr.mxu0 0.0
    %3693 = vmatpush1.msra.mxu0 0.0
    %3694 = vmatprep.subr.mxu0 0.0
    %3695 = vmatpush1.msra.mxu0 0.0
    %3696 = vmatprep.subr.mxu0 0.0
    %3697 = vmatpush1.msra.mxu0 0.0
    %3698 = vmatprep.subr.mxu0 0.0
    %3699 = vmatpush1.msra.mxu0 0.0
    %3700 = vmatprep.subr.mxu0 0.0
    %3701 = vmatpush1.msra.mxu0 0.0
    %3702 = vmatprep.mubr.f32.mxu0 0.0
    %3703 = vmatmul.mubr.f32.gmra.mrb[0].mxu0 %v3636
    %v3704 = vpop.f32.mrb[0].mxu0
    %v3705 = vadd.f32 0.0, %v3704
    %v3706 = vpop.f32.mrb[0].mxu0
    %3707 = vdwg.mxu0
    %v3708 = vadd.f32 %v3495, %v3705
    %v3709 = vadd.f32 %v3708, %v2350
    %3710 = vmatprep.subr.mxu0 0.0
    %3711 = vmatpush1.msra.mxu0 %v2191
    %3712 = vmatprep.subr.mxu0 0.0
    %3713 = vmatpush1.msra.mxu0 %v2192
    %3714 = vmatprep.subr.mxu0 0.0
    %3715 = vmatpush1.msra.mxu0 %v2193
    %3716 = vmatprep.subr.mxu0 0.0
    %3717 = vmatpush1.msra.mxu0 %v2194
    %3718 = vmatprep.subr.mxu0 0.0
    %3719 = vmatpush1.msra.mxu0 0.0
    %3720 = vmatprep.subr.mxu0 0.0
    %3721 = vmatpush1.msra.mxu0 0.0
    %3722 = vmatprep.subr.mxu0 0.0
    %3723 = vmatpush1.msra.mxu0 0.0
    %3724 = vmatprep.subr.mxu0 0.0
    %3725 = vmatpush1.msra.mxu0 0.0
    %3726 = vmatprep.subr.mxu0 0.0
    %3727 = vmatpush1.msra.mxu0 0.0
    %3728 = vmatprep.subr.mxu0 0.0
    %3729 = vmatpush1.msra.mxu0 0.0
    %3730 = vmatprep.subr.mxu0 0.0
    %3731 = vmatpush1.msra.mxu0 0.0
    %3732 = vmatprep.subr.mxu0 0.0
    %3733 = vmatpush1.msra.mxu0 0.0
    %3734 = vmatprep.subr.mxu0 0.0
    %3735 = vmatpush1.msra.mxu0 0.0
    %3736 = vmatprep.subr.mxu0 0.0
    %3737 = vmatpush1.msra.mxu0 0.0
    %3738 = vmatprep.subr.mxu0 0.0
    %3739 = vmatpush1.msra.mxu0 0.0
    %3740 = vmatprep.subr.mxu0 0.0
    %3741 = vmatpush1.msra.mxu0 0.0
    %3742 = vmatprep.subr.mxu0 0.0
    %3743 = vmatpush1.msra.mxu0 0.0
    %3744 = vmatprep.subr.mxu0 0.0
    %3745 = vmatpush1.msra.mxu0 0.0
    %3746 = vmatprep.subr.mxu0 0.0
    %3747 = vmatpush1.msra.mxu0 0.0
    %3748 = vmatprep.subr.mxu0 0.0
    %3749 = vmatpush1.msra.mxu0 0.0
    %3750 = vmatprep.subr.mxu0 0.0
    %3751 = vmatpush1.msra.mxu0 0.0
    %3752 = vmatprep.subr.mxu0 0.0
    %3753 = vmatpush1.msra.mxu0 0.0
    %3754 = vmatprep.subr.mxu0 0.0
    %3755 = vmatpush1.msra.mxu0 0.0
    %3756 = vmatprep.subr.mxu0 0.0
    %3757 = vmatpush1.msra.mxu0 0.0
    %3758 = vmatprep.subr.mxu0 0.0
    %3759 = vmatpush1.msra.mxu0 0.0
    %3760 = vmatprep.subr.mxu0 0.0
    %3761 = vmatpush1.msra.mxu0 0.0
    %3762 = vmatprep.subr.mxu0 0.0
    %3763 = vmatpush1.msra.mxu0 0.0
    %3764 = vmatprep.subr.mxu0 0.0
    %3765 = vmatpush1.msra.mxu0 0.0
    %3766 = vmatprep.subr.mxu0 0.0
    %3767 = vmatpush1.msra.mxu0 0.0
    %3768 = vmatprep.subr.mxu0 0.0
    %3769 = vmatpush1.msra.mxu0 0.0
    %3770 = vmatprep.subr.mxu0 0.0
    %3771 = vmatpush1.msra.mxu0 0.0
    %3772 = vmatprep.subr.mxu0 0.0
    %3773 = vmatpush1.msra.mxu0 0.0
    %3774 = vmatprep.mubr.f32.mxu0 0.0
    %3775 = vmatmul.mubr.f32.gmra.mrb[0].mxu0 %v3636
    %v3776 = vpop.f32.mrb[0].mxu0
    %v3777 = vadd.f32 0.0, %v3776
    %v3778 = vpop.f32.mrb[0].mxu0
    %3779 = vdwg.mxu0
    %v3781 = vrot.slane %v3777, 1
    %v3782 = vrot.slane %v3777, 2
    %v3785 = vadd.f32 %v2183, %v3781
    %v3786 = vadd.f32 %v2188, %v3782
    %v3787 = vxor.u32 %v3785, 2147483648
    %v3788 = vxor.u32 %v3786, 2147483648
    %v3789 = vmul.f32 %v3787, 1.442695
    %v3790 = vpow.pop %v3789
    %v3791 = vmul.f32 %v3788, 1.442695
    %v3792 = vpow.pop %v3791
    %v3793 = vadd.f32 %v3790, 1.0
    %v3794 = vadd.f32 %v3792, 1.0
    %v3795 = vrcp.pop %v3793
    %v3796 = vmul.f32 1.0, %v3795
    %v3797 = vrcp.pop %v3794
    %v3798 = vmul.f32 1.0, %v3797
    %v3799 = vadd.f32 %v3777, %v2299
    %v3801 = vrot.slane %v3799, 1
    %v3802 = vrot.slane %v3799, 2
    %3803 = vrot.lane.b32.xlu0 %v3801, 64
    %v3804 = vpop.permute.xlu0 %3803
    %3805 = vrot.lane.b32.xlu0 %v3802, 64
    %v3806 = vpop.permute.xlu0 %3805
    %v3809 = vmul.f32 %v3796, %v3804
    %v3810 = vmul.f32 %v3798, %v3806
    %3813 = vrot.lane.b32.xlu0 %v3809, 64
    %v3814 = vpop.permute.xlu0 %3813
    %3815 = vrot.lane.b32.xlu0 %v3810, 64
    %v3816 = vpop.permute.xlu0 %3815
    %v3819 = vadd.f32 %v2183, %v3814
    %v3820 = vadd.f32 %v2188, %v3816
    %v3821 = vtanh.pop %v3819
    %v3822 = vtanh.pop %v3820
    %v3823 = vsub.f32 1.0, %v3796
    %v3824 = vsub.f32 1.0, %v3798
    %3827 = vrot.lane.b32.xlu0 %v3821, 96
    %v3828 = vpop.permute.xlu0 %3827
    %3829 = vrot.lane.b32.xlu0 %v3822, 96
    %v3830 = vpop.permute.xlu0 %3829
    %v3833 = vmul.f32 %v3823, %v3828
    %v3834 = vmul.f32 %v3824, %v3830
    %v3835 = vrot.slane %v3627, 7
    %v3836 = vrot.slane %v3628, 7
    %v3839 = vmul.f32 %v3796, %v3835
    %v3840 = vmul.f32 %v3798, %v3836
    %v3841 = vadd.f32 %v3833, %v3839
    %v3842 = vadd.f32 %v3834, %v3840
    %v3845 = vrot.slane %v3841, 7
    %v3846 = vrot.slane %v3842, 6
    %v3847 = vsel %vm2354, %v3846, %v3845
    %3848 = vrot.lane.b32.xlu0 %v3847, 96
    %v3849 = vpop.permute.xlu0 %3848
    %v3850 = vsel %vm2201, %v3849, 0
    %3852 = vmatprep.subr.mxu0 0.0
    %3853 = vmatpush1.msra.mxu0 %v2196
    %3854 = vmatprep.subr.mxu0 0.0
    %3855 = vmatpush1.msra.mxu0 %v2197
    %3856 = vmatprep.subr.mxu0 0.0
    %3857 = vmatpush1.msra.mxu0 %v2198
    %3858 = vmatprep.subr.mxu0 0.0
    %3859 = vmatpush1.msra.mxu0 %v2199
    %3860 = vmatprep.subr.mxu0 0.0
    %3861 = vmatpush1.msra.mxu0 0.0
    %3862 = vmatprep.subr.mxu0 0.0
    %3863 = vmatpush1.msra.mxu0 0.0
    %3864 = vmatprep.subr.mxu0 0.0
    %3865 = vmatpush1.msra.mxu0 0.0
    %3866 = vmatprep.subr.mxu0 0.0
    %3867 = vmatpush1.msra.mxu0 0.0
    %3868 = vmatprep.subr.mxu0 0.0
    %3869 = vmatpush1.msra.mxu0 0.0
    %3870 = vmatprep.subr.mxu0 0.0
    %3871 = vmatpush1.msra.mxu0 0.0
    %3872 = vmatprep.subr.mxu0 0.0
    %3873 = vmatpush1.msra.mxu0 0.0
    %3874 = vmatprep.subr.mxu0 0.0
    %3875 = vmatpush1.msra.mxu0 0.0
    %3876 = vmatprep.subr.mxu0 0.0
    %3877 = vmatpush1.msra.mxu0 0.0
    %3878 = vmatprep.subr.mxu0 0.0
    %3879 = vmatpush1.msra.mxu0 0.0
    %3880 = vmatprep.subr.mxu0 0.0
    %3881 = vmatpush1.msra.mxu0 0.0
    %3882 = vmatprep.subr.mxu0 0.0
    %3883 = vmatpush1.msra.mxu0 0.0
    %3884 = vmatprep.subr.mxu0 0.0
    %3885 = vmatpush1.msra.mxu0 0.0
    %3886 = vmatprep.subr.mxu0 0.0
    %3887 = vmatpush1.msra.mxu0 0.0
    %3888 = vmatprep.subr.mxu0 0.0
    %3889 = vmatpush1.msra.mxu0 0.0
    %3890 = vmatprep.subr.mxu0 0.0
    %3891 = vmatpush1.msra.mxu0 0.0
    %3892 = vmatprep.subr.mxu0 0.0
    %3893 = vmatpush1.msra.mxu0 0.0
    %3894 = vmatprep.subr.mxu0 0.0
    %3895 = vmatpush1.msra.mxu0 0.0
    %3896 = vmatprep.subr.mxu0 0.0
    %3897 = vmatpush1.msra.mxu0 0.0
    %3898 = vmatprep.subr.mxu0 0.0
    %3899 = vmatpush1.msra.mxu0 0.0
    %3900 = vmatprep.subr.mxu0 0.0
    %3901 = vmatpush1.msra.mxu0 0.0
    %3902 = vmatprep.subr.mxu0 0.0
    %3903 = vmatpush1.msra.mxu0 0.0
    %3904 = vmatprep.subr.mxu0 0.0
    %3905 = vmatpush1.msra.mxu0 0.0
    %3906 = vmatprep.subr.mxu0 0.0
    %3907 = vmatpush1.msra.mxu0 0.0
    %3908 = vmatprep.subr.mxu0 0.0
    %3909 = vmatpush1.msra.mxu0 0.0
    %3910 = vmatprep.subr.mxu0 0.0
    %3911 = vmatpush1.msra.mxu0 0.0
    %3912 = vmatprep.subr.mxu0 0.0
    %3913 = vmatpush1.msra.mxu0 0.0
    %3914 = vmatprep.subr.mxu0 0.0
    %3915 = vmatpush1.msra.mxu0 0.0
    %3916 = vmatprep.mubr.f32.mxu0 0.0
    %3917 = vmatmul.mubr.f32.gmra.mrb[0].mxu0 %v3850
    %v3918 = vpop.f32.mrb[0].mxu0
    %v3919 = vadd.f32 0.0, %v3918
    %v3920 = vpop.f32.mrb[0].mxu0
    %3921 = vdwg.mxu0
    %v3922 = vadd.f32 %v3709, %v3919
    %v3923 = vadd.f32 %v3922, %v2350
    %3925 = vrot.lane.b32.xlu0 %v2639, 2
    %v3926 = vpop.permute.xlu0 %3925
    %3929 = vrot.lane.b32.xlu0 %v2853, 4
    %v3930 = vpop.permute.xlu0 %3929
    %3933 = vrot.lane.b32.xlu0 %v3067, 6
    %v3934 = vpop.permute.xlu0 %3933
    %3937 = vrot.lane.b32.xlu0 %v3281, 8
    %v3938 = vpop.permute.xlu0 %3937
    %3941 = vrot.lane.b32.xlu0 %v3495, 10
    %v3942 = vpop.permute.xlu0 %3941
    %3945 = vrot.lane.b32.xlu0 %v3709, 12
    %v3946 = vpop.permute.xlu0 %3945
    %3949 = vrot.lane.b32.xlu0 %v3923, 14
    %v3950 = vpop.permute.xlu0 %3949
    %v3952 = vsel %vm942, %v2427, %v3926
    %v3953 = vsel %vm238, %v3952, %v3930
    %vm3954 = vcmask 48128
    %v3955 = vsel %vm3954, %v3953, %v3934
    %v3956 = vsel %vm1216, %v3955, %v3938
    %vm3957 = vcmask 80896
    %v3958 = vsel %vm3957, %v3956, %v3942
    %vm3959 = vcmask 97280
    %v3960 = vsel %vm3959, %v3958, %v3946
    %vm3961 = vcmask 113664
    %v3962 = vsel %vm3961, %v3960, %v3950
    %vm3963 = vcmask 123904
    %3964 = vst.msk [vmem:[#allocation7] sm:$0x3] %vm3963, %v3962
    // Predicated region
    $region38: #{mvadapt_forward.1} parent=1 // pred_check
      _
    $region39: #{mvadapt_forward.1} parent=1 // pred_check_branch
      %3966 = sbr.rel (0) target = $region41
    $region40: #{mvadapt_forward.1} parent=1 // pred_region
      %s3968 = ssub.s32 32, 32
      %3969 = vsyncadd [#allocation4], %s3968
      %s3971 = sshll.u32 [#allocation7], 4
      %s3972 = int_to_ptr.vmem [resolvable:$true] %s3971
      %3974 = dma.vmem_to_hbm [thread:$0]  %s3972, 32, %s7, [#allocation4]
    $region41: #{mvadapt_forward.1} parent=1 // pred_fallthru
      _
    // Predicated region
    $region42: #{mvadapt_forward.1} parent=1 // pred_check
      _
    $region43: #{mvadapt_forward.1} parent=1 // pred_check_branch
      %3976 = sbr.rel (0) target = $region45
    $region44: #{mvadapt_forward.1} parent=1 // pred_region
      %3977 = dma.done [#allocation4], 32
    $region45: #{mvadapt_forward.1} parent=1 // pred_fallthru
      _
    %3978 = vsyncpa [#allocation3], 1
    %3979 = vsyncpa [#allocation6], 1
    %3980 = vsyncpa [#allocation4], 1

</llo_original>
